<compile_context>
chip_gen: v6e
topology: v6e:2x2x1
jax: 0.10.0
libtpu: 0.0.40
codegen_flags: <defaults>
</compile_context>

<pallas_src>
import jax
import jax.numpy as jnp
from jax.experimental import pallas as pl
from jax.experimental.pallas import tpu as pltpu

NODES_PER_GRAPH = 54
PADDED_NODES = 64          # 54 padded to a sublane-friendly 64 (padding is zero-weighted)


# ----------------------------- Pallas kernel ------------------------------- #

def _net_kernel(a_ref, x_ref, g_ref,
                w1_rel_ref, w1_root_ref, b1_ref,
                w2_rel_ref, w2_root_ref, b2_ref,
                wg1t_ref, bg1t_ref, wg2t_ref, bg2t_ref, wg3t_ref, bg3t_ref,
                w3t_ref, wo1gt_ref, bo1t_ref, wo2t_ref, bo2_ref,
                out_ref):
    """Fused per-graph forward: 2x GraphConv+ReLU, GlobalLayers MLP, OutLayers, sigmoid."""
    a = a_ref[...]                      # [P, P]  padded per-graph adjacency (dst, src)
    x = x_ref[...]                      # [P, Fin] padded node features

    # --- GraphConv 1 + ReLU -------------------------------------------------
    agg1 = jnp.dot(a, x, preferred_element_type=jnp.float32)
    h = (jnp.dot(agg1, w1_rel_ref[...], preferred_element_type=jnp.float32)
         + jnp.dot(x, w1_root_ref[...], preferred_element_type=jnp.float32)
         + b1_ref[...])
    h = jnp.maximum(h, 0.0)             # [P, H]

    # --- GraphConv 2 + ReLU -------------------------------------------------
    agg2 = jnp.dot(a, h, preferred_element_type=jnp.float32)
    e = (jnp.dot(agg2, w2_rel_ref[...], preferred_element_type=jnp.float32)
         + jnp.dot(h, w2_root_ref[...], preferred_element_type=jnp.float32)
         + b2_ref[...])
    e = jnp.maximum(e, 0.0)             # [P, O]; rows >= 54 are padding, zero-weighted below

    # --- GlobalLayers MLP (column-oriented: activations are [d, 1]) ---------
    g = g_ref[...]                      # [G, 1]
    g = jnp.maximum(jnp.dot(wg1t_ref[...], g, preferred_element_type=jnp.float32)
                    + bg1t_ref[...], 0.0)
    g = jnp.maximum(jnp.dot(wg2t_ref[...], g, preferred_element_type=jnp.float32)
                    + bg2t_ref[...], 0.0)
    g = jnp.maximum(jnp.dot(wg3t_ref[...], g, preferred_element_type=jnp.float32)
                    + bg3t_ref[...], 0.0)

    # --- OutLayers -----------------------------------------------------------
    # concat([reshape(embeds, 54*O), g]) @ Wo1 is computed without any in-kernel
    # reshape: the embed part of Wo1 is stored pre-permuted / zero-padded as
    # w3_t[f][k, n] = Wo1[n*O + f, k]  (zeros for padded nodes n >= 54), so the
    # node-major flatten reduces to O small matvecs over the node axis.
    # TODO(synk): dropout(p=0.2, train=True) not implemented; eval mode
    # (isTrain=False) is the identity, which is what is computed here.
    h1 = jnp.dot(wo1gt_ref[...], g, preferred_element_type=jnp.float32) + bo1t_ref[...]
    for f in range(w3t_ref.shape[0]):   # static, O = gnnOutputDim = 4
        h1 = h1 + jnp.dot(w3t_ref[f], e[:, f:f + 1],
                          preferred_element_type=jnp.float32)   # [128, 1]
    h1 = jnp.maximum(h1, 0.0)
    logit = jnp.dot(wo2t_ref[...], h1, preferred_element_type=jnp.float32) + bo2_ref[...]
    out_ref[...] = jax.nn.sigmoid(logit)                         # [1, 1]


# ------------------------------ Model wrapper ------------------------------ #

def net_forward(a_pad, x_pad, global_feats, kp):
    """Fused Net.forward over padded, per-graph batched inputs.

    a_pad:        [B, P, P]   weighted adjacency per graph (54 -> P zero-padded)
    x_pad:        [B, P, Fin] node features per graph (zero-padded)
    global_feats: [B, G]
    kp:           kernel-layout params (see pack_params)
    """
    B, P, _ = a_pad.shape
    Fin = x_pad.shape[-1]
    G = global_feats.shape[-1]
    H = kp["w1_rel"].shape[1]
    O = kp["w2_rel"].shape[1]
    D1 = kp["bo1_t"].shape[0]           # 128

    glob_col = global_feats[:, :, None]            # [B, G, 1] per-graph column

    weights = (kp["w1_rel"], kp["w1_root"], kp["b1"],
               kp["w2_rel"], kp["w2_root"], kp["b2"],
               kp["wg1_t"], kp["bg1_t"], kp["wg2_t"], kp["bg2_t"],
               kp["wg3_t"], kp["bg3_t"],
               kp["w3_t"], kp["wo1_glob_t"], kp["bo1_t"],
               kp["wo2_t"], kp["bo2"])

    def whole(arr):  # full-array block, resident across all grid steps
        return pl.BlockSpec(arr.shape, lambda b, nd=arr.ndim: (0,) * nd)

    in_specs = [
        pl.BlockSpec((None, P, P), lambda b: (b, 0, 0)),     # adjacency of graph b
        pl.BlockSpec((None, P, Fin), lambda b: (b, 0, 0)),   # node feats of graph b
        pl.BlockSpec((None, G, 1), lambda b: (b, 0, 0)),     # global feats column
    ] + [whole(w) for w in weights]

    flops = 2 * B * (P * P * Fin          # A @ x
                     + 2 * P * Fin * H    # rel/root dots, layer 1
                     + P * P * H          # A @ h
                     + 2 * P * H * O      # rel/root dots, layer 2
                     + 3 * 8 * G          # GlobalLayers
                     + O * D1 * P         # embed part of OutLayers[0]
                     + D1 * G             # global part of OutLayers[0]
                     + D1)                # OutLayers[1]
    bytes_accessed = 4 * (a_pad.size + x_pad.size + glob_col.size + B
                          + sum(w.size for w in weights))

    out = pl.pallas_call(
        _net_kernel,
        grid=(B,),
        in_specs=in_specs,
        out_specs=pl.BlockSpec((None, 1, 1), lambda b: (b, 0, 0)),
        out_shape=jax.ShapeDtypeStruct((B, 1, 1), jnp.float32),
        compiler_params=pltpu.CompilerParams(
            dimension_semantics=("parallel",),
            vmem_limit_bytes=32 * 1024 * 1024),
        cost_estimate=pl.CostEstimate(
            flops=flops, transcendentals=B, bytes_accessed=bytes_accessed),
    )(a_pad, x_pad, glob_col, *weights)
    return out.reshape(B, 1)


# ------------------------------- Parameters -------------------------------- #

def init_params(key, gnn_in, gnn_hidden, gnn_out, glob_in):
    """Logical (PyTorch-layout-equivalent) parameters."""
    ks = iter(jax.random.split(key, 32))

    def lin_w(din, dout):
        return (jax.random.normal(next(ks), (din, dout), jnp.float32)
                / jnp.sqrt(jnp.float32(din)))

    def lin_b(dout):
        return 0.01 * jax.random.normal(next(ks), (1, dout), jnp.float32)

    cat_dim = NODES_PER_GRAPH * gnn_out + glob_in
    return {
        # GraphConv 1 / 2 (lin_rel has bias, lin_root does not)
        "w1_rel": lin_w(gnn_in, gnn_hidden), "w1_root": lin_w(gnn_in, gnn_hidden),
        "b1": lin_b(gnn_hidden),
        "w2_rel": lin_w(gnn_hidden, gnn_out), "w2_root": lin_w(gnn_hidden, gnn_out),
        "b2": lin_b(gnn_out),
        # GlobalLayers
        "wg1": lin_w(glob_in, 8), "bg1": lin_b(8),
        "wg2": lin_w(8, 8), "bg2": lin_b(8),
        "wg3": lin_w(8, glob_in), "bg3": lin_b(glob_in),
        # OutLayers
        "wo1": lin_w(cat_dim, 128), "bo1": lin_b(128),
        "wo2": lin_w(128, 1), "bo2": lin_b(1),
    }


def pack_params(p, gnn_out):
    """Repack logical params into the kernel's padded / column-oriented layout."""
    emb_dim = NODES_PER_GRAPH * gnn_out
    d1 = p["wo1"].shape[1]
    wo1_emb, wo1_glob = p["wo1"][:emb_dim], p["wo1"][emb_dim:]
    # w3_t[f, k, n] = wo1_emb[n*gnn_out + f, k]; zero rows for padded nodes n >= 54,
    # so the (bias+ReLU) garbage in padded embed rows contributes nothing.
    l3 = wo1_emb.reshape(NODES_PER_GRAPH, gnn_out, d1)
    w3_t = jnp.zeros((gnn_out, d1, PADDED_NODES), jnp.float32)
    w3_t = w3_t.at[:, :, :NODES_PER_GRAPH].set(jnp.transpose(l3, (1, 2, 0)))
    return {
        "w1_rel": p["w1_rel"], "w1_root": p["w1_root"], "b1": p["b1"],
        "w2_rel": p["w2_rel"], "w2_root": p["w2_root"], "b2": p["b2"],
        "wg1_t": p["wg1"].T, "bg1_t": p["bg1"].T,
        "wg2_t": p["wg2"].T, "bg2_t": p["bg2"].T,
        "wg3_t": p["wg3"].T, "bg3_t": p["bg3"].T,
        "w3_t": w3_t, "wo1_glob_t": wo1_glob.T, "bo1_t": p["bo1"].T,
        "wo2_t": p["wo2"].T, "bo2": p["bo2"],
    }


# ------------------------------- Reference ---------------------------------- #

def net_forward_ref(adj_dense, x, global_feats, p):
    """Pure-JAX reference mirroring the PyTorch forward (dense block-diag adjacency)."""
    relu = lambda v: jnp.maximum(v, 0.0)
    h = relu((adj_dense @ x) @ p["w1_rel"] + x @ p["w1_root"] + p["b1"])
    e = relu((adj_dense @ h) @ p["w2_rel"] + h @ p["w2_root"] + p["b2"])
    e = e.reshape(x.shape[0] // NODES_PER_GRAPH, -1)            # (B, 54*gnn_out)
    g = relu(global_feats @ p["wg1"] + p["bg1"])
    g = relu(g @ p["wg2"] + p["bg2"])
    g = relu(g @ p["wg3"] + p["bg3"])
    cat = jnp.concatenate([e, g], axis=-1)
    h2 = relu(cat @ p["wo1"] + p["bo1"])                        # dropout: eval identity
    return jax.nn.sigmoid(h2 @ p["wo2"] + p["bo2"])


# ------------------------------- Graph setup -------------------------------- #

def build_batched_graph(key, batch_size, gnn_in):
    """Deterministic batched ring graphs (54 nodes each).

    Returns padded per-graph arrays for the kernel (block-diagonal structure
    exploited) plus the dense block-diagonal adjacency for the reference.
    """
    kx, kw = jax.random.split(key)
    n = batch_size * NODES_PER_GRAPH
    x = jax.random.normal(kx, (n, gnn_in), jnp.float32)

    i = jnp.arange(NODES_PER_GRAPH, dtype=jnp.int32)
    j = (i + 1) % NODES_PER_GRAPH
    src = jnp.concatenate([i, j])                       # bidirectional ring (local ids)
    dst = jnp.concatenate([j, i])
    w = 0.5 + 0.5 * jax.random.uniform(kw, (batch_size, src.shape[0]), jnp.float32)

    # per-graph [54, 54] adjacency, A[dst, src] = edge weight
    adj_local = jnp.zeros((batch_size, NODES_PER_GRAPH, NODES_PER_GRAPH), jnp.float32)
    adj_local = adj_local.at[:, dst, src].add(w)

    # kernel inputs: zero-padded per-graph blocks
    a_pad = jnp.zeros((batch_size, PADDED_NODES, PADDED_NODES), jnp.float32)
    a_pad = a_pad.at[:, :NODES_PER_GRAPH, :NODES_PER_GRAPH].set(adj_local)
    x_pad = jnp.zeros((batch_size, PADDED_NODES, gnn_in), jnp.float32)
    x_pad = x_pad.at[:, :NODES_PER_GRAPH, :].set(
        x.reshape(batch_size, NODES_PER_GRAPH, gnn_in))

    # reference input: dense [N, N] block-diagonal adjacency
    adj_dense = jnp.zeros((n, n), jnp.float32)
    for b in range(batch_size):
        s = b * NODES_PER_GRAPH
        adj_dense = adj_dense.at[s:s + NODES_PER_GRAPH, s:s + NODES_PER_GRAPH].set(adj_local[b])
    return a_pad, x_pad, adj_dense, x


# ---------------------------------- main ------------------------------------ #

if __name__ == "__main__":
    gnn_in, gnn_hidden, gnn_out, glob_in = 4, 32, 4, 8
    batch_size = 2

    key = jax.random.PRNGKey(0)
    k_graph, k_glob, k_params = jax.random.split(key, 3)

    a_pad, x_pad, adj_dense, x = build_batched_graph(k_graph, batch_size, gnn_in)
    global_feats = jax.random.normal(k_glob, (batch_size, glob_in), jnp.float32)

    params = init_params(k_params, gnn_in, gnn_hidden, gnn_out, glob_in)
    kparams = pack_params(params, gnn_out)

    out = net_forward(a_pad, x_pad, global_feats, kparams)
    out = jax.block_until_ready(out)

    ref = net_forward_ref(adj_dense, x, global_feats, params)
    assert out.shape == (batch_size, 1)
    assert bool(jnp.all(jnp.isfinite(out)))
    assert bool(jnp.all((out >= 0.0) & (out <= 1.0)))
    # Tolerance accommodates MXU f32 default-precision / accumulation-order
    # differences between the per-graph, column-oriented kernel decomposition
    # and the dense whole-batch reference.
    assert bool(jnp.allclose(out, ref, rtol=1e-2, atol=1e-2))

    print("KERNEL_OK")
</pallas_src>

<mosaic_0001>
module attributes {stable_mosaic.version = 11 : i64} {
  func.func @_net_kernel(%arg0: i32, %arg1: memref<1x64x64xf32, #tpu.memory_space<vmem>>, %arg2: memref<1x64x4xf32, #tpu.memory_space<vmem>>, %arg3: memref<1x8x1xf32, #tpu.memory_space<vmem>>, %arg4: memref<4x32xf32, #tpu.memory_space<vmem>>, %arg5: memref<4x32xf32, #tpu.memory_space<vmem>>, %arg6: memref<1x32xf32, #tpu.memory_space<vmem>>, %arg7: memref<32x4xf32, #tpu.memory_space<vmem>>, %arg8: memref<32x4xf32, #tpu.memory_space<vmem>>, %arg9: memref<1x4xf32, #tpu.memory_space<vmem>>, %arg10: memref<8x8xf32, #tpu.memory_space<vmem>>, %arg11: memref<8x1xf32, #tpu.memory_space<vmem>>, %arg12: memref<8x8xf32, #tpu.memory_space<vmem>>, %arg13: memref<8x1xf32, #tpu.memory_space<vmem>>, %arg14: memref<8x8xf32, #tpu.memory_space<vmem>>, %arg15: memref<8x1xf32, #tpu.memory_space<vmem>>, %arg16: memref<4x128x64xf32, #tpu.memory_space<vmem>>, %arg17: memref<128x8xf32, #tpu.memory_space<vmem>>, %arg18: memref<128x1xf32, #tpu.memory_space<vmem>>, %arg19: memref<1x128xf32, #tpu.memory_space<vmem>>, %arg20: memref<1x1xf32, #tpu.memory_space<vmem>>, %arg21: memref<1x1x1xf32, #tpu.memory_space<vmem>>) attributes {dimension_semantics = [#tpu.dimension_semantics<parallel>], iteration_bounds = array<i64: 2>, scalar_prefetch = 0 : i64, scratch_operands = 0 : i64, tpu.core_type = #tpu.core_type<tc>, window_params = [{transform_indices = @transform_0, window_bounds = array<i64: 1, 64, 64>}, {transform_indices = @transform_1, window_bounds = array<i64: 1, 64, 4>}, {transform_indices = @transform_2, window_bounds = array<i64: 1, 8, 1>}, {pipeline_mode = #tpu.pipeline_mode<synchronous>, transform_indices = @transform_3, window_bounds = array<i64: 4, 32>}, {pipeline_mode = #tpu.pipeline_mode<synchronous>, transform_indices = @transform_4, window_bounds = array<i64: 4, 32>}, {pipeline_mode = #tpu.pipeline_mode<synchronous>, transform_indices = @transform_5, window_bounds = array<i64: 1, 32>}, {pipeline_mode = #tpu.pipeline_mode<synchronous>, transform_indices = @transform_6, window_bounds = array<i64: 32, 4>}, {pipeline_mode = #tpu.pipeline_mode<synchronous>, transform_indices = @transform_7, window_bounds = array<i64: 32, 4>}, {pipeline_mode = #tpu.pipeline_mode<synchronous>, transform_indices = @transform_8, window_bounds = array<i64: 1, 4>}, {pipeline_mode = #tpu.pipeline_mode<synchronous>, transform_indices = @transform_9, window_bounds = array<i64: 8, 8>}, {pipeline_mode = #tpu.pipeline_mode<synchronous>, transform_indices = @transform_10, window_bounds = array<i64: 8, 1>}, {pipeline_mode = #tpu.pipeline_mode<synchronous>, transform_indices = @transform_11, window_bounds = array<i64: 8, 8>}, {pipeline_mode = #tpu.pipeline_mode<synchronous>, transform_indices = @transform_12, window_bounds = array<i64: 8, 1>}, {pipeline_mode = #tpu.pipeline_mode<synchronous>, transform_indices = @transform_13, window_bounds = array<i64: 8, 8>}, {pipeline_mode = #tpu.pipeline_mode<synchronous>, transform_indices = @transform_14, window_bounds = array<i64: 8, 1>}, {pipeline_mode = #tpu.pipeline_mode<synchronous>, transform_indices = @transform_15, window_bounds = array<i64: 4, 128, 64>}, {pipeline_mode = #tpu.pipeline_mode<synchronous>, transform_indices = @transform_16, window_bounds = array<i64: 128, 8>}, {pipeline_mode = #tpu.pipeline_mode<synchronous>, transform_indices = @transform_17, window_bounds = array<i64: 128, 1>}, {pipeline_mode = #tpu.pipeline_mode<synchronous>, transform_indices = @transform_18, window_bounds = array<i64: 1, 128>}, {pipeline_mode = #tpu.pipeline_mode<synchronous>, transform_indices = @transform_19, window_bounds = array<i64: 1, 1>}, {transform_indices = @transform_20, window_bounds = array<i64: 1, 1, 1>}]} {
    %c0 = arith.constant 0 : index
    %c0_0 = arith.constant 0 : index
    %c0_1 = arith.constant 0 : index
    %0 = vector.load %arg1[%c0, %c0_0, %c0_1] : memref<1x64x64xf32, #tpu.memory_space<vmem>>, vector<1x64x64xf32>
    %1 = vector.shape_cast %0 : vector<1x64x64xf32> to vector<64x64xf32>
    %c0_2 = arith.constant 0 : index
    %c0_3 = arith.constant 0 : index
    %c0_4 = arith.constant 0 : index
    %2 = vector.load %arg2[%c0_2, %c0_3, %c0_4] : memref<1x64x4xf32, #tpu.memory_space<vmem>>, vector<1x64x4xf32>
    %3 = vector.shape_cast %2 : vector<1x64x4xf32> to vector<64x4xf32>
    %cst = arith.constant dense<0.000000e+00> : vector<64x4xf32>
    %4 = tpu.matmul %1, %3, %cst {dimension_numbers = #tpu.dot_dimension_numbers<[1], [0], [0], [1], [0, 0, 1, 1], [], []>} : vector<64x64xf32>, vector<64x4xf32>, vector<64x4xf32> -> vector<64x4xf32>
    %c0_5 = arith.constant 0 : index
    %c0_6 = arith.constant 0 : index
    %5 = vector.load %arg4[%c0_5, %c0_6] : memref<4x32xf32, #tpu.memory_space<vmem>>, vector<4x32xf32>
    %cst_7 = arith.constant dense<0.000000e+00> : vector<64x32xf32>
    %6 = tpu.matmul %4, %5, %cst_7 {dimension_numbers = #tpu.dot_dimension_numbers<[1], [0], [0], [1], [0, 0, 1, 1], [], []>} : vector<64x4xf32>, vector<4x32xf32>, vector<64x32xf32> -> vector<64x32xf32>
    %c0_8 = arith.constant 0 : index
    %c0_9 = arith.constant 0 : index
    %7 = vector.load %arg5[%c0_8, %c0_9] : memref<4x32xf32, #tpu.memory_space<vmem>>, vector<4x32xf32>
    %cst_10 = arith.constant dense<0.000000e+00> : vector<64x32xf32>
    %8 = tpu.matmul %3, %7, %cst_10 {dimension_numbers = #tpu.dot_dimension_numbers<[1], [0], [0], [1], [0, 0, 1, 1], [], []>} : vector<64x4xf32>, vector<4x32xf32>, vector<64x32xf32> -> vector<64x32xf32>
    %9 = arith.addf %6, %8 : vector<64x32xf32>
    %c0_11 = arith.constant 0 : index
    %c0_12 = arith.constant 0 : index
    %10 = vector.load %arg6[%c0_11, %c0_12] : memref<1x32xf32, #tpu.memory_space<vmem>>, vector<1x32xf32>
    %11 = vector.broadcast %10 : vector<1x32xf32> to vector<64x32xf32>
    %12 = arith.addf %9, %11 : vector<64x32xf32>
    %cst_13 = arith.constant 0.000000e+00 : f32
    %13 = vector.broadcast %cst_13 : f32 to vector<64x32xf32>
    %14 = arith.maximumf %12, %13 : vector<64x32xf32>
    %cst_14 = arith.constant dense<0.000000e+00> : vector<64x32xf32>
    %15 = tpu.matmul %1, %14, %cst_14 {dimension_numbers = #tpu.dot_dimension_numbers<[1], [0], [0], [1], [0, 0, 1, 1], [], []>} : vector<64x64xf32>, vector<64x32xf32>, vector<64x32xf32> -> vector<64x32xf32>
    %c0_15 = arith.constant 0 : index
    %c0_16 = arith.constant 0 : index
    %16 = vector.load %arg7[%c0_15, %c0_16] : memref<32x4xf32, #tpu.memory_space<vmem>>, vector<32x4xf32>
    %cst_17 = arith.constant dense<0.000000e+00> : vector<64x4xf32>
    %17 = tpu.matmul %15, %16, %cst_17 {dimension_numbers = #tpu.dot_dimension_numbers<[1], [0], [0], [1], [0, 0, 1, 1], [], []>} : vector<64x32xf32>, vector<32x4xf32>, vector<64x4xf32> -> vector<64x4xf32>
    %c0_18 = arith.constant 0 : index
    %c0_19 = arith.constant 0 : index
    %18 = vector.load %arg8[%c0_18, %c0_19] : memref<32x4xf32, #tpu.memory_space<vmem>>, vector<32x4xf32>
    %cst_20 = arith.constant dense<0.000000e+00> : vector<64x4xf32>
    %19 = tpu.matmul %14, %18, %cst_20 {dimension_numbers = #tpu.dot_dimension_numbers<[1], [0], [0], [1], [0, 0, 1, 1], [], []>} : vector<64x32xf32>, vector<32x4xf32>, vector<64x4xf32> -> vector<64x4xf32>
    %20 = arith.addf %17, %19 : vector<64x4xf32>
    %c0_21 = arith.constant 0 : index
    %c0_22 = arith.constant 0 : index
    %21 = vector.load %arg9[%c0_21, %c0_22] : memref<1x4xf32, #tpu.memory_space<vmem>>, vector<1x4xf32>
    %22 = vector.broadcast %21 : vector<1x4xf32> to vector<64x4xf32>
    %23 = arith.addf %20, %22 : vector<64x4xf32>
    %cst_23 = arith.constant 0.000000e+00 : f32
    %24 = vector.broadcast %cst_23 : f32 to vector<64x4xf32>
    %25 = arith.maximumf %23, %24 : vector<64x4xf32>
    %c0_24 = arith.constant 0 : index
    %c0_25 = arith.constant 0 : index
    %c0_26 = arith.constant 0 : index
    %26 = vector.load %arg3[%c0_24, %c0_25, %c0_26] : memref<1x8x1xf32, #tpu.memory_space<vmem>>, vector<1x8x1xf32>
    %27 = vector.shape_cast %26 : vector<1x8x1xf32> to vector<8x1xf32>
    %c0_27 = arith.constant 0 : index
    %c0_28 = arith.constant 0 : index
    %28 = vector.load %arg10[%c0_27, %c0_28] : memref<8x8xf32, #tpu.memory_space<vmem>>, vector<8x8xf32>
    %cst_29 = arith.constant dense<0.000000e+00> : vector<8x1xf32>
    %29 = tpu.matmul %28, %27, %cst_29 {dimension_numbers = #tpu.dot_dimension_numbers<[1], [0], [0], [1], [0, 0, 1, 1], [], []>} : vector<8x8xf32>, vector<8x1xf32>, vector<8x1xf32> -> vector<8x1xf32>
    %c0_30 = arith.constant 0 : index
    %c0_31 = arith.constant 0 : index
    %30 = vector.load %arg11[%c0_30, %c0_31] : memref<8x1xf32, #tpu.memory_space<vmem>>, vector<8x1xf32>
    %31 = arith.addf %29, %30 : vector<8x1xf32>
    %cst_32 = arith.constant 0.000000e+00 : f32
    %32 = vector.broadcast %cst_32 : f32 to vector<8x1xf32>
    %33 = arith.maximumf %31, %32 : vector<8x1xf32>
    %c0_33 = arith.constant 0 : index
    %c0_34 = arith.constant 0 : index
    %34 = vector.load %arg12[%c0_33, %c0_34] : memref<8x8xf32, #tpu.memory_space<vmem>>, vector<8x8xf32>
    %cst_35 = arith.constant dense<0.000000e+00> : vector<8x1xf32>
    %35 = tpu.matmul %34, %33, %cst_35 {dimension_numbers = #tpu.dot_dimension_numbers<[1], [0], [0], [1], [0, 0, 1, 1], [], []>} : vector<8x8xf32>, vector<8x1xf32>, vector<8x1xf32> -> vector<8x1xf32>
    %c0_36 = arith.constant 0 : index
    %c0_37 = arith.constant 0 : index
    %36 = vector.load %arg13[%c0_36, %c0_37] : memref<8x1xf32, #tpu.memory_space<vmem>>, vector<8x1xf32>
    %37 = arith.addf %35, %36 : vector<8x1xf32>
    %cst_38 = arith.constant 0.000000e+00 : f32
    %38 = vector.broadcast %cst_38 : f32 to vector<8x1xf32>
    %39 = arith.maximumf %37, %38 : vector<8x1xf32>
    %c0_39 = arith.constant 0 : index
    %c0_40 = arith.constant 0 : index
    %40 = vector.load %arg14[%c0_39, %c0_40] : memref<8x8xf32, #tpu.memory_space<vmem>>, vector<8x8xf32>
    %cst_41 = arith.constant dense<0.000000e+00> : vector<8x1xf32>
    %41 = tpu.matmul %40, %39, %cst_41 {dimension_numbers = #tpu.dot_dimension_numbers<[1], [0], [0], [1], [0, 0, 1, 1], [], []>} : vector<8x8xf32>, vector<8x1xf32>, vector<8x1xf32> -> vector<8x1xf32>
    %c0_42 = arith.constant 0 : index
    %c0_43 = arith.constant 0 : index
    %42 = vector.load %arg15[%c0_42, %c0_43] : memref<8x1xf32, #tpu.memory_space<vmem>>, vector<8x1xf32>
    %43 = arith.addf %41, %42 : vector<8x1xf32>
    %cst_44 = arith.constant 0.000000e+00 : f32
    %44 = vector.broadcast %cst_44 : f32 to vector<8x1xf32>
    %45 = arith.maximumf %43, %44 : vector<8x1xf32>
    %c0_45 = arith.constant 0 : index
    %c0_46 = arith.constant 0 : index
    %46 = vector.load %arg17[%c0_45, %c0_46] : memref<128x8xf32, #tpu.memory_space<vmem>>, vector<128x8xf32>
    %cst_47 = arith.constant dense<0.000000e+00> : vector<128x1xf32>
    %47 = tpu.matmul %46, %45, %cst_47 {dimension_numbers = #tpu.dot_dimension_numbers<[1], [0], [0], [1], [0, 0, 1, 1], [], []>} : vector<128x8xf32>, vector<8x1xf32>, vector<128x1xf32> -> vector<128x1xf32>
    %c0_48 = arith.constant 0 : index
    %c0_49 = arith.constant 0 : index
    %48 = vector.load %arg18[%c0_48, %c0_49] : memref<128x1xf32, #tpu.memory_space<vmem>>, vector<128x1xf32>
    %49 = arith.addf %47, %48 : vector<128x1xf32>
    %c0_50 = arith.constant 0 : index
    %c0_51 = arith.constant 0 : index
    %c0_52 = arith.constant 0 : index
    %50 = vector.load %arg16[%c0_50, %c0_51, %c0_52] : memref<4x128x64xf32, #tpu.memory_space<vmem>>, vector<1x128x64xf32>
    %51 = vector.shape_cast %50 : vector<1x128x64xf32> to vector<128x64xf32>
    %52 = vector.extract_strided_slice %25 {offsets = [0, 0], sizes = [64, 1], strides = [1, 1]} : vector<64x4xf32> to vector<64x1xf32>
    %cst_53 = arith.constant dense<0.000000e+00> : vector<128x1xf32>
    %53 = tpu.matmul %51, %52, %cst_53 {dimension_numbers = #tpu.dot_dimension_numbers<[1], [0], [0], [1], [0, 0, 1, 1], [], []>} : vector<128x64xf32>, vector<64x1xf32>, vector<128x1xf32> -> vector<128x1xf32>
    %54 = arith.addf %49, %53 : vector<128x1xf32>
    %c1 = arith.constant 1 : index
    %c0_54 = arith.constant 0 : index
    %c0_55 = arith.constant 0 : index
    %55 = vector.load %arg16[%c1, %c0_54, %c0_55] : memref<4x128x64xf32, #tpu.memory_space<vmem>>, vector<1x128x64xf32>
    %56 = vector.shape_cast %55 : vector<1x128x64xf32> to vector<128x64xf32>
    %57 = vector.extract_strided_slice %25 {offsets = [0, 1], sizes = [64, 1], strides = [1, 1]} : vector<64x4xf32> to vector<64x1xf32>
    %cst_56 = arith.constant dense<0.000000e+00> : vector<128x1xf32>
    %58 = tpu.matmul %56, %57, %cst_56 {dimension_numbers = #tpu.dot_dimension_numbers<[1], [0], [0], [1], [0, 0, 1, 1], [], []>} : vector<128x64xf32>, vector<64x1xf32>, vector<128x1xf32> -> vector<128x1xf32>
    %59 = arith.addf %54, %58 : vector<128x1xf32>
    %c2 = arith.constant 2 : index
    %c0_57 = arith.constant 0 : index
    %c0_58 = arith.constant 0 : index
    %60 = vector.load %arg16[%c2, %c0_57, %c0_58] : memref<4x128x64xf32, #tpu.memory_space<vmem>>, vector<1x128x64xf32>
    %61 = vector.shape_cast %60 : vector<1x128x64xf32> to vector<128x64xf32>
    %62 = vector.extract_strided_slice %25 {offsets = [0, 2], sizes = [64, 1], strides = [1, 1]} : vector<64x4xf32> to vector<64x1xf32>
    %cst_59 = arith.constant dense<0.000000e+00> : vector<128x1xf32>
    %63 = tpu.matmul %61, %62, %cst_59 {dimension_numbers = #tpu.dot_dimension_numbers<[1], [0], [0], [1], [0, 0, 1, 1], [], []>} : vector<128x64xf32>, vector<64x1xf32>, vector<128x1xf32> -> vector<128x1xf32>
    %64 = arith.addf %59, %63 : vector<128x1xf32>
    %c3 = arith.constant 3 : index
    %c0_60 = arith.constant 0 : index
    %c0_61 = arith.constant 0 : index
    %65 = vector.load %arg16[%c3, %c0_60, %c0_61] : memref<4x128x64xf32, #tpu.memory_space<vmem>>, vector<1x128x64xf32>
    %66 = vector.shape_cast %65 : vector<1x128x64xf32> to vector<128x64xf32>
    %67 = vector.extract_strided_slice %25 {offsets = [0, 3], sizes = [64, 1], strides = [1, 1]} : vector<64x4xf32> to vector<64x1xf32>
    %cst_62 = arith.constant dense<0.000000e+00> : vector<128x1xf32>
    %68 = tpu.matmul %66, %67, %cst_62 {dimension_numbers = #tpu.dot_dimension_numbers<[1], [0], [0], [1], [0, 0, 1, 1], [], []>} : vector<128x64xf32>, vector<64x1xf32>, vector<128x1xf32> -> vector<128x1xf32>
    %69 = arith.addf %64, %68 : vector<128x1xf32>
    %cst_63 = arith.constant 0.000000e+00 : f32
    %70 = vector.broadcast %cst_63 : f32 to vector<128x1xf32>
    %71 = arith.maximumf %69, %70 : vector<128x1xf32>
    %c0_64 = arith.constant 0 : index
    %c0_65 = arith.constant 0 : index
    %72 = vector.load %arg19[%c0_64, %c0_65] : memref<1x128xf32, #tpu.memory_space<vmem>>, vector<1x128xf32>
    %cst_66 = arith.constant dense<0.000000e+00> : vector<1x1xf32>
    %73 = tpu.matmul %72, %71, %cst_66 {dimension_numbers = #tpu.dot_dimension_numbers<[1], [0], [0], [1], [0, 0, 1, 1], [], []>} : vector<1x128xf32>, vector<128x1xf32>, vector<1x1xf32> -> vector<1x1xf32>
    %c0_67 = arith.constant 0 : index
    %c0_68 = arith.constant 0 : index
    %74 = vector.load %arg20[%c0_67, %c0_68] : memref<1x1xf32, #tpu.memory_space<vmem>>, vector<1x1xf32>
    %75 = arith.addf %73, %74 : vector<1x1xf32>
    %76 = arith.negf %75 : vector<1x1xf32>
    %77 = math.exp %76 : vector<1x1xf32>
    %cst_69 = arith.constant 1.000000e+00 : f32
    %78 = vector.broadcast %cst_69 : f32 to vector<1x1xf32>
    %79 = arith.addf %78, %77 : vector<1x1xf32>
    %80 = arith.divf %78, %79 : vector<1x1xf32>
    %c0_70 = arith.constant 0 : index
    %c0_71 = arith.constant 0 : index
    %c0_72 = arith.constant 0 : index
    %81 = vector.load %arg21[%c0_70, %c0_71, %c0_72] : memref<1x1x1xf32, #tpu.memory_space<vmem>>, vector<1x1x1xf32>
    %82 = vector.shape_cast %81 : vector<1x1x1xf32> to vector<1x1xf32>
    %83 = vector.shape_cast %80 : vector<1x1xf32> to vector<1x1x1xf32>
    tpu.vector_store %arg21[%c0_70, %c0_71, %c0_72], %83 {strides = array<i32>} : memref<1x1x1xf32, #tpu.memory_space<vmem>>, vector<1x1x1xf32>,
    return
  }
  func.func @transform_0(%arg0: i32) -> (i32, i32, i32) {
    %c0_i32 = arith.constant 0 : i32
    %c0_i32_0 = arith.constant 0 : i32
    %c0_i32_1 = arith.constant 0 : i32
    return %arg0, %c0_i32, %c0_i32_0 : i32, i32, i32
  }
  func.func @transform_1(%arg0: i32) -> (i32, i32, i32) {
    %c0_i32 = arith.constant 0 : i32
    %c0_i32_0 = arith.constant 0 : i32
    %c0_i32_1 = arith.constant 0 : i32
    return %arg0, %c0_i32, %c0_i32_0 : i32, i32, i32
  }
  func.func @transform_2(%arg0: i32) -> (i32, i32, i32) {
    %c0_i32 = arith.constant 0 : i32
    %c0_i32_0 = arith.constant 0 : i32
    %c0_i32_1 = arith.constant 0 : i32
    return %arg0, %c0_i32, %c0_i32_0 : i32, i32, i32
  }
  func.func @transform_3(%arg0: i32) -> (i32, i32) {
    %c0_i32 = arith.constant 0 : i32
    %c0_i32_0 = arith.constant 0 : i32
    %c0_i32_1 = arith.constant 0 : i32
    return %c0_i32, %c0_i32_0 : i32, i32
  }
  func.func @transform_4(%arg0: i32) -> (i32, i32) {
    %c0_i32 = arith.constant 0 : i32
    %c0_i32_0 = arith.constant 0 : i32
    %c0_i32_1 = arith.constant 0 : i32
    return %c0_i32, %c0_i32_0 : i32, i32
  }
  func.func @transform_5(%arg0: i32) -> (i32, i32) {
    %c0_i32 = arith.constant 0 : i32
    %c0_i32_0 = arith.constant 0 : i32
    %c0_i32_1 = arith.constant 0 : i32
    return %c0_i32, %c0_i32_0 : i32, i32
  }
  func.func @transform_6(%arg0: i32) -> (i32, i32) {
    %c0_i32 = arith.constant 0 : i32
    %c0_i32_0 = arith.constant 0 : i32
    %c0_i32_1 = arith.constant 0 : i32
    return %c0_i32, %c0_i32_0 : i32, i32
  }
  func.func @transform_7(%arg0: i32) -> (i32, i32) {
    %c0_i32 = arith.constant 0 : i32
    %c0_i32_0 = arith.constant 0 : i32
    %c0_i32_1 = arith.constant 0 : i32
    return %c0_i32, %c0_i32_0 : i32, i32
  }
  func.func @transform_8(%arg0: i32) -> (i32, i32) {
    %c0_i32 = arith.constant 0 : i32
    %c0_i32_0 = arith.constant 0 : i32
    %c0_i32_1 = arith.constant 0 : i32
    return %c0_i32, %c0_i32_0 : i32, i32
  }
  func.func @transform_9(%arg0: i32) -> (i32, i32) {
    %c0_i32 = arith.constant 0 : i32
    %c0_i32_0 = arith.constant 0 : i32
    %c0_i32_1 = arith.constant 0 : i32
    return %c0_i32, %c0_i32_0 : i32, i32
  }
  func.func @transform_10(%arg0: i32) -> (i32, i32) {
    %c0_i32 = arith.constant 0 : i32
    %c0_i32_0 = arith.constant 0 : i32
    %c0_i32_1 = arith.constant 0 : i32
    return %c0_i32, %c0_i32_0 : i32, i32
  }
  func.func @transform_11(%arg0: i32) -> (i32, i32) {
    %c0_i32 = arith.constant 0 : i32
    %c0_i32_0 = arith.constant 0 : i32
    %c0_i32_1 = arith.constant 0 : i32
    return %c0_i32, %c0_i32_0 : i32, i32
  }
  func.func @transform_12(%arg0: i32) -> (i32, i32) {
    %c0_i32 = arith.constant 0 : i32
    %c0_i32_0 = arith.constant 0 : i32
    %c0_i32_1 = arith.constant 0 : i32
    return %c0_i32, %c0_i32_0 : i32, i32
  }
  func.func @transform_13(%arg0: i32) -> (i32, i32) {
    %c0_i32 = arith.constant 0 : i32
    %c0_i32_0 = arith.constant 0 : i32
    %c0_i32_1 = arith.constant 0 : i32
    return %c0_i32, %c0_i32_0 : i32, i32
  }
  func.func @transform_14(%arg0: i32) -> (i32, i32) {
    %c0_i32 = arith.constant 0 : i32
    %c0_i32_0 = arith.constant 0 : i32
    %c0_i32_1 = arith.constant 0 : i32
    return %c0_i32, %c0_i32_0 : i32, i32
  }
  func.func @transform_15(%arg0: i32) -> (i32, i32, i32) {
    %c0_i32 = arith.constant 0 : i32
    %c0_i32_0 = arith.constant 0 : i32
    %c0_i32_1 = arith.constant 0 : i32
    %c0_i32_2 = arith.constant 0 : i32
    return %c0_i32, %c0_i32_0, %c0_i32_1 : i32, i32, i32
  }
  func.func @transform_16(%arg0: i32) -> (i32, i32) {
    %c0_i32 = arith.constant 0 : i32
    %c0_i32_0 = arith.constant 0 : i32
    %c0_i32_1 = arith.constant 0 : i32
    return %c0_i32, %c0_i32_0 : i32, i32
  }
  func.func @transform_17(%arg0: i32) -> (i32, i32) {
    %c0_i32 = arith.constant 0 : i32
    %c0_i32_0 = arith.constant 0 : i32
    %c0_i32_1 = arith.constant 0 : i32
    return %c0_i32, %c0_i32_0 : i32, i32
  }
  func.func @transform_18(%arg0: i32) -> (i32, i32) {
    %c0_i32 = arith.constant 0 : i32
    %c0_i32_0 = arith.constant 0 : i32
    %c0_i32_1 = arith.constant 0 : i32
    return %c0_i32, %c0_i32_0 : i32, i32
  }
  func.func @transform_19(%arg0: i32) -> (i32, i32) {
    %c0_i32 = arith.constant 0 : i32
    %c0_i32_0 = arith.constant 0 : i32
    %c0_i32_1 = arith.constant 0 : i32
    return %c0_i32, %c0_i32_0 : i32, i32
  }
  func.func @transform_20(%arg0: i32) -> (i32, i32, i32) {
    %c0_i32 = arith.constant 0 : i32
    %c0_i32_0 = arith.constant 0 : i32
    %c0_i32_1 = arith.constant 0 : i32
    return %arg0, %c0_i32, %c0_i32_0 : i32, i32, i32
  }
}

</mosaic_0001>

<llo_original>
// kernel: tpu_custom_call.1
$region0: #{tpu_custom_call.1}
  #allocation0 [shape = 'u32[]', space=smem, size = 0x4, offset = 0x4, fixed_abs, tag = 'smem constant byte address 0x4 - core index']
  #allocation1 [shape = 'u32[144,128]{1,0:T(1,128)}', space=vmem, size = 0x12000, scoped, tag = 'internal scratch']
  #allocation2 [shape = 'f32[1,1]{1,0:T(1,128)S(1)}', space=vmem, size = 0x200, scoped, tag = 'scoped memory for tpu_custom_call.1']
  %s0 = inlined_call_operand.vmem [shape: f32[2,64,64], index: 0, kind: input, shape index: {}]
  %s1 = inlined_call_operand.vmem [shape: f32[2,64,4], index: 1, kind: input, shape index: {}]
  %s2 = inlined_call_operand.vmem [shape: f32[2,8,1], index: 2, kind: input, shape index: {}]
  %s3 = inlined_call_operand.vmem [shape: f32[4,32], index: 3, kind: input, shape index: {}]
  %s4 = inlined_call_operand.vmem [shape: f32[4,32], index: 4, kind: input, shape index: {}]
  %s5 = inlined_call_operand.vmem [shape: f32[1,32], index: 5, kind: input, shape index: {}]
  %s6 = inlined_call_operand.vmem [shape: f32[32,4], index: 6, kind: input, shape index: {}]
  %s7 = inlined_call_operand.vmem [shape: f32[32,4], index: 7, kind: input, shape index: {}]
  %s8 = inlined_call_operand.vmem [shape: f32[1,4], index: 8, kind: input, shape index: {}]
  %s9 = inlined_call_operand.vmem [shape: f32[8,8], index: 9, kind: input, shape index: {}]
  %s10 = inlined_call_operand.vmem [shape: f32[8,1], index: 10, kind: input, shape index: {}]
  %s11 = inlined_call_operand.vmem [shape: f32[8,8], index: 11, kind: input, shape index: {}]
  %s12 = inlined_call_operand.vmem [shape: f32[8,1], index: 12, kind: input, shape index: {}]
  %s13 = inlined_call_operand.vmem [shape: f32[8,8], index: 13, kind: input, shape index: {}]
  %s14 = inlined_call_operand.vmem [shape: f32[8,1], index: 14, kind: input, shape index: {}]
  %s15 = inlined_call_operand.vmem [shape: f32[4,128,64], index: 15, kind: input, shape index: {}]
  %s16 = inlined_call_operand.vmem [shape: f32[128,8], index: 16, kind: input, shape index: {}]
  %s17 = inlined_call_operand.vmem [shape: f32[128,1], index: 17, kind: input, shape index: {}]
  %s18 = inlined_call_operand.vmem [shape: f32[1,128], index: 18, kind: input, shape index: {}]
  %s19 = inlined_call_operand.<no memory space> [shape: f32[1,1], index: 19, kind: input, shape index: {}]
  %s20 = inlined_call_operand.vmem [shape: f32[2,1,1], index: 20, kind: output, shape index: {}]
  %s21 = sld [smem:[#allocation0]]
  $region113: #{tpu_custom_call.1} parent=0
    _
  %s23 = ssub.s32 1, %s21
  %s24 = scalar_select 0, %s23, %s21
  %v25 = vstv %s19
  %26 = vst [vmem:[#allocation2] sm:$0x1] %v25
  loop: start=0, step=1, limit=4
  $region2: #{tpu_custom_call.1} parent=0 // loop_pre_header
    _
  $region3: #{tpu_custom_call.1} parent=0 // loop_header
    %s28 = sphi 0, %s32
    %p29 = scmp.ge.s32.totalorder %s28, 4
    %s38 = sphi 0, %s40
    %s41 = sphi 0, %s38
    %s42 = sphi 0, %s41
    %s58 = sphi 0, %s42
    %s64 = sphi 0, %s66
    %s67 = sphi 0, %s64
    %s68 = sphi 0, %s67
    %s84 = sphi 0, %s68
    %s90 = sphi 0, %s92
    %s93 = sphi 0, %s90
    %s94 = sphi 0, %s93
    %s110 = sphi 0, %s94
    %s114 = sphi 0, %s114
    %s116 = sphi 0, %s114
    %s117 = sphi 0, %s116
    %s131 = sphi 0, %s117
    %s135 = sphi 0, %s135
    %s137 = sphi 0, %s135
    %s138 = sphi 0, %s137
    %s152 = sphi 0, %s138
    %s156 = sphi 0, %s156
    %s158 = sphi 0, %s156
    %s159 = sphi 0, %s158
    %s173 = sphi 0, %s159
    %s177 = sphi 0, %s177
    %s179 = sphi 0, %s177
    %s180 = sphi 0, %s179
    %s194 = sphi 0, %s180
    %s198 = sphi 0, %s198
    %s200 = sphi 0, %s198
    %s201 = sphi 0, %s200
    %s215 = sphi 0, %s201
    %s219 = sphi 0, %s219
    %s221 = sphi 0, %s219
    %s222 = sphi 0, %s221
    %s236 = sphi 0, %s222
    %s240 = sphi 0, %s240
    %s242 = sphi 0, %s240
    %s243 = sphi 0, %s242
    %s257 = sphi 0, %s243
    %s261 = sphi 0, %s261
    %s263 = sphi 0, %s261
    %s264 = sphi 0, %s263
    %s278 = sphi 0, %s264
    %s282 = sphi 0, %s282
    %s284 = sphi 0, %s282
    %s285 = sphi 0, %s284
    %s299 = sphi 0, %s285
    %s303 = sphi 0, %s303
    %s305 = sphi 0, %s303
    %s306 = sphi 0, %s305
    %s320 = sphi 0, %s306
    %s324 = sphi 0, %s324
    %s326 = sphi 0, %s324
    %s327 = sphi 0, %s326
    %s341 = sphi 0, %s327
    %s345 = sphi 0, %s345
    %s347 = sphi 0, %s345
    %s348 = sphi 0, %s347
    %s362 = sphi 0, %s348
    %s366 = sphi 0, %s366
    %s368 = sphi 0, %s366
    %s369 = sphi 0, %s368
    %s383 = sphi 0, %s369
    %s387 = sphi 0, %s387
    %s389 = sphi 0, %s387
    %s390 = sphi 0, %s389
    %s404 = sphi 0, %s390
    %s408 = sphi 0, %s408
    %s410 = sphi 0, %s408
    %s411 = sphi 0, %s410
    %s425 = sphi 0, %s411
    %s429 = sphi 0, %s429
    %s431 = sphi 0, %s429
    %s432 = sphi 0, %s431
    %s446 = sphi 0, %s432
    %s450 = sphi 0, %s450
    %s452 = sphi 0, %s450
    %s453 = sphi 0, %s452
    %s467 = sphi 0, %s453
    %s473 = sphi 0, %s475
    %s476 = sphi 0, %s473
    %s477 = sphi 0, %s476
    %s493 = sphi 0, %s477
  $region4: #{tpu_custom_call.1} parent=0 // loop_header_branch
    %31 = sbr.rel (%p29) target = $region8
  $region5: #{tpu_custom_call.1} parent=0 // loop_body
    %s33 = ssub.s32 %s28, 1
    %s34 = ssub.s32 %s28, 2
    %s35 = sadd.s32 %s28, 1
    %s36 = ssub.s32 %s28, %s35
    %p37 = scmp.eq.s32.totalorder %s36, 0
    %s39 = sadd.s32 %s38, 1
    %s40 = scalar_select %p37, %s38, %s39
    %p43 = pneg %p37
    %p44 = scmp.eq.s32.totalorder %s28, 1
    %p45 = por %p43, %p44
    %p46 = scmp.ne.s32.totalorder %s38, %s41
    %p47 = scmp.eq.s32.totalorder %s28, 0
    %p48 = por %p46, %p47
    %p49 = scmp.ne.s32.totalorder %s38, %s41
    %p50 = scmp.eq.s32.totalorder %s33, 1
    %p51 = por %p49, %p50
    %p52 = scmp.ne.s32.totalorder %s41, %s42
    %p53 = scmp.eq.s32.totalorder %s33, 0
    %p54 = por %p52, %p53
    %p55 = scmp.ne.s32.totalorder %s41, %s42
    %p56 = scmp.eq.s32.totalorder %s34, 1
    %p57 = por %p55, %p56
    %p59 = scmp.ne.s32.totalorder %s42, %s58
    %p60 = scmp.eq.s32.totalorder %s34, 0
    %p61 = por %p59, %p60
    %s62 = ssub.s32 %s28, %s35
    %p63 = scmp.eq.s32.totalorder %s62, 0
    %s65 = sadd.s32 %s64, 1
    %s66 = scalar_select %p63, %s64, %s65
    %p69 = pneg %p63
    %p70 = scmp.eq.s32.totalorder %s28, 1
    %p71 = por %p69, %p70
    %p72 = scmp.ne.s32.totalorder %s64, %s67
    %p73 = scmp.eq.s32.totalorder %s28, 0
    %p74 = por %p72, %p73
    %p75 = scmp.ne.s32.totalorder %s64, %s67
    %p76 = scmp.eq.s32.totalorder %s33, 1
    %p77 = por %p75, %p76
    %p78 = scmp.ne.s32.totalorder %s67, %s68
    %p79 = scmp.eq.s32.totalorder %s33, 0
    %p80 = por %p78, %p79
    %p81 = scmp.ne.s32.totalorder %s67, %s68
    %p82 = scmp.eq.s32.totalorder %s34, 1
    %p83 = por %p81, %p82
    %p85 = scmp.ne.s32.totalorder %s68, %s84
    %p86 = scmp.eq.s32.totalorder %s34, 0
    %p87 = por %p85, %p86
    %s88 = ssub.s32 %s28, %s35
    %p89 = scmp.eq.s32.totalorder %s88, 0
    %s91 = sadd.s32 %s90, 1
    %s92 = scalar_select %p89, %s90, %s91
    %p95 = pneg %p89
    %p96 = scmp.eq.s32.totalorder %s28, 1
    %p97 = por %p95, %p96
    %p98 = scmp.ne.s32.totalorder %s90, %s93
    %p99 = scmp.eq.s32.totalorder %s28, 0
    %p100 = por %p98, %p99
    %p101 = scmp.ne.s32.totalorder %s90, %s93
    %p102 = scmp.eq.s32.totalorder %s33, 1
    %p103 = por %p101, %p102
    %p104 = scmp.ne.s32.totalorder %s93, %s94
    %p105 = scmp.eq.s32.totalorder %s33, 0
    %p106 = por %p104, %p105
    %p107 = scmp.ne.s32.totalorder %s93, %s94
    %p108 = scmp.eq.s32.totalorder %s34, 1
    %p109 = por %p107, %p108
    %p111 = scmp.ne.s32.totalorder %s94, %s110
    %p112 = scmp.eq.s32.totalorder %s34, 0
    %p113 = por %p111, %p112
    %s115 = sadd.s32 %s114, 1
    %p118 = scmp.eq.s32.totalorder %s28, 1
    %p119 = scmp.ne.s32.totalorder %s114, %s116
    %p120 = scmp.eq.s32.totalorder %s28, 0
    %p121 = por %p119, %p120
    %p122 = scmp.ne.s32.totalorder %s114, %s116
    %p123 = scmp.eq.s32.totalorder %s33, 1
    %p124 = por %p122, %p123
    %p125 = scmp.ne.s32.totalorder %s116, %s117
    %p126 = scmp.eq.s32.totalorder %s33, 0
    %p127 = por %p125, %p126
    %p128 = scmp.ne.s32.totalorder %s116, %s117
    %p129 = scmp.eq.s32.totalorder %s34, 1
    %p130 = por %p128, %p129
    %p132 = scmp.ne.s32.totalorder %s117, %s131
    %p133 = scmp.eq.s32.totalorder %s34, 0
    %p134 = por %p132, %p133
    %s136 = sadd.s32 %s135, 1
    %p139 = scmp.eq.s32.totalorder %s28, 1
    %p140 = scmp.ne.s32.totalorder %s135, %s137
    %p141 = scmp.eq.s32.totalorder %s28, 0
    %p142 = por %p140, %p141
    %p143 = scmp.ne.s32.totalorder %s135, %s137
    %p144 = scmp.eq.s32.totalorder %s33, 1
    %p145 = por %p143, %p144
    %p146 = scmp.ne.s32.totalorder %s137, %s138
    %p147 = scmp.eq.s32.totalorder %s33, 0
    %p148 = por %p146, %p147
    %p149 = scmp.ne.s32.totalorder %s137, %s138
    %p150 = scmp.eq.s32.totalorder %s34, 1
    %p151 = por %p149, %p150
    %p153 = scmp.ne.s32.totalorder %s138, %s152
    %p154 = scmp.eq.s32.totalorder %s34, 0
    %p155 = por %p153, %p154
    %s157 = sadd.s32 %s156, 1
    %p160 = scmp.eq.s32.totalorder %s28, 1
    %p161 = scmp.ne.s32.totalorder %s156, %s158
    %p162 = scmp.eq.s32.totalorder %s28, 0
    %p163 = por %p161, %p162
    %p164 = scmp.ne.s32.totalorder %s156, %s158
    %p165 = scmp.eq.s32.totalorder %s33, 1
    %p166 = por %p164, %p165
    %p167 = scmp.ne.s32.totalorder %s158, %s159
    %p168 = scmp.eq.s32.totalorder %s33, 0
    %p169 = por %p167, %p168
    %p170 = scmp.ne.s32.totalorder %s158, %s159
    %p171 = scmp.eq.s32.totalorder %s34, 1
    %p172 = por %p170, %p171
    %p174 = scmp.ne.s32.totalorder %s159, %s173
    %p175 = scmp.eq.s32.totalorder %s34, 0
    %p176 = por %p174, %p175
    %s178 = sadd.s32 %s177, 1
    %p181 = scmp.eq.s32.totalorder %s28, 1
    %p182 = scmp.ne.s32.totalorder %s177, %s179
    %p183 = scmp.eq.s32.totalorder %s28, 0
    %p184 = por %p182, %p183
    %p185 = scmp.ne.s32.totalorder %s177, %s179
    %p186 = scmp.eq.s32.totalorder %s33, 1
    %p187 = por %p185, %p186
    %p188 = scmp.ne.s32.totalorder %s179, %s180
    %p189 = scmp.eq.s32.totalorder %s33, 0
    %p190 = por %p188, %p189
    %p191 = scmp.ne.s32.totalorder %s179, %s180
    %p192 = scmp.eq.s32.totalorder %s34, 1
    %p193 = por %p191, %p192
    %p195 = scmp.ne.s32.totalorder %s180, %s194
    %p196 = scmp.eq.s32.totalorder %s34, 0
    %p197 = por %p195, %p196
    %s199 = sadd.s32 %s198, 1
    %p202 = scmp.eq.s32.totalorder %s28, 1
    %p203 = scmp.ne.s32.totalorder %s198, %s200
    %p204 = scmp.eq.s32.totalorder %s28, 0
    %p205 = por %p203, %p204
    %p206 = scmp.ne.s32.totalorder %s198, %s200
    %p207 = scmp.eq.s32.totalorder %s33, 1
    %p208 = por %p206, %p207
    %p209 = scmp.ne.s32.totalorder %s200, %s201
    %p210 = scmp.eq.s32.totalorder %s33, 0
    %p211 = por %p209, %p210
    %p212 = scmp.ne.s32.totalorder %s200, %s201
    %p213 = scmp.eq.s32.totalorder %s34, 1
    %p214 = por %p212, %p213
    %p216 = scmp.ne.s32.totalorder %s201, %s215
    %p217 = scmp.eq.s32.totalorder %s34, 0
    %p218 = por %p216, %p217
    %s220 = sadd.s32 %s219, 1
    %p223 = scmp.eq.s32.totalorder %s28, 1
    %p224 = scmp.ne.s32.totalorder %s219, %s221
    %p225 = scmp.eq.s32.totalorder %s28, 0
    %p226 = por %p224, %p225
    %p227 = scmp.ne.s32.totalorder %s219, %s221
    %p228 = scmp.eq.s32.totalorder %s33, 1
    %p229 = por %p227, %p228
    %p230 = scmp.ne.s32.totalorder %s221, %s222
    %p231 = scmp.eq.s32.totalorder %s33, 0
    %p232 = por %p230, %p231
    %p233 = scmp.ne.s32.totalorder %s221, %s222
    %p234 = scmp.eq.s32.totalorder %s34, 1
    %p235 = por %p233, %p234
    %p237 = scmp.ne.s32.totalorder %s222, %s236
    %p238 = scmp.eq.s32.totalorder %s34, 0
    %p239 = por %p237, %p238
    %s241 = sadd.s32 %s240, 1
    %p244 = scmp.eq.s32.totalorder %s28, 1
    %p245 = scmp.ne.s32.totalorder %s240, %s242
    %p246 = scmp.eq.s32.totalorder %s28, 0
    %p247 = por %p245, %p246
    %p248 = scmp.ne.s32.totalorder %s240, %s242
    %p249 = scmp.eq.s32.totalorder %s33, 1
    %p250 = por %p248, %p249
    %p251 = scmp.ne.s32.totalorder %s242, %s243
    %p252 = scmp.eq.s32.totalorder %s33, 0
    %p253 = por %p251, %p252
    %p254 = scmp.ne.s32.totalorder %s242, %s243
    %p255 = scmp.eq.s32.totalorder %s34, 1
    %p256 = por %p254, %p255
    %p258 = scmp.ne.s32.totalorder %s243, %s257
    %p259 = scmp.eq.s32.totalorder %s34, 0
    %p260 = por %p258, %p259
    %s262 = sadd.s32 %s261, 1
    %p265 = scmp.eq.s32.totalorder %s28, 1
    %p266 = scmp.ne.s32.totalorder %s261, %s263
    %p267 = scmp.eq.s32.totalorder %s28, 0
    %p268 = por %p266, %p267
    %p269 = scmp.ne.s32.totalorder %s261, %s263
    %p270 = scmp.eq.s32.totalorder %s33, 1
    %p271 = por %p269, %p270
    %p272 = scmp.ne.s32.totalorder %s263, %s264
    %p273 = scmp.eq.s32.totalorder %s33, 0
    %p274 = por %p272, %p273
    %p275 = scmp.ne.s32.totalorder %s263, %s264
    %p276 = scmp.eq.s32.totalorder %s34, 1
    %p277 = por %p275, %p276
    %p279 = scmp.ne.s32.totalorder %s264, %s278
    %p280 = scmp.eq.s32.totalorder %s34, 0
    %p281 = por %p279, %p280
    %s283 = sadd.s32 %s282, 1
    %p286 = scmp.eq.s32.totalorder %s28, 1
    %p287 = scmp.ne.s32.totalorder %s282, %s284
    %p288 = scmp.eq.s32.totalorder %s28, 0
    %p289 = por %p287, %p288
    %p290 = scmp.ne.s32.totalorder %s282, %s284
    %p291 = scmp.eq.s32.totalorder %s33, 1
    %p292 = por %p290, %p291
    %p293 = scmp.ne.s32.totalorder %s284, %s285
    %p294 = scmp.eq.s32.totalorder %s33, 0
    %p295 = por %p293, %p294
    %p296 = scmp.ne.s32.totalorder %s284, %s285
    %p297 = scmp.eq.s32.totalorder %s34, 1
    %p298 = por %p296, %p297
    %p300 = scmp.ne.s32.totalorder %s285, %s299
    %p301 = scmp.eq.s32.totalorder %s34, 0
    %p302 = por %p300, %p301
    %s304 = sadd.s32 %s303, 1
    %p307 = scmp.eq.s32.totalorder %s28, 1
    %p308 = scmp.ne.s32.totalorder %s303, %s305
    %p309 = scmp.eq.s32.totalorder %s28, 0
    %p310 = por %p308, %p309
    %p311 = scmp.ne.s32.totalorder %s303, %s305
    %p312 = scmp.eq.s32.totalorder %s33, 1
    %p313 = por %p311, %p312
    %p314 = scmp.ne.s32.totalorder %s305, %s306
    %p315 = scmp.eq.s32.totalorder %s33, 0
    %p316 = por %p314, %p315
    %p317 = scmp.ne.s32.totalorder %s305, %s306
    %p318 = scmp.eq.s32.totalorder %s34, 1
    %p319 = por %p317, %p318
    %p321 = scmp.ne.s32.totalorder %s306, %s320
    %p322 = scmp.eq.s32.totalorder %s34, 0
    %p323 = por %p321, %p322
    %s325 = sadd.s32 %s324, 1
    %p328 = scmp.eq.s32.totalorder %s28, 1
    %p329 = scmp.ne.s32.totalorder %s324, %s326
    %p330 = scmp.eq.s32.totalorder %s28, 0
    %p331 = por %p329, %p330
    %p332 = scmp.ne.s32.totalorder %s324, %s326
    %p333 = scmp.eq.s32.totalorder %s33, 1
    %p334 = por %p332, %p333
    %p335 = scmp.ne.s32.totalorder %s326, %s327
    %p336 = scmp.eq.s32.totalorder %s33, 0
    %p337 = por %p335, %p336
    %p338 = scmp.ne.s32.totalorder %s326, %s327
    %p339 = scmp.eq.s32.totalorder %s34, 1
    %p340 = por %p338, %p339
    %p342 = scmp.ne.s32.totalorder %s327, %s341
    %p343 = scmp.eq.s32.totalorder %s34, 0
    %p344 = por %p342, %p343
    %s346 = sadd.s32 %s345, 1
    %p349 = scmp.eq.s32.totalorder %s28, 1
    %p350 = scmp.ne.s32.totalorder %s345, %s347
    %p351 = scmp.eq.s32.totalorder %s28, 0
    %p352 = por %p350, %p351
    %p353 = scmp.ne.s32.totalorder %s345, %s347
    %p354 = scmp.eq.s32.totalorder %s33, 1
    %p355 = por %p353, %p354
    %p356 = scmp.ne.s32.totalorder %s347, %s348
    %p357 = scmp.eq.s32.totalorder %s33, 0
    %p358 = por %p356, %p357
    %p359 = scmp.ne.s32.totalorder %s347, %s348
    %p360 = scmp.eq.s32.totalorder %s34, 1
    %p361 = por %p359, %p360
    %p363 = scmp.ne.s32.totalorder %s348, %s362
    %p364 = scmp.eq.s32.totalorder %s34, 0
    %p365 = por %p363, %p364
    %s367 = sadd.s32 %s366, 1
    %p370 = scmp.eq.s32.totalorder %s28, 1
    %p371 = scmp.ne.s32.totalorder %s366, %s368
    %p372 = scmp.eq.s32.totalorder %s28, 0
    %p373 = por %p371, %p372
    %p374 = scmp.ne.s32.totalorder %s366, %s368
    %p375 = scmp.eq.s32.totalorder %s33, 1
    %p376 = por %p374, %p375
    %p377 = scmp.ne.s32.totalorder %s368, %s369
    %p378 = scmp.eq.s32.totalorder %s33, 0
    %p379 = por %p377, %p378
    %p380 = scmp.ne.s32.totalorder %s368, %s369
    %p381 = scmp.eq.s32.totalorder %s34, 1
    %p382 = por %p380, %p381
    %p384 = scmp.ne.s32.totalorder %s369, %s383
    %p385 = scmp.eq.s32.totalorder %s34, 0
    %p386 = por %p384, %p385
    %s388 = sadd.s32 %s387, 1
    %p391 = scmp.eq.s32.totalorder %s28, 1
    %p392 = scmp.ne.s32.totalorder %s387, %s389
    %p393 = scmp.eq.s32.totalorder %s28, 0
    %p394 = por %p392, %p393
    %p395 = scmp.ne.s32.totalorder %s387, %s389
    %p396 = scmp.eq.s32.totalorder %s33, 1
    %p397 = por %p395, %p396
    %p398 = scmp.ne.s32.totalorder %s389, %s390
    %p399 = scmp.eq.s32.totalorder %s33, 0
    %p400 = por %p398, %p399
    %p401 = scmp.ne.s32.totalorder %s389, %s390
    %p402 = scmp.eq.s32.totalorder %s34, 1
    %p403 = por %p401, %p402
    %p405 = scmp.ne.s32.totalorder %s390, %s404
    %p406 = scmp.eq.s32.totalorder %s34, 0
    %p407 = por %p405, %p406
    %s409 = sadd.s32 %s408, 1
    %p412 = scmp.eq.s32.totalorder %s28, 1
    %p413 = scmp.ne.s32.totalorder %s408, %s410
    %p414 = scmp.eq.s32.totalorder %s28, 0
    %p415 = por %p413, %p414
    %p416 = scmp.ne.s32.totalorder %s408, %s410
    %p417 = scmp.eq.s32.totalorder %s33, 1
    %p418 = por %p416, %p417
    %p419 = scmp.ne.s32.totalorder %s410, %s411
    %p420 = scmp.eq.s32.totalorder %s33, 0
    %p421 = por %p419, %p420
    %p422 = scmp.ne.s32.totalorder %s410, %s411
    %p423 = scmp.eq.s32.totalorder %s34, 1
    %p424 = por %p422, %p423
    %p426 = scmp.ne.s32.totalorder %s411, %s425
    %p427 = scmp.eq.s32.totalorder %s34, 0
    %p428 = por %p426, %p427
    %s430 = sadd.s32 %s429, 1
    %p433 = scmp.eq.s32.totalorder %s28, 1
    %p434 = scmp.ne.s32.totalorder %s429, %s431
    %p435 = scmp.eq.s32.totalorder %s28, 0
    %p436 = por %p434, %p435
    %p437 = scmp.ne.s32.totalorder %s429, %s431
    %p438 = scmp.eq.s32.totalorder %s33, 1
    %p439 = por %p437, %p438
    %p440 = scmp.ne.s32.totalorder %s431, %s432
    %p441 = scmp.eq.s32.totalorder %s33, 0
    %p442 = por %p440, %p441
    %p443 = scmp.ne.s32.totalorder %s431, %s432
    %p444 = scmp.eq.s32.totalorder %s34, 1
    %p445 = por %p443, %p444
    %p447 = scmp.ne.s32.totalorder %s432, %s446
    %p448 = scmp.eq.s32.totalorder %s34, 0
    %p449 = por %p447, %p448
    %s451 = sadd.s32 %s450, 1
    %p454 = scmp.eq.s32.totalorder %s28, 1
    %p455 = scmp.ne.s32.totalorder %s450, %s452
    %p456 = scmp.eq.s32.totalorder %s28, 0
    %p457 = por %p455, %p456
    %p458 = scmp.ne.s32.totalorder %s450, %s452
    %p459 = scmp.eq.s32.totalorder %s33, 1
    %p460 = por %p458, %p459
    %p461 = scmp.ne.s32.totalorder %s452, %s453
    %p462 = scmp.eq.s32.totalorder %s33, 0
    %p463 = por %p461, %p462
    %p464 = scmp.ne.s32.totalorder %s452, %s453
    %p465 = scmp.eq.s32.totalorder %s34, 1
    %p466 = por %p464, %p465
    %p468 = scmp.ne.s32.totalorder %s453, %s467
    %p469 = scmp.eq.s32.totalorder %s34, 0
    %p470 = por %p468, %p469
    %s471 = ssub.s32 %s28, %s35
    %p472 = scmp.eq.s32.totalorder %s471, 0
    %s474 = sadd.s32 %s473, 1
    %s475 = scalar_select %p472, %s473, %s474
    %p478 = pneg %p472
    %p479 = scmp.eq.s32.totalorder %s28, 1
    %p480 = por %p478, %p479
    %p481 = scmp.ne.s32.totalorder %s473, %s476
    %p482 = scmp.eq.s32.totalorder %s28, 0
    %p483 = por %p481, %p482
    %p484 = scmp.ne.s32.totalorder %s473, %s476
    %p485 = scmp.eq.s32.totalorder %s33, 1
    %p486 = por %p484, %p485
    %p487 = scmp.ne.s32.totalorder %s476, %s477
    %p488 = scmp.eq.s32.totalorder %s33, 0
    %p489 = por %p487, %p488
    %p490 = scmp.ne.s32.totalorder %s476, %s477
    %p491 = scmp.eq.s32.totalorder %s34, 1
    %p492 = por %p490, %p491
    %p494 = scmp.ne.s32.totalorder %s477, %s493
    %p495 = scmp.eq.s32.totalorder %s34, 0
    %p496 = por %p494, %p495
    %p497 = scmp.le.s32.totalorder 1, %s28
    %p498 = scmp.lt.s32.totalorder %s28, 3
    %p499 = pnand %p497, %p498
    %p500 = pneg %p499
    // Predicated region
    $region9: #{tpu_custom_call.1} parent=5 // pred_check
      _
    $region10: #{tpu_custom_call.1} parent=5 // pred_check_branch
      %502 = sbr.rel (%p499) target = $region12
    $region11: #{tpu_custom_call.1} parent=5 // pred_region
      %s503 = ssub.s32 %s28, 1
      // Predicated region
      $region13: #{tpu_custom_call.1} parent=11 // pred_check
        %p504 = pneg %p127
      $region14: #{tpu_custom_call.1} parent=11 // pred_check_branch
        %506 = sbr.rel (%p504) target = $region16
      $region15: #{tpu_custom_call.1} parent=11 // pred_region
        _
      $region16: #{tpu_custom_call.1} parent=11 // pred_fallthru
        _
      // Predicated region
      $region17: #{tpu_custom_call.1} parent=11 // pred_check
        %p507 = pneg %p148
      $region18: #{tpu_custom_call.1} parent=11 // pred_check_branch
        %509 = sbr.rel (%p507) target = $region20
      $region19: #{tpu_custom_call.1} parent=11 // pred_region
        _
      $region20: #{tpu_custom_call.1} parent=11 // pred_fallthru
        _
      // Predicated region
      $region21: #{tpu_custom_call.1} parent=11 // pred_check
        %p510 = pneg %p169
      $region22: #{tpu_custom_call.1} parent=11 // pred_check_branch
        %512 = sbr.rel (%p510) target = $region24
      $region23: #{tpu_custom_call.1} parent=11 // pred_region
        _
      $region24: #{tpu_custom_call.1} parent=11 // pred_fallthru
        _
      // Predicated region
      $region25: #{tpu_custom_call.1} parent=11 // pred_check
        %p513 = pneg %p190
      $region26: #{tpu_custom_call.1} parent=11 // pred_check_branch
        %515 = sbr.rel (%p513) target = $region28
      $region27: #{tpu_custom_call.1} parent=11 // pred_region
        _
      $region28: #{tpu_custom_call.1} parent=11 // pred_fallthru
        _
      // Predicated region
      $region29: #{tpu_custom_call.1} parent=11 // pred_check
        %p516 = pneg %p211
      $region30: #{tpu_custom_call.1} parent=11 // pred_check_branch
        %518 = sbr.rel (%p516) target = $region32
      $region31: #{tpu_custom_call.1} parent=11 // pred_region
        _
      $region32: #{tpu_custom_call.1} parent=11 // pred_fallthru
        _
      // Predicated region
      $region33: #{tpu_custom_call.1} parent=11 // pred_check
        %p519 = pneg %p232
      $region34: #{tpu_custom_call.1} parent=11 // pred_check_branch
        %521 = sbr.rel (%p519) target = $region36
      $region35: #{tpu_custom_call.1} parent=11 // pred_region
        _
      $region36: #{tpu_custom_call.1} parent=11 // pred_fallthru
        _
      // Predicated region
      $region37: #{tpu_custom_call.1} parent=11 // pred_check
        %p522 = pneg %p253
      $region38: #{tpu_custom_call.1} parent=11 // pred_check_branch
        %524 = sbr.rel (%p522) target = $region40
      $region39: #{tpu_custom_call.1} parent=11 // pred_region
        _
      $region40: #{tpu_custom_call.1} parent=11 // pred_fallthru
        _
      // Predicated region
      $region41: #{tpu_custom_call.1} parent=11 // pred_check
        %p525 = pneg %p274
      $region42: #{tpu_custom_call.1} parent=11 // pred_check_branch
        %527 = sbr.rel (%p525) target = $region44
      $region43: #{tpu_custom_call.1} parent=11 // pred_region
        _
      $region44: #{tpu_custom_call.1} parent=11 // pred_fallthru
        _
      // Predicated region
      $region45: #{tpu_custom_call.1} parent=11 // pred_check
        %p528 = pneg %p295
      $region46: #{tpu_custom_call.1} parent=11 // pred_check_branch
        %530 = sbr.rel (%p528) target = $region48
      $region47: #{tpu_custom_call.1} parent=11 // pred_region
        _
      $region48: #{tpu_custom_call.1} parent=11 // pred_fallthru
        _
      // Predicated region
      $region49: #{tpu_custom_call.1} parent=11 // pred_check
        %p531 = pneg %p316
      $region50: #{tpu_custom_call.1} parent=11 // pred_check_branch
        %533 = sbr.rel (%p531) target = $region52
      $region51: #{tpu_custom_call.1} parent=11 // pred_region
        _
      $region52: #{tpu_custom_call.1} parent=11 // pred_fallthru
        _
      // Predicated region
      $region53: #{tpu_custom_call.1} parent=11 // pred_check
        %p534 = pneg %p337
      $region54: #{tpu_custom_call.1} parent=11 // pred_check_branch
        %536 = sbr.rel (%p534) target = $region56
      $region55: #{tpu_custom_call.1} parent=11 // pred_region
        _
      $region56: #{tpu_custom_call.1} parent=11 // pred_fallthru
        _
      // Predicated region
      $region57: #{tpu_custom_call.1} parent=11 // pred_check
        %p537 = pneg %p358
      $region58: #{tpu_custom_call.1} parent=11 // pred_check_branch
        %539 = sbr.rel (%p537) target = $region60
      $region59: #{tpu_custom_call.1} parent=11 // pred_region
        _
      $region60: #{tpu_custom_call.1} parent=11 // pred_fallthru
        _
      // Predicated region
      $region61: #{tpu_custom_call.1} parent=11 // pred_check
        %p540 = pneg %p379
      $region62: #{tpu_custom_call.1} parent=11 // pred_check_branch
        %542 = sbr.rel (%p540) target = $region64
      $region63: #{tpu_custom_call.1} parent=11 // pred_region
        _
      $region64: #{tpu_custom_call.1} parent=11 // pred_fallthru
        _
      // Predicated region
      $region65: #{tpu_custom_call.1} parent=11 // pred_check
        %p543 = pneg %p400
      $region66: #{tpu_custom_call.1} parent=11 // pred_check_branch
        %545 = sbr.rel (%p543) target = $region68
      $region67: #{tpu_custom_call.1} parent=11 // pred_region
        _
      $region68: #{tpu_custom_call.1} parent=11 // pred_fallthru
        _
      // Predicated region
      $region69: #{tpu_custom_call.1} parent=11 // pred_check
        %p546 = pneg %p421
      $region70: #{tpu_custom_call.1} parent=11 // pred_check_branch
        %548 = sbr.rel (%p546) target = $region72
      $region71: #{tpu_custom_call.1} parent=11 // pred_region
        _
      $region72: #{tpu_custom_call.1} parent=11 // pred_fallthru
        _
      // Predicated region
      $region73: #{tpu_custom_call.1} parent=11 // pred_check
        %p549 = pneg %p442
      $region74: #{tpu_custom_call.1} parent=11 // pred_check_branch
        %551 = sbr.rel (%p549) target = $region76
      $region75: #{tpu_custom_call.1} parent=11 // pred_region
        _
      $region76: #{tpu_custom_call.1} parent=11 // pred_fallthru
        _
      // Predicated region
      $region77: #{tpu_custom_call.1} parent=11 // pred_check
        %p552 = pneg %p463
      $region78: #{tpu_custom_call.1} parent=11 // pred_check_branch
        %554 = sbr.rel (%p552) target = $region80
      $region79: #{tpu_custom_call.1} parent=11 // pred_region
        _
      $region80: #{tpu_custom_call.1} parent=11 // pred_fallthru
        _
    $region12: #{tpu_custom_call.1} parent=5 // pred_fallthru
      _
    %p555 = scmp.lt.s32.totalorder %s28, 2
    // Predicated region
    $region81: #{tpu_custom_call.1} parent=5 // pred_check
      %p556 = pneg %p555
    $region82: #{tpu_custom_call.1} parent=5 // pred_check_branch
      %558 = sbr.rel (%p556) target = $region84
    $region83: #{tpu_custom_call.1} parent=5 // pred_region
      // Predicated region
      $region85: #{tpu_custom_call.1} parent=83 // pred_check
        %p559 = pneg %p48
      $region86: #{tpu_custom_call.1} parent=83 // pred_check_branch
        %561 = sbr.rel (%p559) target = $region88
      $region87: #{tpu_custom_call.1} parent=83 // pred_region
        %p562 = scmp.lt.s32.totalorder %s28, 1
        %s563 = scalar_select %p562, %s28, 1
        %s564 = smul.addr %s563, 8
        %s565 = smul.addr %s564, 8
        %s566 = scalar_lea.vmem %s0, %s565
      $region88: #{tpu_custom_call.1} parent=83 // pred_fallthru
        _
      // Predicated region
      $region89: #{tpu_custom_call.1} parent=83 // pred_check
        %p567 = pneg %p74
      $region90: #{tpu_custom_call.1} parent=83 // pred_check_branch
        %569 = sbr.rel (%p567) target = $region92
      $region91: #{tpu_custom_call.1} parent=83 // pred_region
        %p570 = scmp.lt.s32.totalorder %s28, 1
        %s571 = scalar_select %p570, %s28, 1
        %s572 = smul.addr %s571, 8
        %s573 = smul.addr %s572, 8
        %s574 = scalar_lea.vmem %s1, %s573
      $region92: #{tpu_custom_call.1} parent=83 // pred_fallthru
        _
      // Predicated region
      $region93: #{tpu_custom_call.1} parent=83 // pred_check
        %p575 = pneg %p100
      $region94: #{tpu_custom_call.1} parent=83 // pred_check_branch
        %577 = sbr.rel (%p575) target = $region96
      $region95: #{tpu_custom_call.1} parent=83 // pred_region
        %p578 = scmp.lt.s32.totalorder %s28, 1
        %s579 = scalar_select %p578, %s28, 1
        %s580 = smul.addr %s579, 8
        %s581 = scalar_lea.vmem %s2, %s580
      $region96: #{tpu_custom_call.1} parent=83 // pred_fallthru
        _
    $region84: #{tpu_custom_call.1} parent=5 // pred_fallthru
      _
    %p582 = scmp.le.s32.totalorder 1, %s28
    %p583 = scmp.lt.s32.totalorder %s28, 3
    %p584 = pnand %p582, %p583
    %p585 = pneg %p584
    // Predicated region
    $region97: #{tpu_custom_call.1} parent=5 // pred_check
      _
    $region98: #{tpu_custom_call.1} parent=5 // pred_check_branch
      %587 = sbr.rel (%p584) target = $region100
    $region99: #{tpu_custom_call.1} parent=5 // pred_region
      %s588 = ssub.s32 %s28, 1
      %p589 = scmp.lt.s32.totalorder %s33, 1
      %s590 = scalar_select %p589, %s33, 1
      %s591 = smul.addr %s590, 8
      %s592 = smul.addr %s591, 8
      %s593 = scalar_lea.vmem %s0, %s592
      %p594 = pneg %p54
      %p595 = pneg %p51
      %p596 = scmp.lt.s32.totalorder %s33, 1
      %s597 = scalar_select %p596, %s33, 1
      %s598 = smul.addr %s597, 8
      %s599 = smul.addr %s598, 8
      %s600 = scalar_lea.vmem %s1, %s599
      %p601 = pneg %p80
      %p602 = pneg %p77
      %p603 = scmp.lt.s32.totalorder %s33, 1
      %s604 = scalar_select %p603, %s33, 1
      %s605 = smul.addr %s604, 8
      %s606 = scalar_lea.vmem %s2, %s605
      %p607 = pneg %p106
      %p608 = pneg %p103
      %p609 = pneg %p127
      %p610 = pneg %p124
      %p611 = pneg %p148
      %p612 = pneg %p145
      %p613 = pneg %p169
      %p614 = pneg %p166
      %p615 = pneg %p190
      %p616 = pneg %p187
      %p617 = pneg %p211
      %p618 = pneg %p208
      %p619 = pneg %p232
      %p620 = pneg %p229
      %p621 = pneg %p253
      %p622 = pneg %p250
      %p623 = pneg %p274
      %p624 = pneg %p271
      %p625 = pneg %p295
      %p626 = pneg %p292
      %p627 = pneg %p316
      %p628 = pneg %p313
      %p629 = pneg %p337
      %p630 = pneg %p334
      %p631 = pneg %p358
      %p632 = pneg %p355
      %p633 = pneg %p379
      %p634 = pneg %p376
      %p635 = pneg %p400
      %p636 = pneg %p397
      %p637 = pneg %p421
      %p638 = pneg %p418
      %p639 = pneg %p442
      %p640 = pneg %p439
      %p641 = pneg %p463
      %p642 = pneg %p460
      %p643 = pneg %p489
      %p644 = pneg %p486
      %p645 = scmp.lt.s32.totalorder %s33, 1
      %s646 = scalar_select %p645, %s33, 1
      %s647 = scalar_lea.vmem %s20, %s646
      %p648 = scmp.lt.s32.totalorder %s33, 1
      %s649 = scalar_select %p648, %s33, 1
      %s650 = smul.addr %s649, 8
      %s651 = smul.addr %s650, 8
      %s652 = scalar_lea.vmem %s0, %s651
      %p653 = scmp.lt.s32.totalorder %s33, 1
      %s654 = scalar_select %p653, %s33, 1
      %s655 = smul.addr %s654, 8
      %s656 = smul.addr %s655, 8
      %s657 = scalar_lea.vmem %s1, %s656
      %p658 = scmp.lt.s32.totalorder %s33, 1
      %s659 = scalar_select %p658, %s33, 1
      %s660 = smul.addr %s659, 8
      %s661 = scalar_lea.vmem %s2, %s660
      %p662 = scmp.lt.s32.totalorder %s33, 1
      %s663 = scalar_select %p662, %s33, 1
      %s664 = scalar_lea.vmem %s20, %s663
      %v665 = vld [vmem:[%s652] sm:$0xff]
      %v666 = vld [vmem:[%s652 + $0x8] sm:$0xff]
      %v667 = vld [vmem:[%s652 + $0x10] sm:$0xff]
      %v668 = vld [vmem:[%s652 + $0x18] sm:$0xff]
      %v669 = vld [vmem:[%s652 + $0x20] sm:$0xff]
      %v670 = vld [vmem:[%s652 + $0x28] sm:$0xff]
      %v671 = vld [vmem:[%s652 + $0x30] sm:$0xff]
      %v672 = vld [vmem:[%s652 + $0x38] sm:$0xff]
      %v673 = vld [vmem:[%s657] sm:$0xff]
      %v674 = vld [vmem:[%s657 + $0x8] sm:$0xff]
      %v675 = vld [vmem:[%s657 + $0x10] sm:$0xff]
      %v676 = vld [vmem:[%s657 + $0x18] sm:$0xff]
      %v677 = vld [vmem:[%s657 + $0x20] sm:$0xff]
      %v678 = vld [vmem:[%s657 + $0x28] sm:$0xff]
      %v679 = vld [vmem:[%s657 + $0x30] sm:$0xff]
      %v680 = vld [vmem:[%s657 + $0x38] sm:$0xff]
      %vm681 = vcmask 523264
      %v683 = vsel %vm681, %v665, 0
      %v686 = vsel %vm681, %v666, 0
      %v689 = vsel %vm681, %v667, 0
      %v692 = vsel %vm681, %v668, 0
      %v695 = vsel %vm681, %v669, 0
      %v698 = vsel %vm681, %v670, 0
      %v701 = vsel %vm681, %v671, 0
      %v704 = vsel %vm681, %v672, 0
      %706 = vmatprep.subr.mxu0 0.0
      %707 = vmatpush1.msra.mxu0 0.0
      %708 = vmatprep.subr.mxu0 0.0
      %709 = vmatpush1.msra.mxu0 0.0
      %710 = vmatprep.subr.mxu0 0.0
      %711 = vmatpush1.msra.mxu0 0.0
      %712 = vmatprep.subr.mxu0 0.0
      %713 = vmatpush1.msra.mxu0 0.0
      %714 = vmatprep.subr.mxu0 0.0
      %715 = vmatpush1.msra.mxu0 0.0
      %716 = vmatprep.subr.mxu0 0.0
      %717 = vmatpush1.msra.mxu0 0.0
      %718 = vmatprep.subr.mxu0 0.0
      %719 = vmatpush1.msra.mxu0 0.0
      %720 = vmatprep.subr.mxu0 0.0
      %721 = vmatpush1.msra.mxu0 0.0
      %722 = vmatprep.subr.mxu0 0.0
      %723 = vmatpush1.msra.mxu0 %v680
      %724 = vmatprep.subr.mxu0 0.0
      %725 = vmatpush1.msra.mxu0 %v679
      %726 = vmatprep.subr.mxu0 0.0
      %727 = vmatpush1.msra.mxu0 %v678
      %728 = vmatprep.subr.mxu0 0.0
      %729 = vmatpush1.msra.mxu0 %v677
      %730 = vmatprep.subr.mxu0 0.0
      %731 = vmatpush1.msra.mxu0 %v676
      %732 = vmatprep.subr.mxu0 0.0
      %733 = vmatpush1.msra.mxu0 %v675
      %734 = vmatprep.subr.mxu0 0.0
      %735 = vmatpush1.msra.mxu0 %v674
      %736 = vmatprep.subr.mxu0 0.0
      %737 = vmatpush1.msra.mxu0 %v673
      %738 = vmatprep.subr.mxu0 0.0
      %739 = vmatpush2.msra.mxu0 0.0
      %740 = vmatprep.subr.mxu0 0.0
      %741 = vmatpush2.msra.mxu0 0.0
      %742 = vmatprep.subr.mxu0 0.0
      %743 = vmatpush2.msra.mxu0 0.0
      %744 = vmatprep.subr.mxu0 0.0
      %745 = vmatpush2.msra.mxu0 0.0
      %746 = vmatprep.subr.mxu0 0.0
      %747 = vmatpush2.msra.mxu0 0.0
      %748 = vmatprep.subr.mxu0 0.0
      %749 = vmatpush2.msra.mxu0 0.0
      %750 = vmatprep.subr.mxu0 0.0
      %751 = vmatpush2.msra.mxu0 0.0
      %752 = vmatprep.subr.mxu0 0.0
      %753 = vmatpush2.msra.mxu0 0.0
      %754 = vmatprep.subr.mxu0 0.0
      %755 = vmatpush2.msra.mxu0 0.0
      %756 = vmatprep.subr.mxu0 0.0
      %757 = vmatpush2.msra.mxu0 0.0
      %758 = vmatprep.subr.mxu0 0.0
      %759 = vmatpush2.msra.mxu0 0.0
      %760 = vmatprep.subr.mxu0 0.0
      %761 = vmatpush2.msra.mxu0 0.0
      %762 = vmatprep.subr.mxu0 0.0
      %763 = vmatpush2.msra.mxu0 0.0
      %764 = vmatprep.subr.mxu0 0.0
      %765 = vmatpush2.msra.mxu0 0.0
      %766 = vmatprep.subr.mxu0 0.0
      %767 = vmatpush2.msra.mxu0 0.0
      %768 = vmatprep.subr.mxu0 0.0
      %769 = vmatpush2.msra.mxu0 0.0
      %770 = vmatprep.mubr.f32.mxu0 0.0
      %771 = vmatmul.mubr.f32.gmra.mxu0 %v683
      %v772 = vpop.f32.mrf.mxu0
      %v773 = vadd.f32 0.0, %v772
      %v774 = vpop.f32.mrf.mxu0
      %775 = vmatprep.mubr.f32.mxu0 0.0
      %776 = vmatmul.mubr.f32.gmra.mxu0 %v686
      %v777 = vpop.f32.mrf.mxu0
      %v778 = vadd.f32 0.0, %v777
      %v779 = vpop.f32.mrf.mxu0
      %780 = vmatprep.mubr.f32.mxu0 0.0
      %781 = vmatmul.mubr.f32.gmra.mxu0 %v689
      %v782 = vpop.f32.mrf.mxu0
      %v783 = vadd.f32 0.0, %v782
      %v784 = vpop.f32.mrf.mxu0
      %785 = vmatprep.mubr.f32.mxu0 0.0
      %786 = vmatmul.mubr.f32.gmra.mxu0 %v692
      %v787 = vpop.f32.mrf.mxu0
      %v788 = vadd.f32 0.0, %v787
      %v789 = vpop.f32.mrf.mxu0
      %790 = vmatprep.mubr.f32.mxu0 0.0
      %791 = vmatmul.mubr.f32.gmra.mxu0 %v695
      %v792 = vpop.f32.mrf.mxu0
      %v793 = vadd.f32 0.0, %v792
      %v794 = vpop.f32.mrf.mxu0
      %795 = vmatprep.mubr.f32.mxu0 0.0
      %796 = vmatmul.mubr.f32.gmra.mxu0 %v698
      %v797 = vpop.f32.mrf.mxu0
      %v798 = vadd.f32 0.0, %v797
      %v799 = vpop.f32.mrf.mxu0
      %800 = vmatprep.mubr.f32.mxu0 0.0
      %801 = vmatmul.mubr.f32.gmra.mxu0 %v701
      %v802 = vpop.f32.mrf.mxu0
      %v803 = vadd.f32 0.0, %v802
      %v804 = vpop.f32.mrf.mxu0
      %805 = vmatprep.mubr.f32.mxu0 0.0
      %806 = vmatmul.mubr.f32.gmra.mxu0 %v704
      %v807 = vpop.f32.mrf.mxu0
      %v808 = vadd.f32 0.0, %v807
      %v809 = vpop.f32.mrf.mxu0
      %810 = vdwg.mxu0
      %v811 = vld [vmem:[%s3] sm:$0xf]
      %v812 = vld [vmem:[%s4] sm:$0xf]
      %vm813 = vcmask 31744
      %v815 = vsel %vm813, %v673, 0
      %v818 = vsel %vm813, %v674, 0
      %v821 = vsel %vm813, %v675, 0
      %v824 = vsel %vm813, %v676, 0
      %v827 = vsel %vm813, %v677, 0
      %v830 = vsel %vm813, %v678, 0
      %v833 = vsel %vm813, %v679, 0
      %v836 = vsel %vm813, %v680, 0
      %vm838 = vcmask 1043456
      %v840 = vsel %vm838, %v812, 0
      %842 = vmatprep.subr.mxu0 0.0
      %843 = vmatpush1.msra.mxu0 0.0
      %844 = vmatprep.subr.mxu0 0.0
      %845 = vmatpush1.msra.mxu0 0.0
      %846 = vmatprep.subr.mxu0 0.0
      %847 = vmatpush1.msra.mxu0 0.0
      %848 = vmatprep.subr.mxu0 0.0
      %849 = vmatpush1.msra.mxu0 0.0
      %850 = vmatprep.subr.mxu0 0.0
      %851 = vmatpush1.msra.mxu0 0.0
      %852 = vmatprep.subr.mxu0 0.0
      %853 = vmatpush1.msra.mxu0 0.0
      %854 = vmatprep.subr.mxu0 0.0
      %855 = vmatpush1.msra.mxu0 0.0
      %856 = vmatprep.subr.mxu0 0.0
      %857 = vmatpush1.msra.mxu0 0.0
      %858 = vmatprep.subr.mxu0 0.0
      %859 = vmatpush1.msra.mxu0 0.0
      %860 = vmatprep.subr.mxu0 0.0
      %861 = vmatpush1.msra.mxu0 0.0
      %862 = vmatprep.subr.mxu0 0.0
      %863 = vmatpush1.msra.mxu0 0.0
      %864 = vmatprep.subr.mxu0 0.0
      %865 = vmatpush1.msra.mxu0 0.0
      %866 = vmatprep.subr.mxu0 0.0
      %867 = vmatpush1.msra.mxu0 0.0
      %868 = vmatprep.subr.mxu0 0.0
      %869 = vmatpush1.msra.mxu0 0.0
      %870 = vmatprep.subr.mxu0 0.0
      %871 = vmatpush1.msra.mxu0 0.0
      %872 = vmatprep.subr.mxu0 0.0
      %873 = vmatpush1.msra.mxu0 %v840
      %874 = vmatprep.subr.mxu0 0.0
      %875 = vmatpush2.msra.mxu0 0.0
      %876 = vmatprep.subr.mxu0 0.0
      %877 = vmatpush2.msra.mxu0 0.0
      %878 = vmatprep.subr.mxu0 0.0
      %879 = vmatpush2.msra.mxu0 0.0
      %880 = vmatprep.subr.mxu0 0.0
      %881 = vmatpush2.msra.mxu0 0.0
      %882 = vmatprep.subr.mxu0 0.0
      %883 = vmatpush2.msra.mxu0 0.0
      %884 = vmatprep.subr.mxu0 0.0
      %885 = vmatpush2.msra.mxu0 0.0
      %886 = vmatprep.subr.mxu0 0.0
      %887 = vmatpush2.msra.mxu0 0.0
      %888 = vmatprep.subr.mxu0 0.0
      %889 = vmatpush2.msra.mxu0 0.0
      %890 = vmatprep.subr.mxu0 0.0
      %891 = vmatpush2.msra.mxu0 0.0
      %892 = vmatprep.subr.mxu0 0.0
      %893 = vmatpush2.msra.mxu0 0.0
      %894 = vmatprep.subr.mxu0 0.0
      %895 = vmatpush2.msra.mxu0 0.0
      %896 = vmatprep.subr.mxu0 0.0
      %897 = vmatpush2.msra.mxu0 0.0
      %898 = vmatprep.subr.mxu0 0.0
      %899 = vmatpush2.msra.mxu0 0.0
      %900 = vmatprep.subr.mxu0 0.0
      %901 = vmatpush2.msra.mxu0 0.0
      %902 = vmatprep.subr.mxu0 0.0
      %903 = vmatpush2.msra.mxu0 0.0
      %904 = vmatprep.subr.mxu0 0.0
      %905 = vmatpush2.msra.mxu0 0.0
      %906 = vmatprep.mubr.f32.mxu0 0.0
      %907 = vmatmul.mubr.f32.gmra.mxu0 %v815
      %v908 = vpop.f32.mrf.mxu0
      %v909 = vadd.f32 0.0, %v908
      %v910 = vpop.f32.mrf.mxu0
      %911 = vmatprep.mubr.f32.mxu0 0.0
      %912 = vmatmul.mubr.f32.gmra.mxu0 %v818
      %v913 = vpop.f32.mrf.mxu0
      %v914 = vadd.f32 0.0, %v913
      %v915 = vpop.f32.mrf.mxu0
      %916 = vmatprep.mubr.f32.mxu0 0.0
      %917 = vmatmul.mubr.f32.gmra.mxu0 %v821
      %v918 = vpop.f32.mrf.mxu0
      %v919 = vadd.f32 0.0, %v918
      %v920 = vpop.f32.mrf.mxu0
      %921 = vmatprep.mubr.f32.mxu0 0.0
      %922 = vmatmul.mubr.f32.gmra.mxu0 %v824
      %v923 = vpop.f32.mrf.mxu0
      %v924 = vadd.f32 0.0, %v923
      %v925 = vpop.f32.mrf.mxu0
      %926 = vmatprep.mubr.f32.mxu0 0.0
      %927 = vmatmul.mubr.f32.gmra.mxu0 %v827
      %v928 = vpop.f32.mrf.mxu0
      %v929 = vadd.f32 0.0, %v928
      %v930 = vpop.f32.mrf.mxu0
      %931 = vmatprep.mubr.f32.mxu0 0.0
      %932 = vmatmul.mubr.f32.gmra.mxu0 %v830
      %v933 = vpop.f32.mrf.mxu0
      %v934 = vadd.f32 0.0, %v933
      %v935 = vpop.f32.mrf.mxu0
      %936 = vmatprep.mubr.f32.mxu0 0.0
      %937 = vmatmul.mubr.f32.gmra.mxu0 %v833
      %v938 = vpop.f32.mrf.mxu0
      %v939 = vadd.f32 0.0, %v938
      %v940 = vpop.f32.mrf.mxu0
      %941 = vmatprep.mubr.f32.mxu0 0.0
      %942 = vmatmul.mubr.f32.gmra.mxu0 %v836
      %v943 = vpop.f32.mrf.mxu0
      %v944 = vadd.f32 0.0, %v943
      %v945 = vpop.f32.mrf.mxu0
      %946 = vdwg.mxu0
      %v948 = vsel %vm813, %v773, 0
      %v951 = vsel %vm813, %v778, 0
      %v954 = vsel %vm813, %v783, 0
      %v957 = vsel %vm813, %v788, 0
      %v960 = vsel %vm813, %v793, 0
      %v963 = vsel %vm813, %v798, 0
      %v966 = vsel %vm813, %v803, 0
      %v969 = vsel %vm813, %v808, 0
      %v972 = vsel %vm838, %v811, 0
      %974 = vmatprep.subr.mxu0 0.0
      %975 = vmatpush1.msra.mxu0 0.0
      %976 = vmatprep.subr.mxu0 0.0
      %977 = vmatpush1.msra.mxu0 0.0
      %978 = vmatprep.subr.mxu0 0.0
      %979 = vmatpush1.msra.mxu0 0.0
      %980 = vmatprep.subr.mxu0 0.0
      %981 = vmatpush1.msra.mxu0 0.0
      %982 = vmatprep.subr.mxu0 0.0
      %983 = vmatpush1.msra.mxu0 0.0
      %984 = vmatprep.subr.mxu0 0.0
      %985 = vmatpush1.msra.mxu0 0.0
      %986 = vmatprep.subr.mxu0 0.0
      %987 = vmatpush1.msra.mxu0 0.0
      %988 = vmatprep.subr.mxu0 0.0
      %989 = vmatpush1.msra.mxu0 0.0
      %990 = vmatprep.subr.mxu0 0.0
      %991 = vmatpush1.msra.mxu0 0.0
      %992 = vmatprep.subr.mxu0 0.0
      %993 = vmatpush1.msra.mxu0 0.0
      %994 = vmatprep.subr.mxu0 0.0
      %995 = vmatpush1.msra.mxu0 0.0
      %996 = vmatprep.subr.mxu0 0.0
      %997 = vmatpush1.msra.mxu0 0.0
      %998 = vmatprep.subr.mxu0 0.0
      %999 = vmatpush1.msra.mxu0 0.0
      %1000 = vmatprep.subr.mxu0 0.0
      %1001 = vmatpush1.msra.mxu0 0.0
      %1002 = vmatprep.subr.mxu0 0.0
      %1003 = vmatpush1.msra.mxu0 0.0
      %1004 = vmatprep.subr.mxu0 0.0
      %1005 = vmatpush1.msra.mxu0 %v972
      %1006 = vmatprep.subr.mxu0 0.0
      %1007 = vmatpush2.msra.mxu0 0.0
      %1008 = vmatprep.subr.mxu0 0.0
      %1009 = vmatpush2.msra.mxu0 0.0
      %1010 = vmatprep.subr.mxu0 0.0
      %1011 = vmatpush2.msra.mxu0 0.0
      %1012 = vmatprep.subr.mxu0 0.0
      %1013 = vmatpush2.msra.mxu0 0.0
      %1014 = vmatprep.subr.mxu0 0.0
      %1015 = vmatpush2.msra.mxu0 0.0
      %1016 = vmatprep.subr.mxu0 0.0
      %1017 = vmatpush2.msra.mxu0 0.0
      %1018 = vmatprep.subr.mxu0 0.0
      %1019 = vmatpush2.msra.mxu0 0.0
      %1020 = vmatprep.subr.mxu0 0.0
      %1021 = vmatpush2.msra.mxu0 0.0
      %1022 = vmatprep.subr.mxu0 0.0
      %1023 = vmatpush2.msra.mxu0 0.0
      %1024 = vmatprep.subr.mxu0 0.0
      %1025 = vmatpush2.msra.mxu0 0.0
      %1026 = vmatprep.subr.mxu0 0.0
      %1027 = vmatpush2.msra.mxu0 0.0
      %1028 = vmatprep.subr.mxu0 0.0
      %1029 = vmatpush2.msra.mxu0 0.0
      %1030 = vmatprep.subr.mxu0 0.0
      %1031 = vmatpush2.msra.mxu0 0.0
      %1032 = vmatprep.subr.mxu0 0.0
      %1033 = vmatpush2.msra.mxu0 0.0
      %1034 = vmatprep.subr.mxu0 0.0
      %1035 = vmatpush2.msra.mxu0 0.0
      %1036 = vmatprep.subr.mxu0 0.0
      %1037 = vmatpush2.msra.mxu0 0.0
      %1038 = vmatprep.mubr.f32.mxu0 0.0
      %1039 = vmatmul.mubr.f32.gmra.mxu0 %v948
      %v1040 = vpop.f32.mrf.mxu0
      %v1041 = vadd.f32 %v909, %v1040
      %v1042 = vpop.f32.mrf.mxu0
      %1043 = vmatprep.mubr.f32.mxu0 0.0
      %1044 = vmatmul.mubr.f32.gmra.mxu0 %v951
      %v1045 = vpop.f32.mrf.mxu0
      %v1046 = vadd.f32 %v914, %v1045
      %v1047 = vpop.f32.mrf.mxu0
      %1048 = vmatprep.mubr.f32.mxu0 0.0
      %1049 = vmatmul.mubr.f32.gmra.mxu0 %v954
      %v1050 = vpop.f32.mrf.mxu0
      %v1051 = vadd.f32 %v919, %v1050
      %v1052 = vpop.f32.mrf.mxu0
      %1053 = vmatprep.mubr.f32.mxu0 0.0
      %1054 = vmatmul.mubr.f32.gmra.mxu0 %v957
      %v1055 = vpop.f32.mrf.mxu0
      %v1056 = vadd.f32 %v924, %v1055
      %v1057 = vpop.f32.mrf.mxu0
      %1058 = vmatprep.mubr.f32.mxu0 0.0
      %1059 = vmatmul.mubr.f32.gmra.mxu0 %v960
      %v1060 = vpop.f32.mrf.mxu0
      %v1061 = vadd.f32 %v929, %v1060
      %v1062 = vpop.f32.mrf.mxu0
      %1063 = vmatprep.mubr.f32.mxu0 0.0
      %1064 = vmatmul.mubr.f32.gmra.mxu0 %v963
      %v1065 = vpop.f32.mrf.mxu0
      %v1066 = vadd.f32 %v934, %v1065
      %v1067 = vpop.f32.mrf.mxu0
      %1068 = vmatprep.mubr.f32.mxu0 0.0
      %1069 = vmatmul.mubr.f32.gmra.mxu0 %v966
      %v1070 = vpop.f32.mrf.mxu0
      %v1071 = vadd.f32 %v939, %v1070
      %v1072 = vpop.f32.mrf.mxu0
      %1073 = vmatprep.mubr.f32.mxu0 0.0
      %1074 = vmatmul.mubr.f32.gmra.mxu0 %v969
      %v1075 = vpop.f32.mrf.mxu0
      %v1076 = vadd.f32 %v944, %v1075
      %v1077 = vpop.f32.mrf.mxu0
      %1078 = vdwg.mxu0
      %v1079 = vld [vmem:[%s5] sm:$0x1]
      %v1081 = vlaneseq
      %v1082 = vshrl.u32 %v1081, 7
      %v1083 = vsub.s32 0, %v1082
      %v1084 = vrot.slane %v1079, %v1083
      %v1086 = vadd.f32 %v1041, %v1084
      %v1087 = vadd.f32 %v1046, %v1084
      %v1088 = vadd.f32 %v1051, %v1084
      %v1089 = vadd.f32 %v1056, %v1084
      %v1090 = vadd.f32 %v1061, %v1084
      %v1091 = vadd.f32 %v1066, %v1084
      %v1092 = vadd.f32 %v1071, %v1084
      %v1093 = vadd.f32 %v1076, %v1084
      %v1094 = vmax.f32 %v1086, 0.0
      %v1095 = vmax.f32 %v1087, 0.0
      %v1096 = vmax.f32 %v1088, 0.0
      %v1097 = vmax.f32 %v1089, 0.0
      %v1098 = vmax.f32 %v1090, 0.0
      %v1099 = vmax.f32 %v1091, 0.0
      %v1100 = vmax.f32 %v1092, 0.0
      %v1101 = vmax.f32 %v1093, 0.0
      %1102 = vmatprep.subr.mxu0 0.0
      %1103 = vmatpush1.msra.mxu0 0.0
      %1104 = vmatprep.subr.mxu0 0.0
      %1105 = vmatpush1.msra.mxu0 0.0
      %1106 = vmatprep.subr.mxu0 0.0
      %1107 = vmatpush1.msra.mxu0 0.0
      %1108 = vmatprep.subr.mxu0 0.0
      %1109 = vmatpush1.msra.mxu0 0.0
      %1110 = vmatprep.subr.mxu0 0.0
      %1111 = vmatpush1.msra.mxu0 0.0
      %1112 = vmatprep.subr.mxu0 0.0
      %1113 = vmatpush1.msra.mxu0 0.0
      %1114 = vmatprep.subr.mxu0 0.0
      %1115 = vmatpush1.msra.mxu0 0.0
      %1116 = vmatprep.subr.mxu0 0.0
      %1117 = vmatpush1.msra.mxu0 0.0
      %1118 = vmatprep.subr.mxu0 0.0
      %1119 = vmatpush1.msra.mxu0 %v1101
      %1120 = vmatprep.subr.mxu0 0.0
      %1121 = vmatpush1.msra.mxu0 %v1100
      %1122 = vmatprep.subr.mxu0 0.0
      %1123 = vmatpush1.msra.mxu0 %v1099
      %1124 = vmatprep.subr.mxu0 0.0
      %1125 = vmatpush1.msra.mxu0 %v1098
      %1126 = vmatprep.subr.mxu0 0.0
      %1127 = vmatpush1.msra.mxu0 %v1097
      %1128 = vmatprep.subr.mxu0 0.0
      %1129 = vmatpush1.msra.mxu0 %v1096
      %1130 = vmatprep.subr.mxu0 0.0
      %1131 = vmatpush1.msra.mxu0 %v1095
      %1132 = vmatprep.subr.mxu0 0.0
      %1133 = vmatpush1.msra.mxu0 %v1094
      %1134 = vmatprep.subr.mxu0 0.0
      %1135 = vmatpush2.msra.mxu0 0.0
      %1136 = vmatprep.subr.mxu0 0.0
      %1137 = vmatpush2.msra.mxu0 0.0
      %1138 = vmatprep.subr.mxu0 0.0
      %1139 = vmatpush2.msra.mxu0 0.0
      %1140 = vmatprep.subr.mxu0 0.0
      %1141 = vmatpush2.msra.mxu0 0.0
      %1142 = vmatprep.subr.mxu0 0.0
      %1143 = vmatpush2.msra.mxu0 0.0
      %1144 = vmatprep.subr.mxu0 0.0
      %1145 = vmatpush2.msra.mxu0 0.0
      %1146 = vmatprep.subr.mxu0 0.0
      %1147 = vmatpush2.msra.mxu0 0.0
      %1148 = vmatprep.subr.mxu0 0.0
      %1149 = vmatpush2.msra.mxu0 0.0
      %1150 = vmatprep.subr.mxu0 0.0
      %1151 = vmatpush2.msra.mxu0 0.0
      %1152 = vmatprep.subr.mxu0 0.0
      %1153 = vmatpush2.msra.mxu0 0.0
      %1154 = vmatprep.subr.mxu0 0.0
      %1155 = vmatpush2.msra.mxu0 0.0
      %1156 = vmatprep.subr.mxu0 0.0
      %1157 = vmatpush2.msra.mxu0 0.0
      %1158 = vmatprep.subr.mxu0 0.0
      %1159 = vmatpush2.msra.mxu0 0.0
      %1160 = vmatprep.subr.mxu0 0.0
      %1161 = vmatpush2.msra.mxu0 0.0
      %1162 = vmatprep.subr.mxu0 0.0
      %1163 = vmatpush2.msra.mxu0 0.0
      %1164 = vmatprep.subr.mxu0 0.0
      %1165 = vmatpush2.msra.mxu0 0.0
      %1166 = vmatprep.mubr.f32.mxu0 0.0
      %1167 = vmatmul.mubr.f32.gmra.mxu0 %v683
      %v1168 = vpop.f32.mrf.mxu0
      %v1169 = vadd.f32 0.0, %v1168
      %v1170 = vpop.f32.mrf.mxu0
      %1171 = vmatprep.mubr.f32.mxu0 0.0
      %1172 = vmatmul.mubr.f32.gmra.mxu0 %v686
      %v1173 = vpop.f32.mrf.mxu0
      %v1174 = vadd.f32 0.0, %v1173
      %v1175 = vpop.f32.mrf.mxu0
      %1176 = vmatprep.mubr.f32.mxu0 0.0
      %1177 = vmatmul.mubr.f32.gmra.mxu0 %v689
      %v1178 = vpop.f32.mrf.mxu0
      %v1179 = vadd.f32 0.0, %v1178
      %v1180 = vpop.f32.mrf.mxu0
      %1181 = vmatprep.mubr.f32.mxu0 0.0
      %1182 = vmatmul.mubr.f32.gmra.mxu0 %v692
      %v1183 = vpop.f32.mrf.mxu0
      %v1184 = vadd.f32 0.0, %v1183
      %v1185 = vpop.f32.mrf.mxu0
      %1186 = vmatprep.mubr.f32.mxu0 0.0
      %1187 = vmatmul.mubr.f32.gmra.mxu0 %v695
      %v1188 = vpop.f32.mrf.mxu0
      %v1189 = vadd.f32 0.0, %v1188
      %v1190 = vpop.f32.mrf.mxu0
      %1191 = vmatprep.mubr.f32.mxu0 0.0
      %1192 = vmatmul.mubr.f32.gmra.mxu0 %v698
      %v1193 = vpop.f32.mrf.mxu0
      %v1194 = vadd.f32 0.0, %v1193
      %v1195 = vpop.f32.mrf.mxu0
      %1196 = vmatprep.mubr.f32.mxu0 0.0
      %1197 = vmatmul.mubr.f32.gmra.mxu0 %v701
      %v1198 = vpop.f32.mrf.mxu0
      %v1199 = vadd.f32 0.0, %v1198
      %v1200 = vpop.f32.mrf.mxu0
      %1201 = vmatprep.mubr.f32.mxu0 0.0
      %1202 = vmatmul.mubr.f32.gmra.mxu0 %v704
      %v1203 = vpop.f32.mrf.mxu0
      %v1204 = vadd.f32 0.0, %v1203
      %v1205 = vpop.f32.mrf.mxu0
      %1206 = vdwg.mxu0
      %v1207 = vld [vmem:[%s6] sm:$0xff]
      %v1208 = vld [vmem:[%s6 + $0x8] sm:$0xff]
      %v1209 = vld [vmem:[%s6 + $0x10] sm:$0xff]
      %v1210 = vld [vmem:[%s6 + $0x18] sm:$0xff]
      %v1211 = vld [vmem:[%s7] sm:$0xff]
      %v1212 = vld [vmem:[%s7 + $0x8] sm:$0xff]
      %v1213 = vld [vmem:[%s7 + $0x10] sm:$0xff]
      %v1214 = vld [vmem:[%s7 + $0x18] sm:$0xff]
      %vm1215 = vcmask 261120
      %v1217 = vsel %vm1215, %v1094, 0
      %v1220 = vsel %vm1215, %v1095, 0
      %v1223 = vsel %vm1215, %v1096, 0
      %v1226 = vsel %vm1215, %v1097, 0
      %v1229 = vsel %vm1215, %v1098, 0
      %v1232 = vsel %vm1215, %v1099, 0
      %v1235 = vsel %vm1215, %v1100, 0
      %v1238 = vsel %vm1215, %v1101, 0
      %1240 = vmatprep.subr.mxu0 0.0
      %1241 = vmatpush1.msra.mxu0 0.0
      %1242 = vmatprep.subr.mxu0 0.0
      %1243 = vmatpush1.msra.mxu0 0.0
      %1244 = vmatprep.subr.mxu0 0.0
      %1245 = vmatpush1.msra.mxu0 0.0
      %1246 = vmatprep.subr.mxu0 0.0
      %1247 = vmatpush1.msra.mxu0 0.0
      %1248 = vmatprep.subr.mxu0 0.0
      %1249 = vmatpush1.msra.mxu0 0.0
      %1250 = vmatprep.subr.mxu0 0.0
      %1251 = vmatpush1.msra.mxu0 0.0
      %1252 = vmatprep.subr.mxu0 0.0
      %1253 = vmatpush1.msra.mxu0 0.0
      %1254 = vmatprep.subr.mxu0 0.0
      %1255 = vmatpush1.msra.mxu0 0.0
      %1256 = vmatprep.subr.mxu0 0.0
      %1257 = vmatpush1.msra.mxu0 0.0
      %1258 = vmatprep.subr.mxu0 0.0
      %1259 = vmatpush1.msra.mxu0 0.0
      %1260 = vmatprep.subr.mxu0 0.0
      %1261 = vmatpush1.msra.mxu0 0.0
      %1262 = vmatprep.subr.mxu0 0.0
      %1263 = vmatpush1.msra.mxu0 0.0
      %1264 = vmatprep.subr.mxu0 0.0
      %1265 = vmatpush1.msra.mxu0 %v1214
      %1266 = vmatprep.subr.mxu0 0.0
      %1267 = vmatpush1.msra.mxu0 %v1213
      %1268 = vmatprep.subr.mxu0 0.0
      %1269 = vmatpush1.msra.mxu0 %v1212
      %1270 = vmatprep.subr.mxu0 0.0
      %1271 = vmatpush1.msra.mxu0 %v1211
      %1272 = vmatprep.subr.mxu0 0.0
      %1273 = vmatpush2.msra.mxu0 0.0
      %1274 = vmatprep.subr.mxu0 0.0
      %1275 = vmatpush2.msra.mxu0 0.0
      %1276 = vmatprep.subr.mxu0 0.0
      %1277 = vmatpush2.msra.mxu0 0.0
      %1278 = vmatprep.subr.mxu0 0.0
      %1279 = vmatpush2.msra.mxu0 0.0
      %1280 = vmatprep.subr.mxu0 0.0
      %1281 = vmatpush2.msra.mxu0 0.0
      %1282 = vmatprep.subr.mxu0 0.0
      %1283 = vmatpush2.msra.mxu0 0.0
      %1284 = vmatprep.subr.mxu0 0.0
      %1285 = vmatpush2.msra.mxu0 0.0
      %1286 = vmatprep.subr.mxu0 0.0
      %1287 = vmatpush2.msra.mxu0 0.0
      %1288 = vmatprep.subr.mxu0 0.0
      %1289 = vmatpush2.msra.mxu0 0.0
      %1290 = vmatprep.subr.mxu0 0.0
      %1291 = vmatpush2.msra.mxu0 0.0
      %1292 = vmatprep.subr.mxu0 0.0
      %1293 = vmatpush2.msra.mxu0 0.0
      %1294 = vmatprep.subr.mxu0 0.0
      %1295 = vmatpush2.msra.mxu0 0.0
      %1296 = vmatprep.subr.mxu0 0.0
      %1297 = vmatpush2.msra.mxu0 0.0
      %1298 = vmatprep.subr.mxu0 0.0
      %1299 = vmatpush2.msra.mxu0 0.0
      %1300 = vmatprep.subr.mxu0 0.0
      %1301 = vmatpush2.msra.mxu0 0.0
      %1302 = vmatprep.subr.mxu0 0.0
      %1303 = vmatpush2.msra.mxu0 0.0
      %1304 = vmatprep.mubr.f32.mxu0 0.0
      %1305 = vmatmul.mubr.f32.gmra.mxu0 %v1217
      %v1306 = vpop.f32.mrf.mxu0
      %v1307 = vadd.f32 0.0, %v1306
      %v1308 = vpop.f32.mrf.mxu0
      %1309 = vmatprep.mubr.f32.mxu0 0.0
      %1310 = vmatmul.mubr.f32.gmra.mxu0 %v1220
      %v1311 = vpop.f32.mrf.mxu0
      %v1312 = vadd.f32 0.0, %v1311
      %v1313 = vpop.f32.mrf.mxu0
      %1314 = vmatprep.mubr.f32.mxu0 0.0
      %1315 = vmatmul.mubr.f32.gmra.mxu0 %v1223
      %v1316 = vpop.f32.mrf.mxu0
      %v1317 = vadd.f32 0.0, %v1316
      %v1318 = vpop.f32.mrf.mxu0
      %1319 = vmatprep.mubr.f32.mxu0 0.0
      %1320 = vmatmul.mubr.f32.gmra.mxu0 %v1226
      %v1321 = vpop.f32.mrf.mxu0
      %v1322 = vadd.f32 0.0, %v1321
      %v1323 = vpop.f32.mrf.mxu0
      %1324 = vmatprep.mubr.f32.mxu0 0.0
      %1325 = vmatmul.mubr.f32.gmra.mxu0 %v1229
      %v1326 = vpop.f32.mrf.mxu0
      %v1327 = vadd.f32 0.0, %v1326
      %v1328 = vpop.f32.mrf.mxu0
      %1329 = vmatprep.mubr.f32.mxu0 0.0
      %1330 = vmatmul.mubr.f32.gmra.mxu0 %v1232
      %v1331 = vpop.f32.mrf.mxu0
      %v1332 = vadd.f32 0.0, %v1331
      %v1333 = vpop.f32.mrf.mxu0
      %1334 = vmatprep.mubr.f32.mxu0 0.0
      %1335 = vmatmul.mubr.f32.gmra.mxu0 %v1235
      %v1336 = vpop.f32.mrf.mxu0
      %v1337 = vadd.f32 0.0, %v1336
      %v1338 = vpop.f32.mrf.mxu0
      %1339 = vmatprep.mubr.f32.mxu0 0.0
      %1340 = vmatmul.mubr.f32.gmra.mxu0 %v1238
      %v1341 = vpop.f32.mrf.mxu0
      %v1342 = vadd.f32 0.0, %v1341
      %v1343 = vpop.f32.mrf.mxu0
      %1344 = vdwg.mxu0
      %v1346 = vsel %vm1215, %v1169, 0
      %v1349 = vsel %vm1215, %v1174, 0
      %v1352 = vsel %vm1215, %v1179, 0
      %v1355 = vsel %vm1215, %v1184, 0
      %v1358 = vsel %vm1215, %v1189, 0
      %v1361 = vsel %vm1215, %v1194, 0
      %v1364 = vsel %vm1215, %v1199, 0
      %v1367 = vsel %vm1215, %v1204, 0
      %1369 = vmatprep.subr.mxu0 0.0
      %1370 = vmatpush1.msra.mxu0 0.0
      %1371 = vmatprep.subr.mxu0 0.0
      %1372 = vmatpush1.msra.mxu0 0.0
      %1373 = vmatprep.subr.mxu0 0.0
      %1374 = vmatpush1.msra.mxu0 0.0
      %1375 = vmatprep.subr.mxu0 0.0
      %1376 = vmatpush1.msra.mxu0 0.0
      %1377 = vmatprep.subr.mxu0 0.0
      %1378 = vmatpush1.msra.mxu0 0.0
      %1379 = vmatprep.subr.mxu0 0.0
      %1380 = vmatpush1.msra.mxu0 0.0
      %1381 = vmatprep.subr.mxu0 0.0
      %1382 = vmatpush1.msra.mxu0 0.0
      %1383 = vmatprep.subr.mxu0 0.0
      %1384 = vmatpush1.msra.mxu0 0.0
      %1385 = vmatprep.subr.mxu0 0.0
      %1386 = vmatpush1.msra.mxu0 0.0
      %1387 = vmatprep.subr.mxu0 0.0
      %1388 = vmatpush1.msra.mxu0 0.0
      %1389 = vmatprep.subr.mxu0 0.0
      %1390 = vmatpush1.msra.mxu0 0.0
      %1391 = vmatprep.subr.mxu0 0.0
      %1392 = vmatpush1.msra.mxu0 0.0
      %1393 = vmatprep.subr.mxu0 0.0
      %1394 = vmatpush1.msra.mxu0 %v1210
      %1395 = vmatprep.subr.mxu0 0.0
      %1396 = vmatpush1.msra.mxu0 %v1209
      %1397 = vmatprep.subr.mxu0 0.0
      %1398 = vmatpush1.msra.mxu0 %v1208
      %1399 = vmatprep.subr.mxu0 0.0
      %1400 = vmatpush1.msra.mxu0 %v1207
      %1401 = vmatprep.subr.mxu0 0.0
      %1402 = vmatpush2.msra.mxu0 0.0
      %1403 = vmatprep.subr.mxu0 0.0
      %1404 = vmatpush2.msra.mxu0 0.0
      %1405 = vmatprep.subr.mxu0 0.0
      %1406 = vmatpush2.msra.mxu0 0.0
      %1407 = vmatprep.subr.mxu0 0.0
      %1408 = vmatpush2.msra.mxu0 0.0
      %1409 = vmatprep.subr.mxu0 0.0
      %1410 = vmatpush2.msra.mxu0 0.0
      %1411 = vmatprep.subr.mxu0 0.0
      %1412 = vmatpush2.msra.mxu0 0.0
      %1413 = vmatprep.subr.mxu0 0.0
      %1414 = vmatpush2.msra.mxu0 0.0
      %1415 = vmatprep.subr.mxu0 0.0
      %1416 = vmatpush2.msra.mxu0 0.0
      %1417 = vmatprep.subr.mxu0 0.0
      %1418 = vmatpush2.msra.mxu0 0.0
      %1419 = vmatprep.subr.mxu0 0.0
      %1420 = vmatpush2.msra.mxu0 0.0
      %1421 = vmatprep.subr.mxu0 0.0
      %1422 = vmatpush2.msra.mxu0 0.0
      %1423 = vmatprep.subr.mxu0 0.0
      %1424 = vmatpush2.msra.mxu0 0.0
      %1425 = vmatprep.subr.mxu0 0.0
      %1426 = vmatpush2.msra.mxu0 0.0
      %1427 = vmatprep.subr.mxu0 0.0
      %1428 = vmatpush2.msra.mxu0 0.0
      %1429 = vmatprep.subr.mxu0 0.0
      %1430 = vmatpush2.msra.mxu0 0.0
      %1431 = vmatprep.subr.mxu0 0.0
      %1432 = vmatpush2.msra.mxu0 0.0
      %1433 = vmatprep.mubr.f32.mxu0 0.0
      %1434 = vmatmul.mubr.f32.gmra.mxu0 %v1346
      %v1435 = vpop.f32.mrf.mxu0
      %v1436 = vadd.f32 %v1307, %v1435
      %v1437 = vpop.f32.mrf.mxu0
      %1438 = vmatprep.mubr.f32.mxu0 0.0
      %1439 = vmatmul.mubr.f32.gmra.mxu0 %v1349
      %v1440 = vpop.f32.mrf.mxu0
      %v1441 = vadd.f32 %v1312, %v1440
      %v1442 = vpop.f32.mrf.mxu0
      %1443 = vmatprep.mubr.f32.mxu0 0.0
      %1444 = vmatmul.mubr.f32.gmra.mxu0 %v1352
      %v1445 = vpop.f32.mrf.mxu0
      %v1446 = vadd.f32 %v1317, %v1445
      %v1447 = vpop.f32.mrf.mxu0
      %1448 = vmatprep.mubr.f32.mxu0 0.0
      %1449 = vmatmul.mubr.f32.gmra.mxu0 %v1355
      %v1450 = vpop.f32.mrf.mxu0
      %v1451 = vadd.f32 %v1322, %v1450
      %v1452 = vpop.f32.mrf.mxu0
      %1453 = vmatprep.mubr.f32.mxu0 0.0
      %1454 = vmatmul.mubr.f32.gmra.mxu0 %v1358
      %v1455 = vpop.f32.mrf.mxu0
      %v1456 = vadd.f32 %v1327, %v1455
      %v1457 = vpop.f32.mrf.mxu0
      %1458 = vmatprep.mubr.f32.mxu0 0.0
      %1459 = vmatmul.mubr.f32.gmra.mxu0 %v1361
      %v1460 = vpop.f32.mrf.mxu0
      %v1461 = vadd.f32 %v1332, %v1460
      %v1462 = vpop.f32.mrf.mxu0
      %1463 = vmatprep.mubr.f32.mxu0 0.0
      %1464 = vmatmul.mubr.f32.gmra.mxu0 %v1364
      %v1465 = vpop.f32.mrf.mxu0
      %v1466 = vadd.f32 %v1337, %v1465
      %v1467 = vpop.f32.mrf.mxu0
      %1468 = vmatprep.mubr.f32.mxu0 0.0
      %1469 = vmatmul.mubr.f32.gmra.mxu0 %v1367
      %v1470 = vpop.f32.mrf.mxu0
      %v1471 = vadd.f32 %v1342, %v1470
      %v1472 = vpop.f32.mrf.mxu0
      %1473 = vdwg.mxu0
      %v1474 = vld [vmem:[%s8] sm:$0x1]
      %v1476 = vlaneseq
      %v1477 = vshrl.u32 %v1476, 7
      %v1478 = vsub.s32 0, %v1477
      %v1479 = vrot.slane %v1474, %v1478
      %v1481 = vadd.f32 %v1436, %v1479
      %v1482 = vadd.f32 %v1441, %v1479
      %v1483 = vadd.f32 %v1446, %v1479
      %v1484 = vadd.f32 %v1451, %v1479
      %v1485 = vadd.f32 %v1456, %v1479
      %v1486 = vadd.f32 %v1461, %v1479
      %v1487 = vadd.f32 %v1466, %v1479
      %v1488 = vadd.f32 %v1471, %v1479
      %v1489 = vmax.f32 %v1481, 0.0
      %v1490 = vmax.f32 %v1482, 0.0
      %v1491 = vmax.f32 %v1483, 0.0
      %v1492 = vmax.f32 %v1484, 0.0
      %v1493 = vmax.f32 %v1485, 0.0
      %v1494 = vmax.f32 %v1486, 0.0
      %v1495 = vmax.f32 %v1487, 0.0
      %v1496 = vmax.f32 %v1488, 0.0
      %v1497 = vld [vmem:[%s661] sm:$0xff]
      %v1498 = vld [vmem:[%s9] sm:$0xff]
      %v1499 = vld [vmem:[%s10] sm:$0xff]
      %vm1500 = vcmask 64512
      %v1502 = vsel %vm1500, %v1498, 0
      %1504 = vmatprep.subr.mxu0 0.0
      %1505 = vmatpush1.msra.mxu0 0.0
      %1506 = vmatprep.subr.mxu0 0.0
      %1507 = vmatpush1.msra.mxu0 0.0
      %1508 = vmatprep.subr.mxu0 0.0
      %1509 = vmatpush1.msra.mxu0 0.0
      %1510 = vmatprep.subr.mxu0 0.0
      %1511 = vmatpush1.msra.mxu0 0.0
      %1512 = vmatprep.subr.mxu0 0.0
      %1513 = vmatpush1.msra.mxu0 0.0
      %1514 = vmatprep.subr.mxu0 0.0
      %1515 = vmatpush1.msra.mxu0 0.0
      %1516 = vmatprep.subr.mxu0 0.0
      %1517 = vmatpush1.msra.mxu0 0.0
      %1518 = vmatprep.subr.mxu0 0.0
      %1519 = vmatpush1.msra.mxu0 0.0
      %1520 = vmatprep.subr.mxu0 0.0
      %1521 = vmatpush1.msra.mxu0 0.0
      %1522 = vmatprep.subr.mxu0 0.0
      %1523 = vmatpush1.msra.mxu0 0.0
      %1524 = vmatprep.subr.mxu0 0.0
      %1525 = vmatpush1.msra.mxu0 0.0
      %1526 = vmatprep.subr.mxu0 0.0
      %1527 = vmatpush1.msra.mxu0 0.0
      %1528 = vmatprep.subr.mxu0 0.0
      %1529 = vmatpush1.msra.mxu0 0.0
      %1530 = vmatprep.subr.mxu0 0.0
      %1531 = vmatpush1.msra.mxu0 0.0
      %1532 = vmatprep.subr.mxu0 0.0
      %1533 = vmatpush1.msra.mxu0 0.0
      %1534 = vmatprep.subr.mxu0 0.0
      %1535 = vmatpush1.msra.mxu0 %v1497
      %1536 = vmatprep.subr.mxu0 0.0
      %1537 = vmatpush2.msra.mxu0 0.0
      %1538 = vmatprep.subr.mxu0 0.0
      %1539 = vmatpush2.msra.mxu0 0.0
      %1540 = vmatprep.subr.mxu0 0.0
      %1541 = vmatpush2.msra.mxu0 0.0
      %1542 = vmatprep.subr.mxu0 0.0
      %1543 = vmatpush2.msra.mxu0 0.0
      %1544 = vmatprep.subr.mxu0 0.0
      %1545 = vmatpush2.msra.mxu0 0.0
      %1546 = vmatprep.subr.mxu0 0.0
      %1547 = vmatpush2.msra.mxu0 0.0
      %1548 = vmatprep.subr.mxu0 0.0
      %1549 = vmatpush2.msra.mxu0 0.0
      %1550 = vmatprep.subr.mxu0 0.0
      %1551 = vmatpush2.msra.mxu0 0.0
      %1552 = vmatprep.subr.mxu0 0.0
      %1553 = vmatpush2.msra.mxu0 0.0
      %1554 = vmatprep.subr.mxu0 0.0
      %1555 = vmatpush2.msra.mxu0 0.0
      %1556 = vmatprep.subr.mxu0 0.0
      %1557 = vmatpush2.msra.mxu0 0.0
      %1558 = vmatprep.subr.mxu0 0.0
      %1559 = vmatpush2.msra.mxu0 0.0
      %1560 = vmatprep.subr.mxu0 0.0
      %1561 = vmatpush2.msra.mxu0 0.0
      %1562 = vmatprep.subr.mxu0 0.0
      %1563 = vmatpush2.msra.mxu0 0.0
      %1564 = vmatprep.subr.mxu0 0.0
      %1565 = vmatpush2.msra.mxu0 0.0
      %1566 = vmatprep.subr.mxu0 0.0
      %1567 = vmatpush2.msra.mxu0 0.0
      %1568 = vmatprep.mubr.f32.mxu0 0.0
      %1569 = vmatmul.mubr.f32.gmra.mxu0 %v1502
      %v1570 = vpop.f32.mrf.mxu0
      %v1571 = vadd.f32 %v1499, %v1570
      %v1572 = vpop.f32.mrf.mxu0
      %1573 = vdwg.mxu0
      %v1574 = vmax.f32 %v1571, 0.0
      %v1575 = vld [vmem:[%s11] sm:$0xff]
      %v1576 = vld [vmem:[%s12] sm:$0xff]
      %v1578 = vsel %vm1500, %v1575, 0
      %1580 = vmatprep.subr.mxu0 0.0
      %1581 = vmatpush1.msra.mxu0 0.0
      %1582 = vmatprep.subr.mxu0 0.0
      %1583 = vmatpush1.msra.mxu0 0.0
      %1584 = vmatprep.subr.mxu0 0.0
      %1585 = vmatpush1.msra.mxu0 0.0
      %1586 = vmatprep.subr.mxu0 0.0
      %1587 = vmatpush1.msra.mxu0 0.0
      %1588 = vmatprep.subr.mxu0 0.0
      %1589 = vmatpush1.msra.mxu0 0.0
      %1590 = vmatprep.subr.mxu0 0.0
      %1591 = vmatpush1.msra.mxu0 0.0
      %1592 = vmatprep.subr.mxu0 0.0
      %1593 = vmatpush1.msra.mxu0 0.0
      %1594 = vmatprep.subr.mxu0 0.0
      %1595 = vmatpush1.msra.mxu0 0.0
      %1596 = vmatprep.subr.mxu0 0.0
      %1597 = vmatpush1.msra.mxu0 0.0
      %1598 = vmatprep.subr.mxu0 0.0
      %1599 = vmatpush1.msra.mxu0 0.0
      %1600 = vmatprep.subr.mxu0 0.0
      %1601 = vmatpush1.msra.mxu0 0.0
      %1602 = vmatprep.subr.mxu0 0.0
      %1603 = vmatpush1.msra.mxu0 0.0
      %1604 = vmatprep.subr.mxu0 0.0
      %1605 = vmatpush1.msra.mxu0 0.0
      %1606 = vmatprep.subr.mxu0 0.0
      %1607 = vmatpush1.msra.mxu0 0.0
      %1608 = vmatprep.subr.mxu0 0.0
      %1609 = vmatpush1.msra.mxu0 0.0
      %1610 = vmatprep.subr.mxu0 0.0
      %1611 = vmatpush1.msra.mxu0 %v1574
      %1612 = vmatprep.subr.mxu0 0.0
      %1613 = vmatpush2.msra.mxu0 0.0
      %1614 = vmatprep.subr.mxu0 0.0
      %1615 = vmatpush2.msra.mxu0 0.0
      %1616 = vmatprep.subr.mxu0 0.0
      %1617 = vmatpush2.msra.mxu0 0.0
      %1618 = vmatprep.subr.mxu0 0.0
      %1619 = vmatpush2.msra.mxu0 0.0
      %1620 = vmatprep.subr.mxu0 0.0
      %1621 = vmatpush2.msra.mxu0 0.0
      %1622 = vmatprep.subr.mxu0 0.0
      %1623 = vmatpush2.msra.mxu0 0.0
      %1624 = vmatprep.subr.mxu0 0.0
      %1625 = vmatpush2.msra.mxu0 0.0
      %1626 = vmatprep.subr.mxu0 0.0
      %1627 = vmatpush2.msra.mxu0 0.0
      %1628 = vmatprep.subr.mxu0 0.0
      %1629 = vmatpush2.msra.mxu0 0.0
      %1630 = vmatprep.subr.mxu0 0.0
      %1631 = vmatpush2.msra.mxu0 0.0
      %1632 = vmatprep.subr.mxu0 0.0
      %1633 = vmatpush2.msra.mxu0 0.0
      %1634 = vmatprep.subr.mxu0 0.0
      %1635 = vmatpush2.msra.mxu0 0.0
      %1636 = vmatprep.subr.mxu0 0.0
      %1637 = vmatpush2.msra.mxu0 0.0
      %1638 = vmatprep.subr.mxu0 0.0
      %1639 = vmatpush2.msra.mxu0 0.0
      %1640 = vmatprep.subr.mxu0 0.0
      %1641 = vmatpush2.msra.mxu0 0.0
      %1642 = vmatprep.subr.mxu0 0.0
      %1643 = vmatpush2.msra.mxu0 0.0
      %1644 = vmatprep.mubr.f32.mxu0 0.0
      %1645 = vmatmul.mubr.f32.gmra.mxu0 %v1578
      %v1646 = vpop.f32.mrf.mxu0
      %v1647 = vadd.f32 %v1576, %v1646
      %v1648 = vpop.f32.mrf.mxu0
      %1649 = vdwg.mxu0
      %v1650 = vmax.f32 %v1647, 0.0
      %v1651 = vld [vmem:[%s13] sm:$0xff]
      %v1652 = vld [vmem:[%s14] sm:$0xff]
      %v1654 = vsel %vm1500, %v1651, 0
      %1656 = vmatprep.subr.mxu0 0.0
      %1657 = vmatpush1.msra.mxu0 0.0
      %1658 = vmatprep.subr.mxu0 0.0
      %1659 = vmatpush1.msra.mxu0 0.0
      %1660 = vmatprep.subr.mxu0 0.0
      %1661 = vmatpush1.msra.mxu0 0.0
      %1662 = vmatprep.subr.mxu0 0.0
      %1663 = vmatpush1.msra.mxu0 0.0
      %1664 = vmatprep.subr.mxu0 0.0
      %1665 = vmatpush1.msra.mxu0 0.0
      %1666 = vmatprep.subr.mxu0 0.0
      %1667 = vmatpush1.msra.mxu0 0.0
      %1668 = vmatprep.subr.mxu0 0.0
      %1669 = vmatpush1.msra.mxu0 0.0
      %1670 = vmatprep.subr.mxu0 0.0
      %1671 = vmatpush1.msra.mxu0 0.0
      %1672 = vmatprep.subr.mxu0 0.0
      %1673 = vmatpush1.msra.mxu0 0.0
      %1674 = vmatprep.subr.mxu0 0.0
      %1675 = vmatpush1.msra.mxu0 0.0
      %1676 = vmatprep.subr.mxu0 0.0
      %1677 = vmatpush1.msra.mxu0 0.0
      %1678 = vmatprep.subr.mxu0 0.0
      %1679 = vmatpush1.msra.mxu0 0.0
      %1680 = vmatprep.subr.mxu0 0.0
      %1681 = vmatpush1.msra.mxu0 0.0
      %1682 = vmatprep.subr.mxu0 0.0
      %1683 = vmatpush1.msra.mxu0 0.0
      %1684 = vmatprep.subr.mxu0 0.0
      %1685 = vmatpush1.msra.mxu0 0.0
      %1686 = vmatprep.subr.mxu0 0.0
      %1687 = vmatpush1.msra.mxu0 %v1650
      %1688 = vmatprep.subr.mxu0 0.0
      %1689 = vmatpush2.msra.mxu0 0.0
      %1690 = vmatprep.subr.mxu0 0.0
      %1691 = vmatpush2.msra.mxu0 0.0
      %1692 = vmatprep.subr.mxu0 0.0
      %1693 = vmatpush2.msra.mxu0 0.0
      %1694 = vmatprep.subr.mxu0 0.0
      %1695 = vmatpush2.msra.mxu0 0.0
      %1696 = vmatprep.subr.mxu0 0.0
      %1697 = vmatpush2.msra.mxu0 0.0
      %1698 = vmatprep.subr.mxu0 0.0
      %1699 = vmatpush2.msra.mxu0 0.0
      %1700 = vmatprep.subr.mxu0 0.0
      %1701 = vmatpush2.msra.mxu0 0.0
      %1702 = vmatprep.subr.mxu0 0.0
      %1703 = vmatpush2.msra.mxu0 0.0
      %1704 = vmatprep.subr.mxu0 0.0
      %1705 = vmatpush2.msra.mxu0 0.0
      %1706 = vmatprep.subr.mxu0 0.0
      %1707 = vmatpush2.msra.mxu0 0.0
      %1708 = vmatprep.subr.mxu0 0.0
      %1709 = vmatpush2.msra.mxu0 0.0
      %1710 = vmatprep.subr.mxu0 0.0
      %1711 = vmatpush2.msra.mxu0 0.0
      %1712 = vmatprep.subr.mxu0 0.0
      %1713 = vmatpush2.msra.mxu0 0.0
      %1714 = vmatprep.subr.mxu0 0.0
      %1715 = vmatpush2.msra.mxu0 0.0
      %1716 = vmatprep.subr.mxu0 0.0
      %1717 = vmatpush2.msra.mxu0 0.0
      %1718 = vmatprep.subr.mxu0 0.0
      %1719 = vmatpush2.msra.mxu0 0.0
      %1720 = vmatprep.mubr.f32.mxu0 0.0
      %1721 = vmatmul.mubr.f32.gmra.mxu0 %v1654
      %v1722 = vpop.f32.mrf.mxu0
      %v1723 = vadd.f32 %v1652, %v1722
      %v1724 = vpop.f32.mrf.mxu0
      %1725 = vdwg.mxu0
      %v1726 = vmax.f32 %v1723, 0.0
      %v1727 = vld [vmem:[%s16] sm:$0xff]
      %v1728 = vld [vmem:[%s16 + $0x8] sm:$0xff]
      %v1729 = vld [vmem:[%s16 + $0x10] sm:$0xff]
      %v1730 = vld [vmem:[%s16 + $0x18] sm:$0xff]
      %v1731 = vld [vmem:[%s16 + $0x20] sm:$0xff]
      %v1732 = vld [vmem:[%s16 + $0x28] sm:$0xff]
      %v1733 = vld [vmem:[%s16 + $0x30] sm:$0xff]
      %v1734 = vld [vmem:[%s16 + $0x38] sm:$0xff]
      %v1735 = vld [vmem:[%s16 + $0x40] sm:$0xff]
      %v1736 = vld [vmem:[%s16 + $0x48] sm:$0xff]
      %v1737 = vld [vmem:[%s16 + $0x50] sm:$0xff]
      %v1738 = vld [vmem:[%s16 + $0x58] sm:$0xff]
      %v1739 = vld [vmem:[%s16 + $0x60] sm:$0xff]
      %v1740 = vld [vmem:[%s16 + $0x68] sm:$0xff]
      %v1741 = vld [vmem:[%s16 + $0x70] sm:$0xff]
      %v1742 = vld [vmem:[%s16 + $0x78] sm:$0xff]
      %v1743 = vld [vmem:[%s17] sm:$0xff]
      %v1744 = vld [vmem:[%s17 + $0x8] sm:$0xff]
      %v1745 = vld [vmem:[%s17 + $0x10] sm:$0xff]
      %v1746 = vld [vmem:[%s17 + $0x18] sm:$0xff]
      %v1747 = vld [vmem:[%s17 + $0x20] sm:$0xff]
      %v1748 = vld [vmem:[%s17 + $0x28] sm:$0xff]
      %v1749 = vld [vmem:[%s17 + $0x30] sm:$0xff]
      %v1750 = vld [vmem:[%s17 + $0x38] sm:$0xff]
      %v1751 = vld [vmem:[%s17 + $0x40] sm:$0xff]
      %v1752 = vld [vmem:[%s17 + $0x48] sm:$0xff]
      %v1753 = vld [vmem:[%s17 + $0x50] sm:$0xff]
      %v1754 = vld [vmem:[%s17 + $0x58] sm:$0xff]
      %v1755 = vld [vmem:[%s17 + $0x60] sm:$0xff]
      %v1756 = vld [vmem:[%s17 + $0x68] sm:$0xff]
      %v1757 = vld [vmem:[%s17 + $0x70] sm:$0xff]
      %v1758 = vld [vmem:[%s17 + $0x78] sm:$0xff]
      %v1760 = vsel %vm1500, %v1727, 0
      %v1763 = vsel %vm1500, %v1728, 0
      %v1766 = vsel %vm1500, %v1729, 0
      %v1769 = vsel %vm1500, %v1730, 0
      %v1772 = vsel %vm1500, %v1731, 0
      %v1775 = vsel %vm1500, %v1732, 0
      %v1778 = vsel %vm1500, %v1733, 0
      %v1781 = vsel %vm1500, %v1734, 0
      %v1784 = vsel %vm1500, %v1735, 0
      %v1787 = vsel %vm1500, %v1736, 0
      %v1790 = vsel %vm1500, %v1737, 0
      %v1793 = vsel %vm1500, %v1738, 0
      %v1796 = vsel %vm1500, %v1739, 0
      %v1799 = vsel %vm1500, %v1740, 0
      %v1802 = vsel %vm1500, %v1741, 0
      %v1805 = vsel %vm1500, %v1742, 0
      %1807 = vmatprep.subr.mxu0 0.0
      %1808 = vmatpush1.msra.mxu0 0.0
      %1809 = vmatprep.subr.mxu0 0.0
      %1810 = vmatpush1.msra.mxu0 0.0
      %1811 = vmatprep.subr.mxu0 0.0
      %1812 = vmatpush1.msra.mxu0 0.0
      %1813 = vmatprep.subr.mxu0 0.0
      %1814 = vmatpush1.msra.mxu0 0.0
      %1815 = vmatprep.subr.mxu0 0.0
      %1816 = vmatpush1.msra.mxu0 0.0
      %1817 = vmatprep.subr.mxu0 0.0
      %1818 = vmatpush1.msra.mxu0 0.0
      %1819 = vmatprep.subr.mxu0 0.0
      %1820 = vmatpush1.msra.mxu0 0.0
      %1821 = vmatprep.subr.mxu0 0.0
      %1822 = vmatpush1.msra.mxu0 0.0
      %1823 = vmatprep.subr.mxu0 0.0
      %1824 = vmatpush1.msra.mxu0 0.0
      %1825 = vmatprep.subr.mxu0 0.0
      %1826 = vmatpush1.msra.mxu0 0.0
      %1827 = vmatprep.subr.mxu0 0.0
      %1828 = vmatpush1.msra.mxu0 0.0
      %1829 = vmatprep.subr.mxu0 0.0
      %1830 = vmatpush1.msra.mxu0 0.0
      %1831 = vmatprep.subr.mxu0 0.0
      %1832 = vmatpush1.msra.mxu0 0.0
      %1833 = vmatprep.subr.mxu0 0.0
      %1834 = vmatpush1.msra.mxu0 0.0
      %1835 = vmatprep.subr.mxu0 0.0
      %1836 = vmatpush1.msra.mxu0 0.0
      %1837 = vmatprep.subr.mxu0 0.0
      %1838 = vmatpush1.msra.mxu0 %v1726
      %1839 = vmatprep.subr.mxu0 0.0
      %1840 = vmatpush2.msra.mxu0 0.0
      %1841 = vmatprep.subr.mxu0 0.0
      %1842 = vmatpush2.msra.mxu0 0.0
      %1843 = vmatprep.subr.mxu0 0.0
      %1844 = vmatpush2.msra.mxu0 0.0
      %1845 = vmatprep.subr.mxu0 0.0
      %1846 = vmatpush2.msra.mxu0 0.0
      %1847 = vmatprep.subr.mxu0 0.0
      %1848 = vmatpush2.msra.mxu0 0.0
      %1849 = vmatprep.subr.mxu0 0.0
      %1850 = vmatpush2.msra.mxu0 0.0
      %1851 = vmatprep.subr.mxu0 0.0
      %1852 = vmatpush2.msra.mxu0 0.0
      %1853 = vmatprep.subr.mxu0 0.0
      %1854 = vmatpush2.msra.mxu0 0.0
      %1855 = vmatprep.subr.mxu0 0.0
      %1856 = vmatpush2.msra.mxu0 0.0
      %1857 = vmatprep.subr.mxu0 0.0
      %1858 = vmatpush2.msra.mxu0 0.0
      %1859 = vmatprep.subr.mxu0 0.0
      %1860 = vmatpush2.msra.mxu0 0.0
      %1861 = vmatprep.subr.mxu0 0.0
      %1862 = vmatpush2.msra.mxu0 0.0
      %1863 = vmatprep.subr.mxu0 0.0
      %1864 = vmatpush2.msra.mxu0 0.0
      %1865 = vmatprep.subr.mxu0 0.0
      %1866 = vmatpush2.msra.mxu0 0.0
      %1867 = vmatprep.subr.mxu0 0.0
      %1868 = vmatpush2.msra.mxu0 0.0
      %1869 = vmatprep.subr.mxu0 0.0
      %1870 = vmatpush2.msra.mxu0 0.0
      %1871 = vmatprep.mubr.f32.mxu0 0.0
      %1872 = vmatmul.mubr.f32.gmra.mxu0 %v1760
      %v1873 = vpop.f32.mrf.mxu0
      %v1874 = vadd.f32 %v1743, %v1873
      %v1875 = vpop.f32.mrf.mxu0
      %1876 = vmatprep.mubr.f32.mxu0 0.0
      %1877 = vmatmul.mubr.f32.gmra.mxu0 %v1763
      %v1878 = vpop.f32.mrf.mxu0
      %v1879 = vadd.f32 %v1744, %v1878
      %v1880 = vpop.f32.mrf.mxu0
      %1881 = vmatprep.mubr.f32.mxu0 0.0
      %1882 = vmatmul.mubr.f32.gmra.mxu0 %v1766
      %v1883 = vpop.f32.mrf.mxu0
      %v1884 = vadd.f32 %v1745, %v1883
      %v1885 = vpop.f32.mrf.mxu0
      %1886 = vmatprep.mubr.f32.mxu0 0.0
      %1887 = vmatmul.mubr.f32.gmra.mxu0 %v1769
      %v1888 = vpop.f32.mrf.mxu0
      %v1889 = vadd.f32 %v1746, %v1888
      %v1890 = vpop.f32.mrf.mxu0
      %1891 = vmatprep.mubr.f32.mxu0 0.0
      %1892 = vmatmul.mubr.f32.gmra.mxu0 %v1772
      %v1893 = vpop.f32.mrf.mxu0
      %v1894 = vadd.f32 %v1747, %v1893
      %v1895 = vpop.f32.mrf.mxu0
      %1896 = vmatprep.mubr.f32.mxu0 0.0
      %1897 = vmatmul.mubr.f32.gmra.mxu0 %v1775
      %v1898 = vpop.f32.mrf.mxu0
      %v1899 = vadd.f32 %v1748, %v1898
      %v1900 = vpop.f32.mrf.mxu0
      %1901 = vmatprep.mubr.f32.mxu0 0.0
      %1902 = vmatmul.mubr.f32.gmra.mxu0 %v1778
      %v1903 = vpop.f32.mrf.mxu0
      %v1904 = vadd.f32 %v1749, %v1903
      %v1905 = vpop.f32.mrf.mxu0
      %1906 = vmatprep.mubr.f32.mxu0 0.0
      %1907 = vmatmul.mubr.f32.gmra.mxu0 %v1781
      %v1908 = vpop.f32.mrf.mxu0
      %v1909 = vadd.f32 %v1750, %v1908
      %v1910 = vpop.f32.mrf.mxu0
      %1911 = vmatprep.mubr.f32.mxu0 0.0
      %1912 = vmatmul.mubr.f32.gmra.mxu0 %v1784
      %v1913 = vpop.f32.mrf.mxu0
      %v1914 = vadd.f32 %v1751, %v1913
      %v1915 = vpop.f32.mrf.mxu0
      %1916 = vmatprep.mubr.f32.mxu0 0.0
      %1917 = vmatmul.mubr.f32.gmra.mxu0 %v1787
      %v1918 = vpop.f32.mrf.mxu0
      %v1919 = vadd.f32 %v1752, %v1918
      %v1920 = vpop.f32.mrf.mxu0
      %1921 = vmatprep.mubr.f32.mxu0 0.0
      %1922 = vmatmul.mubr.f32.gmra.mxu0 %v1790
      %v1923 = vpop.f32.mrf.mxu0
      %v1924 = vadd.f32 %v1753, %v1923
      %v1925 = vpop.f32.mrf.mxu0
      %1926 = vmatprep.mubr.f32.mxu0 0.0
      %1927 = vmatmul.mubr.f32.gmra.mxu0 %v1793
      %v1928 = vpop.f32.mrf.mxu0
      %v1929 = vadd.f32 %v1754, %v1928
      %v1930 = vpop.f32.mrf.mxu0
      %1931 = vmatprep.mubr.f32.mxu0 0.0
      %1932 = vmatmul.mubr.f32.gmra.mxu0 %v1796
      %v1933 = vpop.f32.mrf.mxu0
      %v1934 = vadd.f32 %v1755, %v1933
      %v1935 = vpop.f32.mrf.mxu0
      %1936 = vmatprep.mubr.f32.mxu0 0.0
      %1937 = vmatmul.mubr.f32.gmra.mxu0 %v1799
      %v1938 = vpop.f32.mrf.mxu0
      %v1939 = vadd.f32 %v1756, %v1938
      %v1940 = vpop.f32.mrf.mxu0
      %1941 = vmatprep.mubr.f32.mxu0 0.0
      %1942 = vmatmul.mubr.f32.gmra.mxu0 %v1802
      %v1943 = vpop.f32.mrf.mxu0
      %v1944 = vadd.f32 %v1757, %v1943
      %v1945 = vpop.f32.mrf.mxu0
      %1946 = vmatprep.mubr.f32.mxu0 0.0
      %1947 = vmatmul.mubr.f32.gmra.mxu0 %v1805
      %v1948 = vpop.f32.mrf.mxu0
      %v1949 = vadd.f32 %v1758, %v1948
      %v1950 = vpop.f32.mrf.mxu0
      %1951 = vdwg.mxu0
      %v1952 = vld [vmem:[%s15] sm:$0xff]
      %v1953 = vld [vmem:[%s15 + $0x8] sm:$0xff]
      %v1954 = vld [vmem:[%s15 + $0x10] sm:$0xff]
      %v1955 = vld [vmem:[%s15 + $0x18] sm:$0xff]
      %v1956 = vld [vmem:[%s15 + $0x20] sm:$0xff]
      %v1957 = vld [vmem:[%s15 + $0x28] sm:$0xff]
      %v1958 = vld [vmem:[%s15 + $0x30] sm:$0xff]
      %v1959 = vld [vmem:[%s15 + $0x38] sm:$0xff]
      %v1960 = vld [vmem:[%s15 + $0x40] sm:$0xff]
      %v1961 = vld [vmem:[%s15 + $0x48] sm:$0xff]
      %v1962 = vld [vmem:[%s15 + $0x50] sm:$0xff]
      %v1963 = vld [vmem:[%s15 + $0x58] sm:$0xff]
      %v1964 = vld [vmem:[%s15 + $0x60] sm:$0xff]
      %v1965 = vld [vmem:[%s15 + $0x68] sm:$0xff]
      %v1966 = vld [vmem:[%s15 + $0x70] sm:$0xff]
      %v1967 = vld [vmem:[%s15 + $0x78] sm:$0xff]
      %v1969 = vsel %vm681, %v1952, 0
      %v1972 = vsel %vm681, %v1953, 0
      %v1975 = vsel %vm681, %v1954, 0
      %v1978 = vsel %vm681, %v1955, 0
      %v1981 = vsel %vm681, %v1956, 0
      %v1984 = vsel %vm681, %v1957, 0
      %v1987 = vsel %vm681, %v1958, 0
      %v1990 = vsel %vm681, %v1959, 0
      %v1993 = vsel %vm681, %v1960, 0
      %v1996 = vsel %vm681, %v1961, 0
      %v1999 = vsel %vm681, %v1962, 0
      %v2002 = vsel %vm681, %v1963, 0
      %v2005 = vsel %vm681, %v1964, 0
      %v2008 = vsel %vm681, %v1965, 0
      %v2011 = vsel %vm681, %v1966, 0
      %v2014 = vsel %vm681, %v1967, 0
      %2016 = vmatprep.subr.mxu0 0.0
      %2017 = vmatpush1.msra.mxu0 0.0
      %2018 = vmatprep.subr.mxu0 0.0
      %2019 = vmatpush1.msra.mxu0 0.0
      %2020 = vmatprep.subr.mxu0 0.0
      %2021 = vmatpush1.msra.mxu0 0.0
      %2022 = vmatprep.subr.mxu0 0.0
      %2023 = vmatpush1.msra.mxu0 0.0
      %2024 = vmatprep.subr.mxu0 0.0
      %2025 = vmatpush1.msra.mxu0 0.0
      %2026 = vmatprep.subr.mxu0 0.0
      %2027 = vmatpush1.msra.mxu0 0.0
      %2028 = vmatprep.subr.mxu0 0.0
      %2029 = vmatpush1.msra.mxu0 0.0
      %2030 = vmatprep.subr.mxu0 0.0
      %2031 = vmatpush1.msra.mxu0 0.0
      %2032 = vmatprep.subr.mxu0 0.0
      %2033 = vmatpush1.msra.mxu0 %v1496
      %2034 = vmatprep.subr.mxu0 0.0
      %2035 = vmatpush1.msra.mxu0 %v1495
      %2036 = vmatprep.subr.mxu0 0.0
      %2037 = vmatpush1.msra.mxu0 %v1494
      %2038 = vmatprep.subr.mxu0 0.0
      %2039 = vmatpush1.msra.mxu0 %v1493
      %2040 = vmatprep.subr.mxu0 0.0
      %2041 = vmatpush1.msra.mxu0 %v1492
      %2042 = vmatprep.subr.mxu0 0.0
      %2043 = vmatpush1.msra.mxu0 %v1491
      %2044 = vmatprep.subr.mxu0 0.0
      %2045 = vmatpush1.msra.mxu0 %v1490
      %2046 = vmatprep.subr.mxu0 0.0
      %2047 = vmatpush1.msra.mxu0 %v1489
      %2048 = vmatprep.subr.mxu0 0.0
      %2049 = vmatpush2.msra.mxu0 0.0
      %2050 = vmatprep.subr.mxu0 0.0
      %2051 = vmatpush2.msra.mxu0 0.0
      %2052 = vmatprep.subr.mxu0 0.0
      %2053 = vmatpush2.msra.mxu0 0.0
      %2054 = vmatprep.subr.mxu0 0.0
      %2055 = vmatpush2.msra.mxu0 0.0
      %2056 = vmatprep.subr.mxu0 0.0
      %2057 = vmatpush2.msra.mxu0 0.0
      %2058 = vmatprep.subr.mxu0 0.0
      %2059 = vmatpush2.msra.mxu0 0.0
      %2060 = vmatprep.subr.mxu0 0.0
      %2061 = vmatpush2.msra.mxu0 0.0
      %2062 = vmatprep.subr.mxu0 0.0
      %2063 = vmatpush2.msra.mxu0 0.0
      %2064 = vmatprep.subr.mxu0 0.0
      %2065 = vmatpush2.msra.mxu0 0.0
      %2066 = vmatprep.subr.mxu0 0.0
      %2067 = vmatpush2.msra.mxu0 0.0
      %2068 = vmatprep.subr.mxu0 0.0
      %2069 = vmatpush2.msra.mxu0 0.0
      %2070 = vmatprep.subr.mxu0 0.0
      %2071 = vmatpush2.msra.mxu0 0.0
      %2072 = vmatprep.subr.mxu0 0.0
      %2073 = vmatpush2.msra.mxu0 0.0
      %2074 = vmatprep.subr.mxu0 0.0
      %2075 = vmatpush2.msra.mxu0 0.0
      %2076 = vmatprep.subr.mxu0 0.0
      %2077 = vmatpush2.msra.mxu0 0.0
      %2078 = vmatprep.subr.mxu0 0.0
      %2079 = vmatpush2.msra.mxu0 0.0
      %2080 = vmatprep.mubr.f32.mxu0 0.0
      %2081 = vmatmul.mubr.f32.gmra.mxu0 %v1969
      %v2082 = vpop.f32.mrf.mxu0
      %v2083 = vadd.f32 0.0, %v2082
      %v2084 = vpop.f32.mrf.mxu0
      %2085 = vmatprep.mubr.f32.mxu0 0.0
      %2086 = vmatmul.mubr.f32.gmra.mxu0 %v1972
      %v2087 = vpop.f32.mrf.mxu0
      %v2088 = vadd.f32 0.0, %v2087
      %v2089 = vpop.f32.mrf.mxu0
      %2090 = vmatprep.mubr.f32.mxu0 0.0
      %2091 = vmatmul.mubr.f32.gmra.mxu0 %v1975
      %v2092 = vpop.f32.mrf.mxu0
      %v2093 = vadd.f32 0.0, %v2092
      %v2094 = vpop.f32.mrf.mxu0
      %2095 = vmatprep.mubr.f32.mxu0 0.0
      %2096 = vmatmul.mubr.f32.gmra.mxu0 %v1978
      %v2097 = vpop.f32.mrf.mxu0
      %v2098 = vadd.f32 0.0, %v2097
      %v2099 = vpop.f32.mrf.mxu0
      %2100 = vmatprep.mubr.f32.mxu0 0.0
      %2101 = vmatmul.mubr.f32.gmra.mxu0 %v1981
      %v2102 = vpop.f32.mrf.mxu0
      %v2103 = vadd.f32 0.0, %v2102
      %v2104 = vpop.f32.mrf.mxu0
      %2105 = vmatprep.mubr.f32.mxu0 0.0
      %2106 = vmatmul.mubr.f32.gmra.mxu0 %v1984
      %v2107 = vpop.f32.mrf.mxu0
      %v2108 = vadd.f32 0.0, %v2107
      %v2109 = vpop.f32.mrf.mxu0
      %2110 = vmatprep.mubr.f32.mxu0 0.0
      %2111 = vmatmul.mubr.f32.gmra.mxu0 %v1987
      %v2112 = vpop.f32.mrf.mxu0
      %v2113 = vadd.f32 0.0, %v2112
      %v2114 = vpop.f32.mrf.mxu0
      %2115 = vmatprep.mubr.f32.mxu0 0.0
      %2116 = vmatmul.mubr.f32.gmra.mxu0 %v1990
      %v2117 = vpop.f32.mrf.mxu0
      %v2118 = vadd.f32 0.0, %v2117
      %v2119 = vpop.f32.mrf.mxu0
      %2120 = vmatprep.mubr.f32.mxu0 0.0
      %2121 = vmatmul.mubr.f32.gmra.mxu0 %v1993
      %v2122 = vpop.f32.mrf.mxu0
      %v2123 = vadd.f32 0.0, %v2122
      %v2124 = vpop.f32.mrf.mxu0
      %2125 = vmatprep.mubr.f32.mxu0 0.0
      %2126 = vmatmul.mubr.f32.gmra.mxu0 %v1996
      %v2127 = vpop.f32.mrf.mxu0
      %v2128 = vadd.f32 0.0, %v2127
      %v2129 = vpop.f32.mrf.mxu0
      %2130 = vmatprep.mubr.f32.mxu0 0.0
      %2131 = vmatmul.mubr.f32.gmra.mxu0 %v1999
      %v2132 = vpop.f32.mrf.mxu0
      %v2133 = vadd.f32 0.0, %v2132
      %v2134 = vpop.f32.mrf.mxu0
      %2135 = vmatprep.mubr.f32.mxu0 0.0
      %2136 = vmatmul.mubr.f32.gmra.mxu0 %v2002
      %v2137 = vpop.f32.mrf.mxu0
      %v2138 = vadd.f32 0.0, %v2137
      %v2139 = vpop.f32.mrf.mxu0
      %2140 = vmatprep.mubr.f32.mxu0 0.0
      %2141 = vmatmul.mubr.f32.gmra.mxu0 %v2005
      %v2142 = vpop.f32.mrf.mxu0
      %v2143 = vadd.f32 0.0, %v2142
      %v2144 = vpop.f32.mrf.mxu0
      %2145 = vmatprep.mubr.f32.mxu0 0.0
      %2146 = vmatmul.mubr.f32.gmra.mxu0 %v2008
      %v2147 = vpop.f32.mrf.mxu0
      %v2148 = vadd.f32 0.0, %v2147
      %v2149 = vpop.f32.mrf.mxu0
      %2150 = vmatprep.mubr.f32.mxu0 0.0
      %2151 = vmatmul.mubr.f32.gmra.mxu0 %v2011
      %v2152 = vpop.f32.mrf.mxu0
      %v2153 = vadd.f32 0.0, %v2152
      %v2154 = vpop.f32.mrf.mxu0
      %2155 = vmatprep.mubr.f32.mxu0 0.0
      %2156 = vmatmul.mubr.f32.gmra.mxu0 %v2014
      %v2157 = vpop.f32.mrf.mxu0
      %v2158 = vadd.f32 0.0, %v2157
      %v2159 = vpop.f32.mrf.mxu0
      %2160 = vdwg.mxu0
      %v2161 = vadd.f32 %v1874, %v2083
      %v2162 = vadd.f32 %v1879, %v2088
      %v2163 = vadd.f32 %v1884, %v2093
      %v2164 = vadd.f32 %v1889, %v2098
      %v2165 = vadd.f32 %v1894, %v2103
      %v2166 = vadd.f32 %v1899, %v2108
      %v2167 = vadd.f32 %v1904, %v2113
      %v2168 = vadd.f32 %v1909, %v2118
      %v2169 = vadd.f32 %v1914, %v2123
      %v2170 = vadd.f32 %v1919, %v2128
      %v2171 = vadd.f32 %v1924, %v2133
      %v2172 = vadd.f32 %v1929, %v2138
      %v2173 = vadd.f32 %v1934, %v2143
      %v2174 = vadd.f32 %v1939, %v2148
      %v2175 = vadd.f32 %v1944, %v2153
      %v2176 = vadd.f32 %v1949, %v2158
      %s2177 = scalar_lea.vmem %s15, 128
      %v2178 = vld [vmem:[%s2177] sm:$0xff]
      %v2179 = vld [vmem:[%s2177 + $0x8] sm:$0xff]
      %v2180 = vld [vmem:[%s2177 + $0x10] sm:$0xff]
      %v2181 = vld [vmem:[%s2177 + $0x18] sm:$0xff]
      %v2182 = vld [vmem:[%s2177 + $0x20] sm:$0xff]
      %v2183 = vld [vmem:[%s2177 + $0x28] sm:$0xff]
      %v2184 = vld [vmem:[%s2177 + $0x30] sm:$0xff]
      %v2185 = vld [vmem:[%s2177 + $0x38] sm:$0xff]
      %v2186 = vld [vmem:[%s2177 + $0x40] sm:$0xff]
      %v2187 = vld [vmem:[%s2177 + $0x48] sm:$0xff]
      %v2188 = vld [vmem:[%s2177 + $0x50] sm:$0xff]
      %v2189 = vld [vmem:[%s2177 + $0x58] sm:$0xff]
      %v2190 = vld [vmem:[%s2177 + $0x60] sm:$0xff]
      %v2191 = vld [vmem:[%s2177 + $0x68] sm:$0xff]
      %v2192 = vld [vmem:[%s2177 + $0x70] sm:$0xff]
      %v2193 = vld [vmem:[%s2177 + $0x78] sm:$0xff]
      %2202 = vrot.lane.b32.xlu0 %v1489, 127
      %v2203 = vpop.permute.xlu0 %2202
      %2204 = vrot.lane.b32.xlu0 %v1490, 127
      %v2205 = vpop.permute.xlu0 %2204
      %2206 = vrot.lane.b32.xlu0 %v1491, 127
      %v2207 = vpop.permute.xlu0 %2206
      %2208 = vrot.lane.b32.xlu0 %v1492, 127
      %v2209 = vpop.permute.xlu0 %2208
      %2210 = vrot.lane.b32.xlu0 %v1493, 127
      %v2211 = vpop.permute.xlu0 %2210
      %2212 = vrot.lane.b32.xlu0 %v1494, 127
      %v2213 = vpop.permute.xlu0 %2212
      %2214 = vrot.lane.b32.xlu0 %v1495, 127
      %v2215 = vpop.permute.xlu0 %2214
      %2216 = vrot.lane.b32.xlu0 %v1496, 127
      %v2217 = vpop.permute.xlu0 %2216
      %v2227 = vsel %vm681, %v2178, 0
      %v2230 = vsel %vm681, %v2179, 0
      %v2233 = vsel %vm681, %v2180, 0
      %v2236 = vsel %vm681, %v2181, 0
      %v2239 = vsel %vm681, %v2182, 0
      %v2242 = vsel %vm681, %v2183, 0
      %v2245 = vsel %vm681, %v2184, 0
      %v2248 = vsel %vm681, %v2185, 0
      %v2251 = vsel %vm681, %v2186, 0
      %v2254 = vsel %vm681, %v2187, 0
      %v2257 = vsel %vm681, %v2188, 0
      %v2260 = vsel %vm681, %v2189, 0
      %v2263 = vsel %vm681, %v2190, 0
      %v2266 = vsel %vm681, %v2191, 0
      %v2269 = vsel %vm681, %v2192, 0
      %v2272 = vsel %vm681, %v2193, 0
      %2274 = vmatprep.subr.mxu0 0.0
      %2275 = vmatpush1.msra.mxu0 0.0
      %2276 = vmatprep.subr.mxu0 0.0
      %2277 = vmatpush1.msra.mxu0 0.0
      %2278 = vmatprep.subr.mxu0 0.0
      %2279 = vmatpush1.msra.mxu0 0.0
      %2280 = vmatprep.subr.mxu0 0.0
      %2281 = vmatpush1.msra.mxu0 0.0
      %2282 = vmatprep.subr.mxu0 0.0
      %2283 = vmatpush1.msra.mxu0 0.0
      %2284 = vmatprep.subr.mxu0 0.0
      %2285 = vmatpush1.msra.mxu0 0.0
      %2286 = vmatprep.subr.mxu0 0.0
      %2287 = vmatpush1.msra.mxu0 0.0
      %2288 = vmatprep.subr.mxu0 0.0
      %2289 = vmatpush1.msra.mxu0 0.0
      %2290 = vmatprep.subr.mxu0 0.0
      %2291 = vmatpush1.msra.mxu0 %v2217
      %2292 = vmatprep.subr.mxu0 0.0
      %2293 = vmatpush1.msra.mxu0 %v2215
      %2294 = vmatprep.subr.mxu0 0.0
      %2295 = vmatpush1.msra.mxu0 %v2213
      %2296 = vmatprep.subr.mxu0 0.0
      %2297 = vmatpush1.msra.mxu0 %v2211
      %2298 = vmatprep.subr.mxu0 0.0
      %2299 = vmatpush1.msra.mxu0 %v2209
      %2300 = vmatprep.subr.mxu0 0.0
      %2301 = vmatpush1.msra.mxu0 %v2207
      %2302 = vmatprep.subr.mxu0 0.0
      %2303 = vmatpush1.msra.mxu0 %v2205
      %2304 = vmatprep.subr.mxu0 0.0
      %2305 = vmatpush1.msra.mxu0 %v2203
      %2306 = vmatprep.subr.mxu0 0.0
      %2307 = vmatpush2.msra.mxu0 0.0
      %2308 = vmatprep.subr.mxu0 0.0
      %2309 = vmatpush2.msra.mxu0 0.0
      %2310 = vmatprep.subr.mxu0 0.0
      %2311 = vmatpush2.msra.mxu0 0.0
      %2312 = vmatprep.subr.mxu0 0.0
      %2313 = vmatpush2.msra.mxu0 0.0
      %2314 = vmatprep.subr.mxu0 0.0
      %2315 = vmatpush2.msra.mxu0 0.0
      %2316 = vmatprep.subr.mxu0 0.0
      %2317 = vmatpush2.msra.mxu0 0.0
      %2318 = vmatprep.subr.mxu0 0.0
      %2319 = vmatpush2.msra.mxu0 0.0
      %2320 = vmatprep.subr.mxu0 0.0
      %2321 = vmatpush2.msra.mxu0 0.0
      %2322 = vmatprep.subr.mxu0 0.0
      %2323 = vmatpush2.msra.mxu0 0.0
      %2324 = vmatprep.subr.mxu0 0.0
      %2325 = vmatpush2.msra.mxu0 0.0
      %2326 = vmatprep.subr.mxu0 0.0
      %2327 = vmatpush2.msra.mxu0 0.0
      %2328 = vmatprep.subr.mxu0 0.0
      %2329 = vmatpush2.msra.mxu0 0.0
      %2330 = vmatprep.subr.mxu0 0.0
      %2331 = vmatpush2.msra.mxu0 0.0
      %2332 = vmatprep.subr.mxu0 0.0
      %2333 = vmatpush2.msra.mxu0 0.0
      %2334 = vmatprep.subr.mxu0 0.0
      %2335 = vmatpush2.msra.mxu0 0.0
      %2336 = vmatprep.subr.mxu0 0.0
      %2337 = vmatpush2.msra.mxu0 0.0
      %2338 = vmatprep.mubr.f32.mxu0 0.0
      %2339 = vmatmul.mubr.f32.gmra.mxu0 %v2227
      %v2340 = vpop.f32.mrf.mxu0
      %v2341 = vadd.f32 0.0, %v2340
      %v2342 = vpop.f32.mrf.mxu0
      %2343 = vmatprep.mubr.f32.mxu0 0.0
      %2344 = vmatmul.mubr.f32.gmra.mxu0 %v2230
      %v2345 = vpop.f32.mrf.mxu0
      %v2346 = vadd.f32 0.0, %v2345
      %v2347 = vpop.f32.mrf.mxu0
      %2348 = vmatprep.mubr.f32.mxu0 0.0
      %2349 = vmatmul.mubr.f32.gmra.mxu0 %v2233
      %v2350 = vpop.f32.mrf.mxu0
      %v2351 = vadd.f32 0.0, %v2350
      %v2352 = vpop.f32.mrf.mxu0
      %2353 = vmatprep.mubr.f32.mxu0 0.0
      %2354 = vmatmul.mubr.f32.gmra.mxu0 %v2236
      %v2355 = vpop.f32.mrf.mxu0
      %v2356 = vadd.f32 0.0, %v2355
      %v2357 = vpop.f32.mrf.mxu0
      %2358 = vmatprep.mubr.f32.mxu0 0.0
      %2359 = vmatmul.mubr.f32.gmra.mxu0 %v2239
      %v2360 = vpop.f32.mrf.mxu0
      %v2361 = vadd.f32 0.0, %v2360
      %v2362 = vpop.f32.mrf.mxu0
      %2363 = vmatprep.mubr.f32.mxu0 0.0
      %2364 = vmatmul.mubr.f32.gmra.mxu0 %v2242
      %v2365 = vpop.f32.mrf.mxu0
      %v2366 = vadd.f32 0.0, %v2365
      %v2367 = vpop.f32.mrf.mxu0
      %2368 = vmatprep.mubr.f32.mxu0 0.0
      %2369 = vmatmul.mubr.f32.gmra.mxu0 %v2245
      %v2370 = vpop.f32.mrf.mxu0
      %v2371 = vadd.f32 0.0, %v2370
      %v2372 = vpop.f32.mrf.mxu0
      %2373 = vmatprep.mubr.f32.mxu0 0.0
      %2374 = vmatmul.mubr.f32.gmra.mxu0 %v2248
      %v2375 = vpop.f32.mrf.mxu0
      %v2376 = vadd.f32 0.0, %v2375
      %v2377 = vpop.f32.mrf.mxu0
      %2378 = vmatprep.mubr.f32.mxu0 0.0
      %2379 = vmatmul.mubr.f32.gmra.mxu0 %v2251
      %v2380 = vpop.f32.mrf.mxu0
      %v2381 = vadd.f32 0.0, %v2380
      %v2382 = vpop.f32.mrf.mxu0
      %2383 = vmatprep.mubr.f32.mxu0 0.0
      %2384 = vmatmul.mubr.f32.gmra.mxu0 %v2254
      %v2385 = vpop.f32.mrf.mxu0
      %v2386 = vadd.f32 0.0, %v2385
      %v2387 = vpop.f32.mrf.mxu0
      %2388 = vmatprep.mubr.f32.mxu0 0.0
      %2389 = vmatmul.mubr.f32.gmra.mxu0 %v2257
      %v2390 = vpop.f32.mrf.mxu0
      %v2391 = vadd.f32 0.0, %v2390
      %v2392 = vpop.f32.mrf.mxu0
      %2393 = vmatprep.mubr.f32.mxu0 0.0
      %2394 = vmatmul.mubr.f32.gmra.mxu0 %v2260
      %v2395 = vpop.f32.mrf.mxu0
      %v2396 = vadd.f32 0.0, %v2395
      %v2397 = vpop.f32.mrf.mxu0
      %2398 = vmatprep.mubr.f32.mxu0 0.0
      %2399 = vmatmul.mubr.f32.gmra.mxu0 %v2263
      %v2400 = vpop.f32.mrf.mxu0
      %v2401 = vadd.f32 0.0, %v2400
      %v2402 = vpop.f32.mrf.mxu0
      %2403 = vmatprep.mubr.f32.mxu0 0.0
      %2404 = vmatmul.mubr.f32.gmra.mxu0 %v2266
      %v2405 = vpop.f32.mrf.mxu0
      %v2406 = vadd.f32 0.0, %v2405
      %v2407 = vpop.f32.mrf.mxu0
      %2408 = vmatprep.mubr.f32.mxu0 0.0
      %2409 = vmatmul.mubr.f32.gmra.mxu0 %v2269
      %v2410 = vpop.f32.mrf.mxu0
      %v2411 = vadd.f32 0.0, %v2410
      %v2412 = vpop.f32.mrf.mxu0
      %2413 = vmatprep.mubr.f32.mxu0 0.0
      %2414 = vmatmul.mubr.f32.gmra.mxu0 %v2272
      %v2415 = vpop.f32.mrf.mxu0
      %v2416 = vadd.f32 0.0, %v2415
      %v2417 = vpop.f32.mrf.mxu0
      %2418 = vdwg.mxu0
      %v2419 = vadd.f32 %v2161, %v2341
      %v2420 = vadd.f32 %v2162, %v2346
      %v2421 = vadd.f32 %v2163, %v2351
      %v2422 = vadd.f32 %v2164, %v2356
      %v2423 = vadd.f32 %v2165, %v2361
      %v2424 = vadd.f32 %v2166, %v2366
      %v2425 = vadd.f32 %v2167, %v2371
      %v2426 = vadd.f32 %v2168, %v2376
      %v2427 = vadd.f32 %v2169, %v2381
      %v2428 = vadd.f32 %v2170, %v2386
      %v2429 = vadd.f32 %v2171, %v2391
      %v2430 = vadd.f32 %v2172, %v2396
      %v2431 = vadd.f32 %v2173, %v2401
      %v2432 = vadd.f32 %v2174, %v2406
      %v2433 = vadd.f32 %v2175, %v2411
      %v2434 = vadd.f32 %v2176, %v2416
      %s2435 = scalar_lea.vmem %s15, 256
      %v2436 = vld [vmem:[%s2435] sm:$0xff]
      %v2437 = vld [vmem:[%s2435 + $0x8] sm:$0xff]
      %v2438 = vld [vmem:[%s2435 + $0x10] sm:$0xff]
      %v2439 = vld [vmem:[%s2435 + $0x18] sm:$0xff]
      %v2440 = vld [vmem:[%s2435 + $0x20] sm:$0xff]
      %v2441 = vld [vmem:[%s2435 + $0x28] sm:$0xff]
      %v2442 = vld [vmem:[%s2435 + $0x30] sm:$0xff]
      %v2443 = vld [vmem:[%s2435 + $0x38] sm:$0xff]
      %v2444 = vld [vmem:[%s2435 + $0x40] sm:$0xff]
      %v2445 = vld [vmem:[%s2435 + $0x48] sm:$0xff]
      %v2446 = vld [vmem:[%s2435 + $0x50] sm:$0xff]
      %v2447 = vld [vmem:[%s2435 + $0x58] sm:$0xff]
      %v2448 = vld [vmem:[%s2435 + $0x60] sm:$0xff]
      %v2449 = vld [vmem:[%s2435 + $0x68] sm:$0xff]
      %v2450 = vld [vmem:[%s2435 + $0x70] sm:$0xff]
      %v2451 = vld [vmem:[%s2435 + $0x78] sm:$0xff]
      %2452 = vrot.lane.b32.xlu0 %v1489, 126
      %v2453 = vpop.permute.xlu0 %2452
      %2454 = vrot.lane.b32.xlu0 %v1490, 126
      %v2455 = vpop.permute.xlu0 %2454
      %2456 = vrot.lane.b32.xlu0 %v1491, 126
      %v2457 = vpop.permute.xlu0 %2456
      %2458 = vrot.lane.b32.xlu0 %v1492, 126
      %v2459 = vpop.permute.xlu0 %2458
      %2460 = vrot.lane.b32.xlu0 %v1493, 126
      %v2461 = vpop.permute.xlu0 %2460
      %2462 = vrot.lane.b32.xlu0 %v1494, 126
      %v2463 = vpop.permute.xlu0 %2462
      %2464 = vrot.lane.b32.xlu0 %v1495, 126
      %v2465 = vpop.permute.xlu0 %2464
      %2466 = vrot.lane.b32.xlu0 %v1496, 126
      %v2467 = vpop.permute.xlu0 %2466
      %v2477 = vsel %vm681, %v2436, 0
      %v2480 = vsel %vm681, %v2437, 0
      %v2483 = vsel %vm681, %v2438, 0
      %v2486 = vsel %vm681, %v2439, 0
      %v2489 = vsel %vm681, %v2440, 0
      %v2492 = vsel %vm681, %v2441, 0
      %v2495 = vsel %vm681, %v2442, 0
      %v2498 = vsel %vm681, %v2443, 0
      %v2501 = vsel %vm681, %v2444, 0
      %v2504 = vsel %vm681, %v2445, 0
      %v2507 = vsel %vm681, %v2446, 0
      %v2510 = vsel %vm681, %v2447, 0
      %v2513 = vsel %vm681, %v2448, 0
      %v2516 = vsel %vm681, %v2449, 0
      %v2519 = vsel %vm681, %v2450, 0
      %v2522 = vsel %vm681, %v2451, 0
      %2524 = vmatprep.subr.mxu0 0.0
      %2525 = vmatpush1.msra.mxu0 0.0
      %2526 = vmatprep.subr.mxu0 0.0
      %2527 = vmatpush1.msra.mxu0 0.0
      %2528 = vmatprep.subr.mxu0 0.0
      %2529 = vmatpush1.msra.mxu0 0.0
      %2530 = vmatprep.subr.mxu0 0.0
      %2531 = vmatpush1.msra.mxu0 0.0
      %2532 = vmatprep.subr.mxu0 0.0
      %2533 = vmatpush1.msra.mxu0 0.0
      %2534 = vmatprep.subr.mxu0 0.0
      %2535 = vmatpush1.msra.mxu0 0.0
      %2536 = vmatprep.subr.mxu0 0.0
      %2537 = vmatpush1.msra.mxu0 0.0
      %2538 = vmatprep.subr.mxu0 0.0
      %2539 = vmatpush1.msra.mxu0 0.0
      %2540 = vmatprep.subr.mxu0 0.0
      %2541 = vmatpush1.msra.mxu0 %v2467
      %2542 = vmatprep.subr.mxu0 0.0
      %2543 = vmatpush1.msra.mxu0 %v2465
      %2544 = vmatprep.subr.mxu0 0.0
      %2545 = vmatpush1.msra.mxu0 %v2463
      %2546 = vmatprep.subr.mxu0 0.0
      %2547 = vmatpush1.msra.mxu0 %v2461
      %2548 = vmatprep.subr.mxu0 0.0
      %2549 = vmatpush1.msra.mxu0 %v2459
      %2550 = vmatprep.subr.mxu0 0.0
      %2551 = vmatpush1.msra.mxu0 %v2457
      %2552 = vmatprep.subr.mxu0 0.0
      %2553 = vmatpush1.msra.mxu0 %v2455
      %2554 = vmatprep.subr.mxu0 0.0
      %2555 = vmatpush1.msra.mxu0 %v2453
      %2556 = vmatprep.subr.mxu0 0.0
      %2557 = vmatpush2.msra.mxu0 0.0
      %2558 = vmatprep.subr.mxu0 0.0
      %2559 = vmatpush2.msra.mxu0 0.0
      %2560 = vmatprep.subr.mxu0 0.0
      %2561 = vmatpush2.msra.mxu0 0.0
      %2562 = vmatprep.subr.mxu0 0.0
      %2563 = vmatpush2.msra.mxu0 0.0
      %2564 = vmatprep.subr.mxu0 0.0
      %2565 = vmatpush2.msra.mxu0 0.0
      %2566 = vmatprep.subr.mxu0 0.0
      %2567 = vmatpush2.msra.mxu0 0.0
      %2568 = vmatprep.subr.mxu0 0.0
      %2569 = vmatpush2.msra.mxu0 0.0
      %2570 = vmatprep.subr.mxu0 0.0
      %2571 = vmatpush2.msra.mxu0 0.0
      %2572 = vmatprep.subr.mxu0 0.0
      %2573 = vmatpush2.msra.mxu0 0.0
      %2574 = vmatprep.subr.mxu0 0.0
      %2575 = vmatpush2.msra.mxu0 0.0
      %2576 = vmatprep.subr.mxu0 0.0
      %2577 = vmatpush2.msra.mxu0 0.0
      %2578 = vmatprep.subr.mxu0 0.0
      %2579 = vmatpush2.msra.mxu0 0.0
      %2580 = vmatprep.subr.mxu0 0.0
      %2581 = vmatpush2.msra.mxu0 0.0
      %2582 = vmatprep.subr.mxu0 0.0
      %2583 = vmatpush2.msra.mxu0 0.0
      %2584 = vmatprep.subr.mxu0 0.0
      %2585 = vmatpush2.msra.mxu0 0.0
      %2586 = vmatprep.subr.mxu0 0.0
      %2587 = vmatpush2.msra.mxu0 0.0
      %2588 = vmatprep.mubr.f32.mxu0 0.0
      %2589 = vmatmul.mubr.f32.gmra.mxu0 %v2477
      %v2590 = vpop.f32.mrf.mxu0
      %v2591 = vadd.f32 0.0, %v2590
      %v2592 = vpop.f32.mrf.mxu0
      %2593 = vmatprep.mubr.f32.mxu0 0.0
      %2594 = vmatmul.mubr.f32.gmra.mxu0 %v2480
      %v2595 = vpop.f32.mrf.mxu0
      %v2596 = vadd.f32 0.0, %v2595
      %v2597 = vpop.f32.mrf.mxu0
      %2598 = vmatprep.mubr.f32.mxu0 0.0
      %2599 = vmatmul.mubr.f32.gmra.mxu0 %v2483
      %v2600 = vpop.f32.mrf.mxu0
      %v2601 = vadd.f32 0.0, %v2600
      %v2602 = vpop.f32.mrf.mxu0
      %2603 = vmatprep.mubr.f32.mxu0 0.0
      %2604 = vmatmul.mubr.f32.gmra.mxu0 %v2486
      %v2605 = vpop.f32.mrf.mxu0
      %v2606 = vadd.f32 0.0, %v2605
      %v2607 = vpop.f32.mrf.mxu0
      %2608 = vmatprep.mubr.f32.mxu0 0.0
      %2609 = vmatmul.mubr.f32.gmra.mxu0 %v2489
      %v2610 = vpop.f32.mrf.mxu0
      %v2611 = vadd.f32 0.0, %v2610
      %v2612 = vpop.f32.mrf.mxu0
      %2613 = vmatprep.mubr.f32.mxu0 0.0
      %2614 = vmatmul.mubr.f32.gmra.mxu0 %v2492
      %v2615 = vpop.f32.mrf.mxu0
      %v2616 = vadd.f32 0.0, %v2615
      %v2617 = vpop.f32.mrf.mxu0
      %2618 = vmatprep.mubr.f32.mxu0 0.0
      %2619 = vmatmul.mubr.f32.gmra.mxu0 %v2495
      %v2620 = vpop.f32.mrf.mxu0
      %v2621 = vadd.f32 0.0, %v2620
      %v2622 = vpop.f32.mrf.mxu0
      %2623 = vmatprep.mubr.f32.mxu0 0.0
      %2624 = vmatmul.mubr.f32.gmra.mxu0 %v2498
      %v2625 = vpop.f32.mrf.mxu0
      %v2626 = vadd.f32 0.0, %v2625
      %v2627 = vpop.f32.mrf.mxu0
      %2628 = vmatprep.mubr.f32.mxu0 0.0
      %2629 = vmatmul.mubr.f32.gmra.mxu0 %v2501
      %v2630 = vpop.f32.mrf.mxu0
      %v2631 = vadd.f32 0.0, %v2630
      %v2632 = vpop.f32.mrf.mxu0
      %2633 = vmatprep.mubr.f32.mxu0 0.0
      %2634 = vmatmul.mubr.f32.gmra.mxu0 %v2504
      %v2635 = vpop.f32.mrf.mxu0
      %v2636 = vadd.f32 0.0, %v2635
      %v2637 = vpop.f32.mrf.mxu0
      %2638 = vmatprep.mubr.f32.mxu0 0.0
      %2639 = vmatmul.mubr.f32.gmra.mxu0 %v2507
      %v2640 = vpop.f32.mrf.mxu0
      %v2641 = vadd.f32 0.0, %v2640
      %v2642 = vpop.f32.mrf.mxu0
      %2643 = vmatprep.mubr.f32.mxu0 0.0
      %2644 = vmatmul.mubr.f32.gmra.mxu0 %v2510
      %v2645 = vpop.f32.mrf.mxu0
      %v2646 = vadd.f32 0.0, %v2645
      %v2647 = vpop.f32.mrf.mxu0
      %2648 = vmatprep.mubr.f32.mxu0 0.0
      %2649 = vmatmul.mubr.f32.gmra.mxu0 %v2513
      %v2650 = vpop.f32.mrf.mxu0
      %v2651 = vadd.f32 0.0, %v2650
      %v2652 = vpop.f32.mrf.mxu0
      %2653 = vmatprep.mubr.f32.mxu0 0.0
      %2654 = vmatmul.mubr.f32.gmra.mxu0 %v2516
      %v2655 = vpop.f32.mrf.mxu0
      %v2656 = vadd.f32 0.0, %v2655
      %v2657 = vpop.f32.mrf.mxu0
      %2658 = vmatprep.mubr.f32.mxu0 0.0
      %2659 = vmatmul.mubr.f32.gmra.mxu0 %v2519
      %v2660 = vpop.f32.mrf.mxu0
      %v2661 = vadd.f32 0.0, %v2660
      %v2662 = vpop.f32.mrf.mxu0
      %2663 = vmatprep.mubr.f32.mxu0 0.0
      %2664 = vmatmul.mubr.f32.gmra.mxu0 %v2522
      %v2665 = vpop.f32.mrf.mxu0
      %v2666 = vadd.f32 0.0, %v2665
      %v2667 = vpop.f32.mrf.mxu0
      %2668 = vdwg.mxu0
      %v2669 = vadd.f32 %v2419, %v2591
      %v2670 = vadd.f32 %v2420, %v2596
      %v2671 = vadd.f32 %v2421, %v2601
      %v2672 = vadd.f32 %v2422, %v2606
      %v2673 = vadd.f32 %v2423, %v2611
      %v2674 = vadd.f32 %v2424, %v2616
      %v2675 = vadd.f32 %v2425, %v2621
      %v2676 = vadd.f32 %v2426, %v2626
      %v2677 = vadd.f32 %v2427, %v2631
      %v2678 = vadd.f32 %v2428, %v2636
      %v2679 = vadd.f32 %v2429, %v2641
      %v2680 = vadd.f32 %v2430, %v2646
      %v2681 = vadd.f32 %v2431, %v2651
      %v2682 = vadd.f32 %v2432, %v2656
      %v2683 = vadd.f32 %v2433, %v2661
      %v2684 = vadd.f32 %v2434, %v2666
      %s2685 = scalar_lea.vmem %s15, 384
      %v2686 = vld [vmem:[%s2685] sm:$0xff]
      %v2687 = vld [vmem:[%s2685 + $0x8] sm:$0xff]
      %v2688 = vld [vmem:[%s2685 + $0x10] sm:$0xff]
      %v2689 = vld [vmem:[%s2685 + $0x18] sm:$0xff]
      %v2690 = vld [vmem:[%s2685 + $0x20] sm:$0xff]
      %v2691 = vld [vmem:[%s2685 + $0x28] sm:$0xff]
      %v2692 = vld [vmem:[%s2685 + $0x30] sm:$0xff]
      %v2693 = vld [vmem:[%s2685 + $0x38] sm:$0xff]
      %v2694 = vld [vmem:[%s2685 + $0x40] sm:$0xff]
      %v2695 = vld [vmem:[%s2685 + $0x48] sm:$0xff]
      %v2696 = vld [vmem:[%s2685 + $0x50] sm:$0xff]
      %v2697 = vld [vmem:[%s2685 + $0x58] sm:$0xff]
      %v2698 = vld [vmem:[%s2685 + $0x60] sm:$0xff]
      %v2699 = vld [vmem:[%s2685 + $0x68] sm:$0xff]
      %v2700 = vld [vmem:[%s2685 + $0x70] sm:$0xff]
      %v2701 = vld [vmem:[%s2685 + $0x78] sm:$0xff]
      %2702 = vrot.lane.b32.xlu0 %v1489, 125
      %v2703 = vpop.permute.xlu0 %2702
      %2704 = vrot.lane.b32.xlu0 %v1490, 125
      %v2705 = vpop.permute.xlu0 %2704
      %2706 = vrot.lane.b32.xlu0 %v1491, 125
      %v2707 = vpop.permute.xlu0 %2706
      %2708 = vrot.lane.b32.xlu0 %v1492, 125
      %v2709 = vpop.permute.xlu0 %2708
      %2710 = vrot.lane.b32.xlu0 %v1493, 125
      %v2711 = vpop.permute.xlu0 %2710
      %2712 = vrot.lane.b32.xlu0 %v1494, 125
      %v2713 = vpop.permute.xlu0 %2712
      %2714 = vrot.lane.b32.xlu0 %v1495, 125
      %v2715 = vpop.permute.xlu0 %2714
      %2716 = vrot.lane.b32.xlu0 %v1496, 125
      %v2717 = vpop.permute.xlu0 %2716
      %v2727 = vsel %vm681, %v2686, 0
      %v2730 = vsel %vm681, %v2687, 0
      %v2733 = vsel %vm681, %v2688, 0
      %v2736 = vsel %vm681, %v2689, 0
      %v2739 = vsel %vm681, %v2690, 0
      %v2742 = vsel %vm681, %v2691, 0
      %v2745 = vsel %vm681, %v2692, 0
      %v2748 = vsel %vm681, %v2693, 0
      %v2751 = vsel %vm681, %v2694, 0
      %v2754 = vsel %vm681, %v2695, 0
      %v2757 = vsel %vm681, %v2696, 0
      %v2760 = vsel %vm681, %v2697, 0
      %v2763 = vsel %vm681, %v2698, 0
      %v2766 = vsel %vm681, %v2699, 0
      %v2769 = vsel %vm681, %v2700, 0
      %v2772 = vsel %vm681, %v2701, 0
      %2774 = vmatprep.subr.mxu0 0.0
      %2775 = vmatpush1.msra.mxu0 0.0
      %2776 = vmatprep.subr.mxu0 0.0
      %2777 = vmatpush1.msra.mxu0 0.0
      %2778 = vmatprep.subr.mxu0 0.0
      %2779 = vmatpush1.msra.mxu0 0.0
      %2780 = vmatprep.subr.mxu0 0.0
      %2781 = vmatpush1.msra.mxu0 0.0
      %2782 = vmatprep.subr.mxu0 0.0
      %2783 = vmatpush1.msra.mxu0 0.0
      %2784 = vmatprep.subr.mxu0 0.0
      %2785 = vmatpush1.msra.mxu0 0.0
      %2786 = vmatprep.subr.mxu0 0.0
      %2787 = vmatpush1.msra.mxu0 0.0
      %2788 = vmatprep.subr.mxu0 0.0
      %2789 = vmatpush1.msra.mxu0 0.0
      %2790 = vmatprep.subr.mxu0 0.0
      %2791 = vmatpush1.msra.mxu0 %v2717
      %2792 = vmatprep.subr.mxu0 0.0
      %2793 = vmatpush1.msra.mxu0 %v2715
      %2794 = vmatprep.subr.mxu0 0.0
      %2795 = vmatpush1.msra.mxu0 %v2713
      %2796 = vmatprep.subr.mxu0 0.0
      %2797 = vmatpush1.msra.mxu0 %v2711
      %2798 = vmatprep.subr.mxu0 0.0
      %2799 = vmatpush1.msra.mxu0 %v2709
      %2800 = vmatprep.subr.mxu0 0.0
      %2801 = vmatpush1.msra.mxu0 %v2707
      %2802 = vmatprep.subr.mxu0 0.0
      %2803 = vmatpush1.msra.mxu0 %v2705
      %2804 = vmatprep.subr.mxu0 0.0
      %2805 = vmatpush1.msra.mxu0 %v2703
      %2806 = vmatprep.subr.mxu0 0.0
      %2807 = vmatpush2.msra.mxu0 0.0
      %2808 = vmatprep.subr.mxu0 0.0
      %2809 = vmatpush2.msra.mxu0 0.0
      %2810 = vmatprep.subr.mxu0 0.0
      %2811 = vmatpush2.msra.mxu0 0.0
      %2812 = vmatprep.subr.mxu0 0.0
      %2813 = vmatpush2.msra.mxu0 0.0
      %2814 = vmatprep.subr.mxu0 0.0
      %2815 = vmatpush2.msra.mxu0 0.0
      %2816 = vmatprep.subr.mxu0 0.0
      %2817 = vmatpush2.msra.mxu0 0.0
      %2818 = vmatprep.subr.mxu0 0.0
      %2819 = vmatpush2.msra.mxu0 0.0
      %2820 = vmatprep.subr.mxu0 0.0
      %2821 = vmatpush2.msra.mxu0 0.0
      %2822 = vmatprep.subr.mxu0 0.0
      %2823 = vmatpush2.msra.mxu0 0.0
      %2824 = vmatprep.subr.mxu0 0.0
      %2825 = vmatpush2.msra.mxu0 0.0
      %2826 = vmatprep.subr.mxu0 0.0
      %2827 = vmatpush2.msra.mxu0 0.0
      %2828 = vmatprep.subr.mxu0 0.0
      %2829 = vmatpush2.msra.mxu0 0.0
      %2830 = vmatprep.subr.mxu0 0.0
      %2831 = vmatpush2.msra.mxu0 0.0
      %2832 = vmatprep.subr.mxu0 0.0
      %2833 = vmatpush2.msra.mxu0 0.0
      %2834 = vmatprep.subr.mxu0 0.0
      %2835 = vmatpush2.msra.mxu0 0.0
      %2836 = vmatprep.subr.mxu0 0.0
      %2837 = vmatpush2.msra.mxu0 0.0
      %2838 = vmatprep.mubr.f32.mxu0 0.0
      %2839 = vmatmul.mubr.f32.gmra.mxu0 %v2727
      %v2840 = vpop.f32.mrf.mxu0
      %v2841 = vadd.f32 0.0, %v2840
      %v2842 = vpop.f32.mrf.mxu0
      %2843 = vmatprep.mubr.f32.mxu0 0.0
      %2844 = vmatmul.mubr.f32.gmra.mxu0 %v2730
      %v2845 = vpop.f32.mrf.mxu0
      %v2846 = vadd.f32 0.0, %v2845
      %v2847 = vpop.f32.mrf.mxu0
      %2848 = vmatprep.mubr.f32.mxu0 0.0
      %2849 = vmatmul.mubr.f32.gmra.mxu0 %v2733
      %v2850 = vpop.f32.mrf.mxu0
      %v2851 = vadd.f32 0.0, %v2850
      %v2852 = vpop.f32.mrf.mxu0
      %2853 = vmatprep.mubr.f32.mxu0 0.0
      %2854 = vmatmul.mubr.f32.gmra.mxu0 %v2736
      %v2855 = vpop.f32.mrf.mxu0
      %v2856 = vadd.f32 0.0, %v2855
      %v2857 = vpop.f32.mrf.mxu0
      %2858 = vmatprep.mubr.f32.mxu0 0.0
      %2859 = vmatmul.mubr.f32.gmra.mxu0 %v2739
      %v2860 = vpop.f32.mrf.mxu0
      %v2861 = vadd.f32 0.0, %v2860
      %v2862 = vpop.f32.mrf.mxu0
      %2863 = vmatprep.mubr.f32.mxu0 0.0
      %2864 = vmatmul.mubr.f32.gmra.mxu0 %v2742
      %v2865 = vpop.f32.mrf.mxu0
      %v2866 = vadd.f32 0.0, %v2865
      %v2867 = vpop.f32.mrf.mxu0
      %2868 = vmatprep.mubr.f32.mxu0 0.0
      %2869 = vmatmul.mubr.f32.gmra.mxu0 %v2745
      %v2870 = vpop.f32.mrf.mxu0
      %v2871 = vadd.f32 0.0, %v2870
      %v2872 = vpop.f32.mrf.mxu0
      %2873 = vmatprep.mubr.f32.mxu0 0.0
      %2874 = vmatmul.mubr.f32.gmra.mxu0 %v2748
      %v2875 = vpop.f32.mrf.mxu0
      %v2876 = vadd.f32 0.0, %v2875
      %v2877 = vpop.f32.mrf.mxu0
      %2878 = vmatprep.mubr.f32.mxu0 0.0
      %2879 = vmatmul.mubr.f32.gmra.mxu0 %v2751
      %v2880 = vpop.f32.mrf.mxu0
      %v2881 = vadd.f32 0.0, %v2880
      %v2882 = vpop.f32.mrf.mxu0
      %2883 = vmatprep.mubr.f32.mxu0 0.0
      %2884 = vmatmul.mubr.f32.gmra.mxu0 %v2754
      %v2885 = vpop.f32.mrf.mxu0
      %v2886 = vadd.f32 0.0, %v2885
      %v2887 = vpop.f32.mrf.mxu0
      %2888 = vmatprep.mubr.f32.mxu0 0.0
      %2889 = vmatmul.mubr.f32.gmra.mxu0 %v2757
      %v2890 = vpop.f32.mrf.mxu0
      %v2891 = vadd.f32 0.0, %v2890
      %v2892 = vpop.f32.mrf.mxu0
      %2893 = vmatprep.mubr.f32.mxu0 0.0
      %2894 = vmatmul.mubr.f32.gmra.mxu0 %v2760
      %v2895 = vpop.f32.mrf.mxu0
      %v2896 = vadd.f32 0.0, %v2895
      %v2897 = vpop.f32.mrf.mxu0
      %2898 = vmatprep.mubr.f32.mxu0 0.0
      %2899 = vmatmul.mubr.f32.gmra.mxu0 %v2763
      %v2900 = vpop.f32.mrf.mxu0
      %v2901 = vadd.f32 0.0, %v2900
      %v2902 = vpop.f32.mrf.mxu0
      %2903 = vmatprep.mubr.f32.mxu0 0.0
      %2904 = vmatmul.mubr.f32.gmra.mxu0 %v2766
      %v2905 = vpop.f32.mrf.mxu0
      %v2906 = vadd.f32 0.0, %v2905
      %v2907 = vpop.f32.mrf.mxu0
      %2908 = vmatprep.mubr.f32.mxu0 0.0
      %2909 = vmatmul.mubr.f32.gmra.mxu0 %v2769
      %v2910 = vpop.f32.mrf.mxu0
      %v2911 = vadd.f32 0.0, %v2910
      %v2912 = vpop.f32.mrf.mxu0
      %2913 = vmatprep.mubr.f32.mxu0 0.0
      %2914 = vmatmul.mubr.f32.gmra.mxu0 %v2772
      %v2915 = vpop.f32.mrf.mxu0
      %v2916 = vadd.f32 0.0, %v2915
      %v2917 = vpop.f32.mrf.mxu0
      %2918 = vdwg.mxu0
      %v2919 = vadd.f32 %v2669, %v2841
      %v2920 = vadd.f32 %v2670, %v2846
      %v2921 = vadd.f32 %v2671, %v2851
      %v2922 = vadd.f32 %v2672, %v2856
      %v2923 = vadd.f32 %v2673, %v2861
      %v2924 = vadd.f32 %v2674, %v2866
      %v2925 = vadd.f32 %v2675, %v2871
      %v2926 = vadd.f32 %v2676, %v2876
      %v2927 = vadd.f32 %v2677, %v2881
      %v2928 = vadd.f32 %v2678, %v2886
      %v2929 = vadd.f32 %v2679, %v2891
      %v2930 = vadd.f32 %v2680, %v2896
      %v2931 = vadd.f32 %v2681, %v2901
      %v2932 = vadd.f32 %v2682, %v2906
      %v2933 = vadd.f32 %v2683, %v2911
      %v2934 = vadd.f32 %v2684, %v2916
      %v2935 = vmax.f32 %v2919, 0.0
      %v2936 = vmax.f32 %v2920, 0.0
      %v2937 = vmax.f32 %v2921, 0.0
      %v2938 = vmax.f32 %v2922, 0.0
      %v2939 = vmax.f32 %v2923, 0.0
      %v2940 = vmax.f32 %v2924, 0.0
      %v2941 = vmax.f32 %v2925, 0.0
      %v2942 = vmax.f32 %v2926, 0.0
      %v2943 = vmax.f32 %v2927, 0.0
      %v2944 = vmax.f32 %v2928, 0.0
      %v2945 = vmax.f32 %v2929, 0.0
      %v2946 = vmax.f32 %v2930, 0.0
      %v2947 = vmax.f32 %v2931, 0.0
      %v2948 = vmax.f32 %v2932, 0.0
      %v2949 = vmax.f32 %v2933, 0.0
      %v2950 = vmax.f32 %v2934, 0.0
      %v2951 = vld [vmem:[%s18] sm:$0x1]
      %v2952 = vld [vmem:[#allocation2] sm:$0x1]
      %2953 = vmatprep.subr.mxu0 0.0
      %2954 = vmatpush1.msra.mxu0 %v2950
      %2955 = vmatprep.subr.mxu0 0.0
      %2956 = vmatpush1.msra.mxu0 %v2949
      %2957 = vmatprep.subr.mxu0 0.0
      %2958 = vmatpush1.msra.mxu0 %v2948
      %2959 = vmatprep.subr.mxu0 0.0
      %2960 = vmatpush1.msra.mxu0 %v2947
      %2961 = vmatprep.subr.mxu0 0.0
      %2962 = vmatpush1.msra.mxu0 %v2946
      %2963 = vmatprep.subr.mxu0 0.0
      %2964 = vmatpush1.msra.mxu0 %v2945
      %2965 = vmatprep.subr.mxu0 0.0
      %2966 = vmatpush1.msra.mxu0 %v2944
      %2967 = vmatprep.subr.mxu0 0.0
      %2968 = vmatpush1.msra.mxu0 %v2943
      %2969 = vmatprep.subr.mxu0 0.0
      %2970 = vmatpush1.msra.mxu0 %v2942
      %2971 = vmatprep.subr.mxu0 0.0
      %2972 = vmatpush1.msra.mxu0 %v2941
      %2973 = vmatprep.subr.mxu0 0.0
      %2974 = vmatpush1.msra.mxu0 %v2940
      %2975 = vmatprep.subr.mxu0 0.0
      %2976 = vmatpush1.msra.mxu0 %v2939
      %2977 = vmatprep.subr.mxu0 0.0
      %2978 = vmatpush1.msra.mxu0 %v2938
      %2979 = vmatprep.subr.mxu0 0.0
      %2980 = vmatpush1.msra.mxu0 %v2937
      %2981 = vmatprep.subr.mxu0 0.0
      %2982 = vmatpush1.msra.mxu0 %v2936
      %2983 = vmatprep.subr.mxu0 0.0
      %2984 = vmatpush1.msra.mxu0 %v2935
      %2985 = vmatprep.subr.mxu0 0.0
      %2986 = vmatpush2.msra.mxu0 0.0
      %2987 = vmatprep.subr.mxu0 0.0
      %2988 = vmatpush2.msra.mxu0 0.0
      %2989 = vmatprep.subr.mxu0 0.0
      %2990 = vmatpush2.msra.mxu0 0.0
      %2991 = vmatprep.subr.mxu0 0.0
      %2992 = vmatpush2.msra.mxu0 0.0
      %2993 = vmatprep.subr.mxu0 0.0
      %2994 = vmatpush2.msra.mxu0 0.0
      %2995 = vmatprep.subr.mxu0 0.0
      %2996 = vmatpush2.msra.mxu0 0.0
      %2997 = vmatprep.subr.mxu0 0.0
      %2998 = vmatpush2.msra.mxu0 0.0
      %2999 = vmatprep.subr.mxu0 0.0
      %3000 = vmatpush2.msra.mxu0 0.0
      %3001 = vmatprep.subr.mxu0 0.0
      %3002 = vmatpush2.msra.mxu0 0.0
      %3003 = vmatprep.subr.mxu0 0.0
      %3004 = vmatpush2.msra.mxu0 0.0
      %3005 = vmatprep.subr.mxu0 0.0
      %3006 = vmatpush2.msra.mxu0 0.0
      %3007 = vmatprep.subr.mxu0 0.0
      %3008 = vmatpush2.msra.mxu0 0.0
      %3009 = vmatprep.subr.mxu0 0.0
      %3010 = vmatpush2.msra.mxu0 0.0
      %3011 = vmatprep.subr.mxu0 0.0
      %3012 = vmatpush2.msra.mxu0 0.0
      %3013 = vmatprep.subr.mxu0 0.0
      %3014 = vmatpush2.msra.mxu0 0.0
      %3015 = vmatprep.subr.mxu0 0.0
      %3016 = vmatpush2.msra.mxu0 0.0
      %3017 = vmatprep.mubr.f32.mxu0 0.0
      %3018 = vmatmul.mubr.f32.gmra.mxu0 %v2951
      %v3019 = vpop.f32.mrf.mxu0
      %v3020 = vadd.f32 %v2952, %v3019
      %v3021 = vpop.f32.mrf.mxu0
      %3022 = vdwg.mxu0
      %v3023 = vxor.u32 %v3020, 2147483648
      %v3024 = vmul.f32 %v3023, 1.442695
      %v3025 = vpow.pop %v3024
      %v3026 = vadd.f32 %v3025, 1.0
      %v3027 = vrcp.pop %v3026
      %v3028 = vmul.f32 1.0, %v3027
      %vm3029 = vcmask 0
      %3030 = vst.msk [vmem:[%s664] sm:$0x1] %vm3029, %v3028
      %p3031 = scmp.lt.s32.totalorder %s33, 1
      %s3032 = scalar_select %p3031, %s33, 1
      %s3033 = scalar_lea.vmem %s20, %s3032
      // Predicated region
      $region101: #{tpu_custom_call.1} parent=99 // pred_check
        %p3034 = pneg %p486
      $region102: #{tpu_custom_call.1} parent=99 // pred_check_branch
        %3036 = sbr.rel (%p3034) target = $region104
      $region103: #{tpu_custom_call.1} parent=99 // pred_region
        _
      $region104: #{tpu_custom_call.1} parent=99 // pred_fallthru
        _
    $region100: #{tpu_custom_call.1} parent=5 // pred_fallthru
      _
    %p3037 = scmp.le.s32.totalorder 2, %s28
    // Predicated region
    $region105: #{tpu_custom_call.1} parent=5 // pred_check
      %p3038 = pneg %p3037
    $region106: #{tpu_custom_call.1} parent=5 // pred_check_branch
      %3040 = sbr.rel (%p3038) target = $region108
    $region107: #{tpu_custom_call.1} parent=5 // pred_region
      %s3041 = ssub.s32 %s28, 2
      // Predicated region
      $region109: #{tpu_custom_call.1} parent=107 // pred_check
        %p3042 = pneg %p492
      $region110: #{tpu_custom_call.1} parent=107 // pred_check_branch
        %3044 = sbr.rel (%p3042) target = $region112
      $region111: #{tpu_custom_call.1} parent=107 // pred_region
        %p3045 = scmp.lt.s32.totalorder %s34, 1
        %s3046 = scalar_select %p3045, %s34, 1
        %s3047 = scalar_lea.vmem %s20, %s3046
      $region112: #{tpu_custom_call.1} parent=107 // pred_fallthru
        _
    $region108: #{tpu_custom_call.1} parent=5 // pred_fallthru
      _
  $region6: #{tpu_custom_call.1} parent=0 // loop_footer
    %s32 = sadd.s32 1, %s28
  $region7: #{tpu_custom_call.1} parent=0 // loop_footer_branch
    %27 = sbr.rel target = $region3
  $region8: #{tpu_custom_call.1} parent=0 // loop_exit
    _

</llo_original>
